<compile_context>
chip_gen: v5e
topology: v5e:2x2
jax: 0.10.0
libtpu: 0.0.40
codegen_flags: <defaults>
</compile_context>

<pallas_src>
import jax
import jax.numpy as jnp
import numpy as np
from jax import lax
from jax.experimental import pallas as pl
from jax.experimental.pallas import tpu as pltpu


def _round_up(x, m):
    return (x + m - 1) // m * m


def bottleneck_kernel(x_ref, xt_ref, xb_ref, w1_ref, w2_ref, w3_ref,
                      b1_ref, b2_ref, b3_ref, o_ref, y1p_ref):
    i = pl.program_id(1)
    nh = pl.num_programs(1)
    _, TH, W, Cin = x_ref.shape
    planes = w1_ref.shape[1]
    Cout = w3_ref.shape[1]

    w1 = w1_ref[...]
    b1 = b1_ref[...]

    def conv1(rows2d):                      # (M, Cin) bf16 -> (M, planes) f32
        y = jnp.dot(rows2d, w1, preferred_element_type=jnp.float32)
        return jnp.maximum(y + b1, 0.0)     # bn1 scale already folded into w1

    # ---- conv1 (1x1) + bn1 + relu, written straight into the padded scratch --
    x_main = x_ref[0].reshape(TH * W, Cin)                       # bf16
    y1p_ref[1:TH + 1, 1:W + 1, :] = (
        conv1(x_main).reshape(TH, W, planes).astype(jnp.bfloat16))

    # Halo rows: the 1x1 conv is pointwise, so recomputing it on the two
    # fetched neighbour rows is exact.
    yt = conv1(xt_ref[0].reshape(W, Cin)).reshape(1, W, planes).astype(jnp.bfloat16)
    yb = conv1(xb_ref[0].reshape(W, Cin)).reshape(1, W, planes).astype(jnp.bfloat16)
    y1p_ref[0:1, 1:W + 1, :] = yt
    y1p_ref[TH + 1:TH + 2, 1:W + 1, :] = yb

    # Perimeter of the padded scratch reproduces conv2's zero padding.
    zcol = jnp.zeros((TH + 2, 1, planes), jnp.bfloat16)
    zrow = jnp.zeros((1, W, planes), jnp.bfloat16)
    y1p_ref[:, 0:1, :] = zcol                     # left  padding column
    y1p_ref[:, W + 1:W + 2, :] = zcol             # right padding column

    @pl.when(i == 0)                              # top halo row is image padding
    def _():
        y1p_ref[0:1, 1:W + 1, :] = zrow

    @pl.when(i == nh - 1)                         # bottom halo row is image padding
    def _():
        y1p_ref[TH + 1:TH + 2, 1:W + 1, :] = zrow

    # ---- conv2 (3x3, pad=1, stride=1): 9 accumulating MXU matmuls ------------
    # (no im2col concat; taps read the bf16 scratch directly)
    acc = jnp.zeros((TH * W, planes), jnp.float32)
    for dy in range(3):
        for dx in range(3):
            tap = y1p_ref[dy:dy + TH, dx:dx + W, :].reshape(TH * W, planes)
            acc = acc + jnp.dot(tap, w2_ref[dy * 3 + dx],
                                preferred_element_type=jnp.float32)
    y2 = jnp.maximum(acc + b2_ref[...], 0.0)

    # ---- conv3 (1x1 expansion) + bn3 + residual add + relu -------------------
    y3 = jnp.dot(y2.astype(jnp.bfloat16), w3_ref[...],
                 preferred_element_type=jnp.float32) + b3_ref[...]
    out = jnp.maximum(y3 + x_main.astype(jnp.float32), 0.0)
    o_ref[...] = out.reshape(1, TH, W, Cout).astype(o_ref.dtype)


def _vmem_plan():
    """Return (vmem_limit_bytes, tiling_budget_bytes) derived from the chip's
    physical VMEM (v5e/v6e: 128 MiB, v7x: 64 MiB per TC).  Falls back to the
    smallest per-core VMEM if the query is unavailable."""
    try:
        phys = int(getattr(pltpu.get_tpu_info(), "vmem_capacity_bytes", 0)) or (64 << 20)
    except Exception:
        phys = 64 << 20
    vmem_limit = min(int(phys * 0.55), 72 << 20)
    budget = max(vmem_limit - (6 << 20), 8 << 20)    # headroom for Mosaic scratch
    return vmem_limit, budget


def _pick_tile_h(H, W, cin, planes, cout, budget_bytes, min_steps_per_image=1):
    """Largest divisor of H whose per-step working set fits the budget.
    Accounts for the double-buffered pipelined blocks, the (also double
    buffered) replicated weight/bias blocks, the bf16 padded scratch and the
    in-kernel f32 temporaries."""
    w_pad = _round_up(W + 2, 16)
    # Replicated blocks are still double-buffered by the pipeline even though
    # their index maps are constant.
    fixed = 2 * 2 * (cin * planes + 9 * planes * planes + planes * cout)  # bf16 weights x2
    fixed += 2 * 4 * (2 * planes + cout)                                  # f32 biases  x2
    best = None
    for th in range(1, H + 1):
        if H % th:
            continue
        if (H // th) < min_steps_per_image:
            continue
        pipelined = 2 * 2 * W * (th * cin + 2 * cin + th * cout)   # bf16 x/halo/out, x2 bufs
        scratch = (th + 2) * w_pad * planes * 2                    # bf16 padded conv1 output
        temps = th * W * (14 * planes + 10 * cout + 6 * cin)       # generous f32/bf16 temps
        if fixed + pipelined + scratch + temps <= budget_bytes:
            best = th
    return best or 1


def bottleneck_caffe_nhwc(x_nhwc, params, tile_h=None):
    """Fused bottleneck on bf16 NHWC activations (preferred entry point)."""
    (w1f, w2f, w3f, b1, b2, b3) = params
    N, H, W, Cin = x_nhwc.shape
    planes = w1f.shape[1]
    Cout = w3f.shape[1]
    assert Cin == Cout, "residual add requires inplanes == planes * expansion"
    x_nhwc = x_nhwc.astype(jnp.bfloat16)

    vmem_limit, budget = _vmem_plan()
    if tile_h is None:
        # keep >=2 H-steps for a single image so v7x's two TCs both get work
        tile_h = _pick_tile_h(H, W, Cin, planes, Cout, budget,
                              min_steps_per_image=2 if N == 1 else 1)
    # TODO(synk): ragged last tile (H % tile_h != 0) not handled.
    assert H % tile_h == 0, "H must be divisible by tile_h"
    nh = H // tile_h
    w_pad = _round_up(W + 2, 16)

    def tile_idx(n, i):
        return (n, i, 0, 0)

    def top_idx(n, i):                 # row above the tile (clamped at border)
        return (n, jnp.maximum(i * tile_h - 1, 0), 0, 0)

    def bot_idx(n, i):                 # row below the tile (clamped at border)
        return (n, jnp.minimum(i * tile_h + tile_h, H - 1), 0, 0)

    def rep(arr):                      # full-array block, constant index map
        nd = arr.ndim
        # NOTE: constant index map -> never re-fetched between grid steps; with
        # pipeline_mode=pl.Buffered(1) these could also be single-buffered to
        # reclaim VMEM for larger tiles on v7x.
        return pl.BlockSpec(arr.shape, lambda n, i, nd=nd: (0,) * nd)

    grid_spec = pltpu.PrefetchScalarGridSpec(
        num_scalar_prefetch=0,
        grid=(N, nh),
        in_specs=[
            pl.BlockSpec((1, tile_h, W, Cin), tile_idx),   # main tile
            pl.BlockSpec((1, 1, W, Cin), top_idx),         # top halo row
            pl.BlockSpec((1, 1, W, Cin), bot_idx),         # bottom halo row
            rep(w1f), rep(w2f), rep(w3f),
            rep(b1), rep(b2), rep(b3),
        ],
        out_specs=pl.BlockSpec((1, tile_h, W, Cout), tile_idx),
        scratch_shapes=[pltpu.VMEM((tile_h + 2, w_pad, planes), jnp.bfloat16)],
    )

    return pl.pallas_call(
        bottleneck_kernel,
        out_shape=jax.ShapeDtypeStruct((N, H, W, Cout), jnp.bfloat16),
        grid_spec=grid_spec,
        compiler_params=pltpu.CompilerParams(
            dimension_semantics=("parallel", "parallel"),
            vmem_limit_bytes=int(vmem_limit)),
    )(x_nhwc, x_nhwc, x_nhwc, w1f, w2f, w3f, b1, b2, b3)


def bottleneck_caffe(x_nchw, params, tile_h=None):
    """NCHW/f32 convenience wrapper matching the PyTorch module interface.
    NOTE: keep activations bf16 NHWC end-to-end in a real network; these two
    transposes roughly double the HBM traffic of this memory-bound block."""
    x_nhwc = jnp.transpose(x_nchw, (0, 2, 3, 1)).astype(jnp.bfloat16)
    out = bottleneck_caffe_nhwc(x_nhwc, params, tile_h=tile_h)
    return jnp.transpose(out, (0, 3, 1, 2)).astype(jnp.float32)


def fold_bn(gamma, beta, mean, var, eps=1e-5):
    scale = gamma / jnp.sqrt(var + eps)
    bias = beta - mean * scale
    return scale, bias


def make_params(key, inplanes, planes):
    """Build conv weights + folded BN params; BN scales are folded into the
    bf16 conv weights (inference-time BN folding), biases stay f32 (1, C)."""
    expansion = 4
    cout = planes * expansion
    ks = jax.random.split(key, 6)
    w1 = 0.1 * jax.random.normal(ks[0], (inplanes, planes), jnp.float32)
    w2_hwio = 0.1 * jax.random.normal(ks[1], (3, 3, planes, planes), jnp.float32)
    w3 = 0.1 * jax.random.normal(ks[2], (planes, cout), jnp.float32)

    def bn(k, c):
        kg, kb, km, kv = jax.random.split(k, 4)
        gamma = 1.0 + 0.1 * jax.random.normal(kg, (c,), jnp.float32)
        beta = 0.1 * jax.random.normal(kb, (c,), jnp.float32)
        mean = 0.05 * jax.random.normal(km, (c,), jnp.float32)
        var = 1.0 + 0.1 * jax.random.uniform(kv, (c,), jnp.float32)
        return fold_bn(gamma, beta, mean, var)

    s1, b1 = bn(ks[3], planes)
    s2, b2 = bn(ks[4], planes)
    s3, b3 = bn(ks[5], cout)

    w1f = (w1 * s1[None, :]).astype(jnp.bfloat16)                    # (Cin, planes)
    w2f = (w2_hwio * s2[None, None, None, :]).astype(jnp.bfloat16)   # (3,3,pin,pout)
    w2f = w2f.reshape(9, planes, planes)                             # tap-major (dy,dx)
    w3f = (w3 * s3[None, :]).astype(jnp.bfloat16)                    # (planes, Cout)

    return (w1f, w2f, w3f,
            b1.reshape(1, -1), b2.reshape(1, -1), b3.reshape(1, -1))


def reference_forward(x_nchw, params):
    """Pure-JAX reference with the same folded weights and bf16-input /
    f32-accumulate dtype policy as the kernel (output kept in f32)."""
    (w1f, w2f, w3f, b1, b2, b3) = params
    planes = w1f.shape[1]
    w2_hwio = w2f.reshape(3, 3, planes, planes)
    x = jnp.transpose(x_nchw, (0, 2, 3, 1)).astype(jnp.bfloat16)
    dn = ('NHWC', 'HWIO', 'NHWC')
    y = lax.conv_general_dilated(x, w1f.reshape(1, 1, *w1f.shape), (1, 1), 'VALID',
                                 dimension_numbers=dn,
                                 preferred_element_type=jnp.float32)
    y = jnp.maximum(y + b1[0], 0.0)
    y = lax.conv_general_dilated(y.astype(jnp.bfloat16), w2_hwio, (1, 1),
                                 ((1, 1), (1, 1)), dimension_numbers=dn,
                                 preferred_element_type=jnp.float32)
    y = jnp.maximum(y + b2[0], 0.0)
    y = lax.conv_general_dilated(y.astype(jnp.bfloat16),
                                 w3f.reshape(1, 1, *w3f.shape), (1, 1), 'VALID',
                                 dimension_numbers=dn,
                                 preferred_element_type=jnp.float32)
    y = y + b3[0]
    y = jnp.maximum(y + x.astype(jnp.float32), 0.0)
    return jnp.transpose(y, (0, 3, 1, 2)).astype(jnp.float32)


if __name__ == "__main__":
    # small shapes consistent with the module: inplanes = planes * expansion
    N, inplanes, planes, H, W = 2, 16, 4, 16, 16

    key = jax.random.PRNGKey(0)
    kx, kp = jax.random.split(key)
    x = jax.random.normal(kx, (N, inplanes, H, W), jnp.float32)
    params = make_params(kp, inplanes, planes)

    ref = jax.block_until_ready(reference_forward(x, params))

    # tile_h=8 -> grid (2, 2): exercises both the image-border (zeroed) and
    # interior (fetched) halo paths.
    out = jax.block_until_ready(bottleneck_caffe(x, params, tile_h=8))
    np.testing.assert_allclose(np.asarray(out), np.asarray(ref),
                               rtol=2e-2, atol=2e-2)

    # auto-picked tile: exercises the per-generation VMEM planning path.
    out_auto = jax.block_until_ready(bottleneck_caffe(x, params))
    np.testing.assert_allclose(np.asarray(out_auto), np.asarray(ref),
                               rtol=2e-2, atol=2e-2)

    print("KERNEL_OK")
</pallas_src>

<mosaic_0001>
module attributes {stable_mosaic.version = 11 : i64} {
  func.func @bottleneck_kernel(%arg0: i32, %arg1: i32, %arg2: memref<1x8x16x16xbf16, #tpu.memory_space<vmem>>, %arg3: memref<1x1x16x16xbf16, #tpu.memory_space<vmem>>, %arg4: memref<1x1x16x16xbf16, #tpu.memory_space<vmem>>, %arg5: memref<16x4xbf16, #tpu.memory_space<vmem>>, %arg6: memref<9x4x4xbf16, #tpu.memory_space<vmem>>, %arg7: memref<4x16xbf16, #tpu.memory_space<vmem>>, %arg8: memref<1x4xf32, #tpu.memory_space<vmem>>, %arg9: memref<1x4xf32, #tpu.memory_space<vmem>>, %arg10: memref<1x16xf32, #tpu.memory_space<vmem>>, %arg11: memref<1x8x16x16xbf16, #tpu.memory_space<vmem>>, %arg12: memref<10x32x4xbf16, #tpu.memory_space<vmem>>) attributes {dimension_semantics = [#tpu.dimension_semantics<parallel>, #tpu.dimension_semantics<parallel>], iteration_bounds = array<i64: 2, 2>, scalar_prefetch = 0 : i64, scratch_operands = 1 : i64, tpu.core_type = #tpu.core_type<tc>, window_params = [{transform_indices = @transform_0, window_bounds = array<i64: 1, 8, 16, 16>}, {transform_indices = @transform_1, window_bounds = array<i64: 1, 1, 16, 16>}, {transform_indices = @transform_2, window_bounds = array<i64: 1, 1, 16, 16>}, {pipeline_mode = #tpu.pipeline_mode<synchronous>, transform_indices = @transform_3, window_bounds = array<i64: 16, 4>}, {pipeline_mode = #tpu.pipeline_mode<synchronous>, transform_indices = @transform_4, window_bounds = array<i64: 9, 4, 4>}, {pipeline_mode = #tpu.pipeline_mode<synchronous>, transform_indices = @transform_5, window_bounds = array<i64: 4, 16>}, {pipeline_mode = #tpu.pipeline_mode<synchronous>, transform_indices = @transform_6, window_bounds = array<i64: 1, 4>}, {pipeline_mode = #tpu.pipeline_mode<synchronous>, transform_indices = @transform_7, window_bounds = array<i64: 1, 4>}, {pipeline_mode = #tpu.pipeline_mode<synchronous>, transform_indices = @transform_8, window_bounds = array<i64: 1, 16>}, {transform_indices = @transform_9, window_bounds = array<i64: 1, 8, 16, 16>}]} {
    %c0 = arith.constant 0 : index
    %c0_0 = arith.constant 0 : index
    %0 = vector.load %arg5[%c0, %c0_0] : memref<16x4xbf16, #tpu.memory_space<vmem>>, vector<16x4xbf16>
    %c0_1 = arith.constant 0 : index
    %c0_2 = arith.constant 0 : index
    %1 = vector.load %arg8[%c0_1, %c0_2] : memref<1x4xf32, #tpu.memory_space<vmem>>, vector<1x4xf32>
    %c0_3 = arith.constant 0 : index
    %c0_4 = arith.constant 0 : index
    %c0_5 = arith.constant 0 : index
    %c0_6 = arith.constant 0 : index
    %2 = vector.load %arg2[%c0_3, %c0_4, %c0_5, %c0_6] : memref<1x8x16x16xbf16, #tpu.memory_space<vmem>>, vector<1x8x16x16xbf16>
    %3 = vector.shape_cast %2 : vector<1x8x16x16xbf16> to vector<8x16x16xbf16>
    %4 = vector.shape_cast %3 : vector<8x16x16xbf16> to vector<128x16xbf16>
    %cst = arith.constant dense<0.000000e+00> : vector<128x4xf32>
    %5 = tpu.matmul %4, %0, %cst {dimension_numbers = #tpu.dot_dimension_numbers<[1], [0], [0], [1], [0, 0, 1, 1], [], []>} : vector<128x16xbf16>, vector<16x4xbf16>, vector<128x4xf32> -> vector<128x4xf32>
    %6 = vector.broadcast %1 : vector<1x4xf32> to vector<128x4xf32>
    %7 = arith.addf %5, %6 : vector<128x4xf32>
    %cst_7 = arith.constant 0.000000e+00 : f32
    %8 = vector.broadcast %cst_7 : f32 to vector<128x4xf32>
    %9 = arith.maximumf %7, %8 : vector<128x4xf32>
    %10 = vector.shape_cast %9 : vector<128x4xf32> to vector<8x16x4xf32>
    %11 = arith.truncf %10 : vector<8x16x4xf32> to vector<8x16x4xbf16>
    %c1 = arith.constant 1 : index
    %c1_8 = arith.constant 1 : index
    %c0_9 = arith.constant 0 : index
    %12 = vector.load %arg12[%c1, %c1_8, %c0_9] : memref<10x32x4xbf16, #tpu.memory_space<vmem>>, vector<8x16x4xbf16>
    tpu.vector_store %arg12[%c1, %c1_8, %c0_9], %11 {strides = array<i32>} : memref<10x32x4xbf16, #tpu.memory_space<vmem>>, vector<8x16x4xbf16>,
    %c0_10 = arith.constant 0 : index
    %c0_11 = arith.constant 0 : index
    %c0_12 = arith.constant 0 : index
    %c0_13 = arith.constant 0 : index
    %13 = vector.load %arg3[%c0_10, %c0_11, %c0_12, %c0_13] : memref<1x1x16x16xbf16, #tpu.memory_space<vmem>>, vector<1x1x16x16xbf16>
    %14 = vector.shape_cast %13 : vector<1x1x16x16xbf16> to vector<1x16x16xbf16>
    %15 = vector.shape_cast %14 : vector<1x16x16xbf16> to vector<16x16xbf16>
    %cst_14 = arith.constant dense<0.000000e+00> : vector<16x4xf32>
    %16 = tpu.matmul %15, %0, %cst_14 {dimension_numbers = #tpu.dot_dimension_numbers<[1], [0], [0], [1], [0, 0, 1, 1], [], []>} : vector<16x16xbf16>, vector<16x4xbf16>, vector<16x4xf32> -> vector<16x4xf32>
    %17 = vector.broadcast %1 : vector<1x4xf32> to vector<16x4xf32>
    %18 = arith.addf %16, %17 : vector<16x4xf32>
    %cst_15 = arith.constant 0.000000e+00 : f32
    %19 = vector.broadcast %cst_15 : f32 to vector<16x4xf32>
    %20 = arith.maximumf %18, %19 : vector<16x4xf32>
    %21 = vector.shape_cast %20 : vector<16x4xf32> to vector<1x16x4xf32>
    %22 = arith.truncf %21 : vector<1x16x4xf32> to vector<1x16x4xbf16>
    %c0_16 = arith.constant 0 : index
    %c0_17 = arith.constant 0 : index
    %c0_18 = arith.constant 0 : index
    %c0_19 = arith.constant 0 : index
    %23 = vector.load %arg4[%c0_16, %c0_17, %c0_18, %c0_19] : memref<1x1x16x16xbf16, #tpu.memory_space<vmem>>, vector<1x1x16x16xbf16>
    %24 = vector.shape_cast %23 : vector<1x1x16x16xbf16> to vector<1x16x16xbf16>
    %25 = vector.shape_cast %24 : vector<1x16x16xbf16> to vector<16x16xbf16>
    %cst_20 = arith.constant dense<0.000000e+00> : vector<16x4xf32>
    %26 = tpu.matmul %25, %0, %cst_20 {dimension_numbers = #tpu.dot_dimension_numbers<[1], [0], [0], [1], [0, 0, 1, 1], [], []>} : vector<16x16xbf16>, vector<16x4xbf16>, vector<16x4xf32> -> vector<16x4xf32>
    %27 = vector.broadcast %1 : vector<1x4xf32> to vector<16x4xf32>
    %28 = arith.addf %26, %27 : vector<16x4xf32>
    %cst_21 = arith.constant 0.000000e+00 : f32
    %29 = vector.broadcast %cst_21 : f32 to vector<16x4xf32>
    %30 = arith.maximumf %28, %29 : vector<16x4xf32>
    %31 = vector.shape_cast %30 : vector<16x4xf32> to vector<1x16x4xf32>
    %32 = arith.truncf %31 : vector<1x16x4xf32> to vector<1x16x4xbf16>
    %c0_22 = arith.constant 0 : index
    %c1_23 = arith.constant 1 : index
    %c0_24 = arith.constant 0 : index
    %33 = vector.load %arg12[%c0_22, %c1_23, %c0_24] : memref<10x32x4xbf16, #tpu.memory_space<vmem>>, vector<1x16x4xbf16>
    tpu.vector_store %arg12[%c0_22, %c1_23, %c0_24], %22 {strides = array<i32>} : memref<10x32x4xbf16, #tpu.memory_space<vmem>>, vector<1x16x4xbf16>,
    %c9 = arith.constant 9 : index
    %c1_25 = arith.constant 1 : index
    %c0_26 = arith.constant 0 : index
    %34 = vector.load %arg12[%c9, %c1_25, %c0_26] : memref<10x32x4xbf16, #tpu.memory_space<vmem>>, vector<1x16x4xbf16>
    tpu.vector_store %arg12[%c9, %c1_25, %c0_26], %32 {strides = array<i32>} : memref<10x32x4xbf16, #tpu.memory_space<vmem>>, vector<1x16x4xbf16>,
    %cst_27 = arith.constant 0.000000e+00 : bf16
    %35 = vector.broadcast %cst_27 : bf16 to vector<10x1x4xbf16>
    %cst_28 = arith.constant 0.000000e+00 : bf16
    %36 = vector.broadcast %cst_28 : bf16 to vector<1x16x4xbf16>
    %c0_29 = arith.constant 0 : index
    %c0_30 = arith.constant 0 : index
    %c0_31 = arith.constant 0 : index
    %37 = vector.load %arg12[%c0_29, %c0_30, %c0_31] : memref<10x32x4xbf16, #tpu.memory_space<vmem>>, vector<10x1x4xbf16>
    tpu.vector_store %arg12[%c0_29, %c0_30, %c0_31], %35 {strides = array<i32>} : memref<10x32x4xbf16, #tpu.memory_space<vmem>>, vector<10x1x4xbf16>,
    %c0_32 = arith.constant 0 : index
    %c17 = arith.constant 17 : index
    %c0_33 = arith.constant 0 : index
    %38 = vector.load %arg12[%c0_32, %c17, %c0_33] : memref<10x32x4xbf16, #tpu.memory_space<vmem>>, vector<10x1x4xbf16>
    tpu.vector_store %arg12[%c0_32, %c17, %c0_33], %35 {strides = array<i32>} : memref<10x32x4xbf16, #tpu.memory_space<vmem>>, vector<10x1x4xbf16>,
    %c0_i32 = arith.constant 0 : i32
    %39 = arith.cmpi eq, %arg1, %c0_i32 : i32
    %40 = arith.extui %39 : i1 to i32
    %c0_i32_34 = arith.constant 0 : i32
    %41 = arith.cmpi ne, %40, %c0_i32_34 : i32
    scf.if %41 {
      %c0_106 = arith.constant 0 : index
      %c1_107 = arith.constant 1 : index
      %c0_108 = arith.constant 0 : index
      %118 = vector.load %arg12[%c0_106, %c1_107, %c0_108] : memref<10x32x4xbf16, #tpu.memory_space<vmem>>, vector<1x16x4xbf16>
      tpu.vector_store %arg12[%c0_106, %c1_107, %c0_108], %36 {strides = array<i32>} : memref<10x32x4xbf16, #tpu.memory_space<vmem>>, vector<1x16x4xbf16>,
    } else {
    }
    %c1_i32 = arith.constant 1 : i32
    %42 = arith.cmpi eq, %arg1, %c1_i32 : i32
    %43 = arith.extui %42 : i1 to i32
    %c0_i32_35 = arith.constant 0 : i32
    %44 = arith.cmpi ne, %43, %c0_i32_35 : i32
    scf.if %44 {
      %c9_106 = arith.constant 9 : index
      %c1_107 = arith.constant 1 : index
      %c0_108 = arith.constant 0 : index
      %118 = vector.load %arg12[%c9_106, %c1_107, %c0_108] : memref<10x32x4xbf16, #tpu.memory_space<vmem>>, vector<1x16x4xbf16>
      tpu.vector_store %arg12[%c9_106, %c1_107, %c0_108], %36 {strides = array<i32>} : memref<10x32x4xbf16, #tpu.memory_space<vmem>>, vector<1x16x4xbf16>,
    } else {
    }
    %cst_36 = arith.constant 0.000000e+00 : f32
    %45 = vector.broadcast %cst_36 : f32 to vector<128x4xf32>
    %c0_37 = arith.constant 0 : index
    %c0_38 = arith.constant 0 : index
    %c0_39 = arith.constant 0 : index
    %46 = vector.load %arg12[%c0_37, %c0_38, %c0_39] : memref<10x32x4xbf16, #tpu.memory_space<vmem>>, vector<8x16x4xbf16>
    %47 = vector.shape_cast %46 : vector<8x16x4xbf16> to vector<128x4xbf16>
    %c0_40 = arith.constant 0 : index
    %c0_41 = arith.constant 0 : index
    %c0_42 = arith.constant 0 : index
    %48 = vector.load %arg6[%c0_40, %c0_41, %c0_42] : memref<9x4x4xbf16, #tpu.memory_space<vmem>>, vector<1x4x4xbf16>
    %49 = vector.shape_cast %48 : vector<1x4x4xbf16> to vector<4x4xbf16>
    %cst_43 = arith.constant dense<0.000000e+00> : vector<128x4xf32>
    %50 = tpu.matmul %47, %49, %cst_43 {dimension_numbers = #tpu.dot_dimension_numbers<[1], [0], [0], [1], [0, 0, 1, 1], [], []>} : vector<128x4xbf16>, vector<4x4xbf16>, vector<128x4xf32> -> vector<128x4xf32>
    %51 = arith.addf %45, %50 : vector<128x4xf32>
    %c0_44 = arith.constant 0 : index
    %c1_45 = arith.constant 1 : index
    %c0_46 = arith.constant 0 : index
    %52 = vector.load %arg12[%c0_44, %c1_45, %c0_46] : memref<10x32x4xbf16, #tpu.memory_space<vmem>>, vector<8x16x4xbf16>
    %53 = vector.shape_cast %52 : vector<8x16x4xbf16> to vector<128x4xbf16>
    %c1_47 = arith.constant 1 : index
    %c0_48 = arith.constant 0 : index
    %c0_49 = arith.constant 0 : index
    %54 = vector.load %arg6[%c1_47, %c0_48, %c0_49] : memref<9x4x4xbf16, #tpu.memory_space<vmem>>, vector<1x4x4xbf16>
    %55 = vector.shape_cast %54 : vector<1x4x4xbf16> to vector<4x4xbf16>
    %cst_50 = arith.constant dense<0.000000e+00> : vector<128x4xf32>
    %56 = tpu.matmul %53, %55, %cst_50 {dimension_numbers = #tpu.dot_dimension_numbers<[1], [0], [0], [1], [0, 0, 1, 1], [], []>} : vector<128x4xbf16>, vector<4x4xbf16>, vector<128x4xf32> -> vector<128x4xf32>
    %57 = arith.addf %51, %56 : vector<128x4xf32>
    %c0_51 = arith.constant 0 : index
    %c2 = arith.constant 2 : index
    %c0_52 = arith.constant 0 : index
    %58 = vector.load %arg12[%c0_51, %c2, %c0_52] : memref<10x32x4xbf16, #tpu.memory_space<vmem>>, vector<8x16x4xbf16>
    %59 = vector.shape_cast %58 : vector<8x16x4xbf16> to vector<128x4xbf16>
    %c2_53 = arith.constant 2 : index
    %c0_54 = arith.constant 0 : index
    %c0_55 = arith.constant 0 : index
    %60 = vector.load %arg6[%c2_53, %c0_54, %c0_55] : memref<9x4x4xbf16, #tpu.memory_space<vmem>>, vector<1x4x4xbf16>
    %61 = vector.shape_cast %60 : vector<1x4x4xbf16> to vector<4x4xbf16>
    %cst_56 = arith.constant dense<0.000000e+00> : vector<128x4xf32>
    %62 = tpu.matmul %59, %61, %cst_56 {dimension_numbers = #tpu.dot_dimension_numbers<[1], [0], [0], [1], [0, 0, 1, 1], [], []>} : vector<128x4xbf16>, vector<4x4xbf16>, vector<128x4xf32> -> vector<128x4xf32>
    %63 = arith.addf %57, %62 : vector<128x4xf32>
    %c1_57 = arith.constant 1 : index
    %c0_58 = arith.constant 0 : index
    %c0_59 = arith.constant 0 : index
    %64 = vector.load %arg12[%c1_57, %c0_58, %c0_59] : memref<10x32x4xbf16, #tpu.memory_space<vmem>>, vector<8x16x4xbf16>
    %65 = vector.shape_cast %64 : vector<8x16x4xbf16> to vector<128x4xbf16>
    %c3 = arith.constant 3 : index
    %c0_60 = arith.constant 0 : index
    %c0_61 = arith.constant 0 : index
    %66 = vector.load %arg6[%c3, %c0_60, %c0_61] : memref<9x4x4xbf16, #tpu.memory_space<vmem>>, vector<1x4x4xbf16>
    %67 = vector.shape_cast %66 : vector<1x4x4xbf16> to vector<4x4xbf16>
    %cst_62 = arith.constant dense<0.000000e+00> : vector<128x4xf32>
    %68 = tpu.matmul %65, %67, %cst_62 {dimension_numbers = #tpu.dot_dimension_numbers<[1], [0], [0], [1], [0, 0, 1, 1], [], []>} : vector<128x4xbf16>, vector<4x4xbf16>, vector<128x4xf32> -> vector<128x4xf32>
    %69 = arith.addf %63, %68 : vector<128x4xf32>
    %c1_63 = arith.constant 1 : index
    %c1_64 = arith.constant 1 : index
    %c0_65 = arith.constant 0 : index
    %70 = vector.load %arg12[%c1_63, %c1_64, %c0_65] : memref<10x32x4xbf16, #tpu.memory_space<vmem>>, vector<8x16x4xbf16>
    %71 = vector.shape_cast %70 : vector<8x16x4xbf16> to vector<128x4xbf16>
    %c4 = arith.constant 4 : index
    %c0_66 = arith.constant 0 : index
    %c0_67 = arith.constant 0 : index
    %72 = vector.load %arg6[%c4, %c0_66, %c0_67] : memref<9x4x4xbf16, #tpu.memory_space<vmem>>, vector<1x4x4xbf16>
    %73 = vector.shape_cast %72 : vector<1x4x4xbf16> to vector<4x4xbf16>
    %cst_68 = arith.constant dense<0.000000e+00> : vector<128x4xf32>
    %74 = tpu.matmul %71, %73, %cst_68 {dimension_numbers = #tpu.dot_dimension_numbers<[1], [0], [0], [1], [0, 0, 1, 1], [], []>} : vector<128x4xbf16>, vector<4x4xbf16>, vector<128x4xf32> -> vector<128x4xf32>
    %75 = arith.addf %69, %74 : vector<128x4xf32>
    %c1_69 = arith.constant 1 : index
    %c2_70 = arith.constant 2 : index
    %c0_71 = arith.constant 0 : index
    %76 = vector.load %arg12[%c1_69, %c2_70, %c0_71] : memref<10x32x4xbf16, #tpu.memory_space<vmem>>, vector<8x16x4xbf16>
    %77 = vector.shape_cast %76 : vector<8x16x4xbf16> to vector<128x4xbf16>
    %c5 = arith.constant 5 : index
    %c0_72 = arith.constant 0 : index
    %c0_73 = arith.constant 0 : index
    %78 = vector.load %arg6[%c5, %c0_72, %c0_73] : memref<9x4x4xbf16, #tpu.memory_space<vmem>>, vector<1x4x4xbf16>
    %79 = vector.shape_cast %78 : vector<1x4x4xbf16> to vector<4x4xbf16>
    %cst_74 = arith.constant dense<0.000000e+00> : vector<128x4xf32>
    %80 = tpu.matmul %77, %79, %cst_74 {dimension_numbers = #tpu.dot_dimension_numbers<[1], [0], [0], [1], [0, 0, 1, 1], [], []>} : vector<128x4xbf16>, vector<4x4xbf16>, vector<128x4xf32> -> vector<128x4xf32>
    %81 = arith.addf %75, %80 : vector<128x4xf32>
    %c2_75 = arith.constant 2 : index
    %c0_76 = arith.constant 0 : index
    %c0_77 = arith.constant 0 : index
    %82 = vector.load %arg12[%c2_75, %c0_76, %c0_77] : memref<10x32x4xbf16, #tpu.memory_space<vmem>>, vector<8x16x4xbf16>
    %83 = vector.shape_cast %82 : vector<8x16x4xbf16> to vector<128x4xbf16>
    %c6 = arith.constant 6 : index
    %c0_78 = arith.constant 0 : index
    %c0_79 = arith.constant 0 : index
    %84 = vector.load %arg6[%c6, %c0_78, %c0_79] : memref<9x4x4xbf16, #tpu.memory_space<vmem>>, vector<1x4x4xbf16>
    %85 = vector.shape_cast %84 : vector<1x4x4xbf16> to vector<4x4xbf16>
    %cst_80 = arith.constant dense<0.000000e+00> : vector<128x4xf32>
    %86 = tpu.matmul %83, %85, %cst_80 {dimension_numbers = #tpu.dot_dimension_numbers<[1], [0], [0], [1], [0, 0, 1, 1], [], []>} : vector<128x4xbf16>, vector<4x4xbf16>, vector<128x4xf32> -> vector<128x4xf32>
    %87 = arith.addf %81, %86 : vector<128x4xf32>
    %c2_81 = arith.constant 2 : index
    %c1_82 = arith.constant 1 : index
    %c0_83 = arith.constant 0 : index
    %88 = vector.load %arg12[%c2_81, %c1_82, %c0_83] : memref<10x32x4xbf16, #tpu.memory_space<vmem>>, vector<8x16x4xbf16>
    %89 = vector.shape_cast %88 : vector<8x16x4xbf16> to vector<128x4xbf16>
    %c7 = arith.constant 7 : index
    %c0_84 = arith.constant 0 : index
    %c0_85 = arith.constant 0 : index
    %90 = vector.load %arg6[%c7, %c0_84, %c0_85] : memref<9x4x4xbf16, #tpu.memory_space<vmem>>, vector<1x4x4xbf16>
    %91 = vector.shape_cast %90 : vector<1x4x4xbf16> to vector<4x4xbf16>
    %cst_86 = arith.constant dense<0.000000e+00> : vector<128x4xf32>
    %92 = tpu.matmul %89, %91, %cst_86 {dimension_numbers = #tpu.dot_dimension_numbers<[1], [0], [0], [1], [0, 0, 1, 1], [], []>} : vector<128x4xbf16>, vector<4x4xbf16>, vector<128x4xf32> -> vector<128x4xf32>
    %93 = arith.addf %87, %92 : vector<128x4xf32>
    %c2_87 = arith.constant 2 : index
    %c2_88 = arith.constant 2 : index
    %c0_89 = arith.constant 0 : index
    %94 = vector.load %arg12[%c2_87, %c2_88, %c0_89] : memref<10x32x4xbf16, #tpu.memory_space<vmem>>, vector<8x16x4xbf16>
    %95 = vector.shape_cast %94 : vector<8x16x4xbf16> to vector<128x4xbf16>
    %c8 = arith.constant 8 : index
    %c0_90 = arith.constant 0 : index
    %c0_91 = arith.constant 0 : index
    %96 = vector.load %arg6[%c8, %c0_90, %c0_91] : memref<9x4x4xbf16, #tpu.memory_space<vmem>>, vector<1x4x4xbf16>
    %97 = vector.shape_cast %96 : vector<1x4x4xbf16> to vector<4x4xbf16>
    %cst_92 = arith.constant dense<0.000000e+00> : vector<128x4xf32>
    %98 = tpu.matmul %95, %97, %cst_92 {dimension_numbers = #tpu.dot_dimension_numbers<[1], [0], [0], [1], [0, 0, 1, 1], [], []>} : vector<128x4xbf16>, vector<4x4xbf16>, vector<128x4xf32> -> vector<128x4xf32>
    %99 = arith.addf %93, %98 : vector<128x4xf32>
    %c0_93 = arith.constant 0 : index
    %c0_94 = arith.constant 0 : index
    %100 = vector.load %arg9[%c0_93, %c0_94] : memref<1x4xf32, #tpu.memory_space<vmem>>, vector<1x4xf32>
    %101 = vector.broadcast %100 : vector<1x4xf32> to vector<128x4xf32>
    %102 = arith.addf %99, %101 : vector<128x4xf32>
    %cst_95 = arith.constant 0.000000e+00 : f32
    %103 = vector.broadcast %cst_95 : f32 to vector<128x4xf32>
    %104 = arith.maximumf %102, %103 : vector<128x4xf32>
    %105 = arith.truncf %104 : vector<128x4xf32> to vector<128x4xbf16>
    %c0_96 = arith.constant 0 : index
    %c0_97 = arith.constant 0 : index
    %106 = vector.load %arg7[%c0_96, %c0_97] : memref<4x16xbf16, #tpu.memory_space<vmem>>, vector<4x16xbf16>
    %cst_98 = arith.constant dense<0.000000e+00> : vector<128x16xf32>
    %107 = tpu.matmul %105, %106, %cst_98 {dimension_numbers = #tpu.dot_dimension_numbers<[1], [0], [0], [1], [0, 0, 1, 1], [], []>} : vector<128x4xbf16>, vector<4x16xbf16>, vector<128x16xf32> -> vector<128x16xf32>
    %c0_99 = arith.constant 0 : index
    %c0_100 = arith.constant 0 : index
    %108 = vector.load %arg10[%c0_99, %c0_100] : memref<1x16xf32, #tpu.memory_space<vmem>>, vector<1x16xf32>
    %109 = vector.broadcast %108 : vector<1x16xf32> to vector<128x16xf32>
    %110 = arith.addf %107, %109 : vector<128x16xf32>
    %111 = arith.extf %4 : vector<128x16xbf16> to vector<128x16xf32>
    %112 = arith.addf %110, %111 : vector<128x16xf32>
    %cst_101 = arith.constant 0.000000e+00 : f32
    %113 = vector.broadcast %cst_101 : f32 to vector<128x16xf32>
    %114 = arith.maximumf %112, %113 : vector<128x16xf32>
    %115 = vector.shape_cast %114 : vector<128x16xf32> to vector<1x8x16x16xf32>
    %116 = arith.truncf %115 : vector<1x8x16x16xf32> to vector<1x8x16x16xbf16>
    %c0_102 = arith.constant 0 : index
    %c0_103 = arith.constant 0 : index
    %c0_104 = arith.constant 0 : index
    %c0_105 = arith.constant 0 : index
    %117 = vector.load %arg11[%c0_102, %c0_103, %c0_104, %c0_105] : memref<1x8x16x16xbf16, #tpu.memory_space<vmem>>, vector<1x8x16x16xbf16>
    tpu.vector_store %arg11[%c0_102, %c0_103, %c0_104, %c0_105], %116 {strides = array<i32>} : memref<1x8x16x16xbf16, #tpu.memory_space<vmem>>, vector<1x8x16x16xbf16>,
    return
  }
  func.func @transform_0(%arg0: i32, %arg1: i32) -> (i32, i32, i32, i32) {
    %c0_i32 = arith.constant 0 : i32
    %c0_i32_0 = arith.constant 0 : i32
    %c0_i32_1 = arith.constant 0 : i32
    return %arg0, %arg1, %c0_i32, %c0_i32_0 : i32, i32, i32, i32
  }
  func.func @transform_1(%arg0: i32, %arg1: i32) -> (i32, i32, i32, i32) {
    %c8_i32 = arith.constant 8 : i32
    %0 = arith.muli %arg1, %c8_i32 : i32
    %c1_i32 = arith.constant 1 : i32
    %1 = arith.subi %0, %c1_i32 : i32
    %c0_i32 = arith.constant 0 : i32
    %2 = arith.maxsi %1, %c0_i32 : i32
    %c0_i32_0 = arith.constant 0 : i32
    %c0_i32_1 = arith.constant 0 : i32
    %c0_i32_2 = arith.constant 0 : i32
    return %arg0, %2, %c0_i32_0, %c0_i32_1 : i32, i32, i32, i32
  }
  func.func @transform_2(%arg0: i32, %arg1: i32) -> (i32, i32, i32, i32) {
    %c8_i32 = arith.constant 8 : i32
    %0 = arith.muli %arg1, %c8_i32 : i32
    %c8_i32_0 = arith.constant 8 : i32
    %1 = arith.addi %0, %c8_i32_0 : i32
    %c15_i32 = arith.constant 15 : i32
    %2 = arith.minsi %1, %c15_i32 : i32
    %c0_i32 = arith.constant 0 : i32
    %c0_i32_1 = arith.constant 0 : i32
    %c0_i32_2 = arith.constant 0 : i32
    return %arg0, %2, %c0_i32, %c0_i32_1 : i32, i32, i32, i32
  }
  func.func @transform_3(%arg0: i32, %arg1: i32) -> (i32, i32) {
    %c0_i32 = arith.constant 0 : i32
    %c0_i32_0 = arith.constant 0 : i32
    %c0_i32_1 = arith.constant 0 : i32
    return %c0_i32, %c0_i32_0 : i32, i32
  }
  func.func @transform_4(%arg0: i32, %arg1: i32) -> (i32, i32, i32) {
    %c0_i32 = arith.constant 0 : i32
    %c0_i32_0 = arith.constant 0 : i32
    %c0_i32_1 = arith.constant 0 : i32
    %c0_i32_2 = arith.constant 0 : i32
    return %c0_i32, %c0_i32_0, %c0_i32_1 : i32, i32, i32
  }
  func.func @transform_5(%arg0: i32, %arg1: i32) -> (i32, i32) {
    %c0_i32 = arith.constant 0 : i32
    %c0_i32_0 = arith.constant 0 : i32
    %c0_i32_1 = arith.constant 0 : i32
    return %c0_i32, %c0_i32_0 : i32, i32
  }
  func.func @transform_6(%arg0: i32, %arg1: i32) -> (i32, i32) {
    %c0_i32 = arith.constant 0 : i32
    %c0_i32_0 = arith.constant 0 : i32
    %c0_i32_1 = arith.constant 0 : i32
    return %c0_i32, %c0_i32_0 : i32, i32
  }
  func.func @transform_7(%arg0: i32, %arg1: i32) -> (i32, i32) {
    %c0_i32 = arith.constant 0 : i32
    %c0_i32_0 = arith.constant 0 : i32
    %c0_i32_1 = arith.constant 0 : i32
    return %c0_i32, %c0_i32_0 : i32, i32
  }
  func.func @transform_8(%arg0: i32, %arg1: i32) -> (i32, i32) {
    %c0_i32 = arith.constant 0 : i32
    %c0_i32_0 = arith.constant 0 : i32
    %c0_i32_1 = arith.constant 0 : i32
    return %c0_i32, %c0_i32_0 : i32, i32
  }
  func.func @transform_9(%arg0: i32, %arg1: i32) -> (i32, i32, i32, i32) {
    %c0_i32 = arith.constant 0 : i32
    %c0_i32_0 = arith.constant 0 : i32
    %c0_i32_1 = arith.constant 0 : i32
    return %arg0, %arg1, %c0_i32, %c0_i32_0 : i32, i32, i32, i32
  }
}

</mosaic_0001>

<llo_original>
// kernel: tpu_custom_call.1
$region0: #{tpu_custom_call.1}
  #allocation0 [shape = 'u32[]', space=smem, size = 0x4, offset = 0x4, fixed_abs, tag = 'smem constant byte address 0x4 - core index']
  #allocation1 [shape = 'u32[72,128]{1,0:T(1,128)}', space=vmem, size = 0x9000, scoped, tag = 'internal scratch']
  #allocation2 [shape = 'bf16[10,32,4]{2,1,0:T(8,128)(2,1)}', space=vmem, size = 0x14000, scoped, tag = 'scratch operand']
  %s0 = inlined_call_operand.hbm [shape: bf16[2,16,16,16], index: 0, kind: input, shape index: {}]
  %s1 = inlined_call_operand.hbm [shape: bf16[2,16,16,16], index: 1, kind: input, shape index: {}]
  %s2 = inlined_call_operand.hbm [shape: bf16[2,16,16,16], index: 2, kind: input, shape index: {}]
  %s3 = inlined_call_operand.vmem [shape: bf16[16,4], index: 3, kind: input, shape index: {}]
  %s4 = inlined_call_operand.vmem [shape: bf16[9,4,4], index: 4, kind: input, shape index: {}]
  %s5 = inlined_call_operand.vmem [shape: bf16[4,16], index: 5, kind: input, shape index: {}]
  %s6 = inlined_call_operand.vmem [shape: f32[1,4], index: 6, kind: input, shape index: {}]
  %s7 = inlined_call_operand.vmem [shape: f32[1,4], index: 7, kind: input, shape index: {}]
  %s8 = inlined_call_operand.vmem [shape: f32[1,16], index: 8, kind: input, shape index: {}]
  %s9 = inlined_call_operand.hbm [shape: bf16[2,16,16,16], index: 9, kind: output, shape index: {}]
  %s10 = sld [smem:[#allocation0]]
  $region89: #{tpu_custom_call.1} parent=0
    _
  %s12 = ssub.s32 1, %s10
  %s13 = scalar_select 0, %s12, %s10
  $region1: #{tpu_custom_call.1} parent=0
    #allocation3 [shape = 'u8[65536]{0}', space=vmem, size = 0x10000, scoped, tag = 'input window, operand 0']
    #allocation4 [shape = 's32[2]{0}', space=sflag, size = 0x8, scoped, tag = 'scoped memory for tpu_custom_call.1']
    #allocation5 [shape = 's32[2]{0}', space=sflag, size = 0x8, scoped, tag = 'scoped memory for tpu_custom_call.1']
    #allocation6 [shape = 'u8[8192]{0}', space=vmem, size = 0x2000, scoped, tag = 'input window, operand 1']
    #allocation7 [shape = 's32[2]{0}', space=sflag, size = 0x8, scoped, tag = 'scoped memory for tpu_custom_call.1']
    #allocation8 [shape = 'u8[8192]{0}', space=vmem, size = 0x2000, scoped, tag = 'input window, operand 2']
    #allocation9 [shape = 'u8[65536]{0}', space=vmem, size = 0x10000, scoped, tag = 'output window, operand 0']
    %14 = vsyncpa [#allocation4], 0
    %s15 = scalar_lea.sflag [#allocation4], 1
    %16 = vsyncpa %s15, 0
    %17 = vsyncpa [#allocation7], 0
    %s18 = scalar_lea.sflag [#allocation7], 1
    %19 = vsyncpa %s18, 0
    %20 = vsyncpa [#allocation5], 0
    %s21 = scalar_lea.sflag [#allocation5], 1
    %22 = vsyncpa %s21, 0
    loop: start=0, step=1, limit=6
    $region2: #{tpu_custom_call.1} parent=1 // loop_pre_header
      _
    $region3: #{tpu_custom_call.1} parent=1 // loop_header
      %s24 = sphi 0, %s28
      %p25 = scmp.ge.s32.totalorder %s24, 6
      %s31 = sphi 0, %s43
      %s32 = sphi 0, %s39
      %s33 = sphi 0, %s31
      %s34 = sphi 0, %s32
      %s35 = sphi 0, %s33
      %s36 = sphi 0, %s34
      %s48 = sphi 0, %s50
      %s51 = sphi 0, %s48
      %s52 = sphi 0, %s51
      %s68 = sphi 0, %s52
      %s84 = sphi 0, %s86
      %s87 = sphi 0, %s84
      %s88 = sphi 0, %s87
      %s104 = sphi 0, %s88
      %s120 = sphi 0, %s122
      %s123 = sphi 0, %s120
      %s124 = sphi 0, %s123
      %s140 = sphi 0, %s124
      %s144 = sphi 0, %s144
      %s146 = sphi 0, %s144
      %s147 = sphi 0, %s146
      %s161 = sphi 0, %s147
      %s165 = sphi 0, %s165
      %s167 = sphi 0, %s165
      %s168 = sphi 0, %s167
      %s182 = sphi 0, %s168
      %s186 = sphi 0, %s186
      %s188 = sphi 0, %s186
      %s189 = sphi 0, %s188
      %s203 = sphi 0, %s189
      %s207 = sphi 0, %s207
      %s209 = sphi 0, %s207
      %s210 = sphi 0, %s209
      %s224 = sphi 0, %s210
      %s228 = sphi 0, %s228
      %s230 = sphi 0, %s228
      %s231 = sphi 0, %s230
      %s245 = sphi 0, %s231
      %s249 = sphi 0, %s249
      %s251 = sphi 0, %s249
      %s252 = sphi 0, %s251
      %s266 = sphi 0, %s252
      %s274 = sphi 0, %s276
      %s277 = sphi 0, %s274
      %s278 = sphi 0, %s277
      %s294 = sphi 0, %s278
    $region4: #{tpu_custom_call.1} parent=1 // loop_header_branch
      %27 = sbr.rel (%p25) target = $region8
    $region5: #{tpu_custom_call.1} parent=1 // loop_body
      %s29 = ssub.s32 %s24, 1
      %s30 = ssub.s32 %s24, 2
      %s37 = sadd.s32 1, %s32
      %p38 = scmp.ge.s32.totalorder %s37, 2
      %s39 = scalar_select %p38, 0, %s37
      %s40 = sadd.s32 1, %s31
      %s41 = scalar_select %p38, %s40, %s31
      %p42 = scmp.ge.s32.totalorder %s41, 2
      %s43 = scalar_select %p42, 0, %s41
      %s44 = ssub.s32 %s31, %s43
      %s45 = ssub.s32 %s32, %s39
      %s46 = sor.u32 %s44, %s45
      %p47 = scmp.eq.s32.totalorder %s46, 0
      %s49 = sadd.s32 %s48, 1
      %s50 = scalar_select %p47, %s48, %s49
      %p53 = pneg %p47
      %p54 = scmp.eq.s32.totalorder %s24, 3
      %p55 = por %p53, %p54
      %p56 = scmp.ne.s32.totalorder %s48, %s51
      %p57 = scmp.eq.s32.totalorder %s24, 0
      %p58 = por %p56, %p57
      %p59 = scmp.ne.s32.totalorder %s48, %s51
      %p60 = scmp.eq.s32.totalorder %s29, 3
      %p61 = por %p59, %p60
      %p62 = scmp.ne.s32.totalorder %s51, %s52
      %p63 = scmp.eq.s32.totalorder %s29, 0
      %p64 = por %p62, %p63
      %p65 = scmp.ne.s32.totalorder %s51, %s52
      %p66 = scmp.eq.s32.totalorder %s30, 3
      %p67 = por %p65, %p66
      %p69 = scmp.ne.s32.totalorder %s52, %s68
      %p70 = scmp.eq.s32.totalorder %s30, 0
      %p71 = por %p69, %p70
      %s72 = smul.u32 %s32, 8
      %s73 = ssub.s32 %s72, 1
      %p74 = scmp.gt.s32.totalorder %s73, 0
      %s75 = scalar_select %p74, %s73, 0
      %s76 = smul.u32 %s39, 8
      %s77 = ssub.s32 %s76, 1
      %p78 = scmp.gt.s32.totalorder %s77, 0
      %s79 = scalar_select %p78, %s77, 0
      %s80 = ssub.s32 %s31, %s43
      %s81 = ssub.s32 %s75, %s79
      %s82 = sor.u32 %s80, %s81
      %p83 = scmp.eq.s32.totalorder %s82, 0
      %s85 = sadd.s32 %s84, 1
      %s86 = scalar_select %p83, %s84, %s85
      %p89 = pneg %p83
      %p90 = scmp.eq.s32.totalorder %s24, 3
      %p91 = por %p89, %p90
      %p92 = scmp.ne.s32.totalorder %s84, %s87
      %p93 = scmp.eq.s32.totalorder %s24, 0
      %p94 = por %p92, %p93
      %p95 = scmp.ne.s32.totalorder %s84, %s87
      %p96 = scmp.eq.s32.totalorder %s29, 3
      %p97 = por %p95, %p96
      %p98 = scmp.ne.s32.totalorder %s87, %s88
      %p99 = scmp.eq.s32.totalorder %s29, 0
      %p100 = por %p98, %p99
      %p101 = scmp.ne.s32.totalorder %s87, %s88
      %p102 = scmp.eq.s32.totalorder %s30, 3
      %p103 = por %p101, %p102
      %p105 = scmp.ne.s32.totalorder %s88, %s104
      %p106 = scmp.eq.s32.totalorder %s30, 0
      %p107 = por %p105, %p106
      %s108 = smul.u32 %s32, 8
      %s109 = sadd.s32 %s108, 8
      %p110 = scmp.lt.s32.totalorder %s109, 15
      %s111 = scalar_select %p110, %s109, 15
      %s112 = smul.u32 %s39, 8
      %s113 = sadd.s32 %s112, 8
      %p114 = scmp.lt.s32.totalorder %s113, 15
      %s115 = scalar_select %p114, %s113, 15
      %s116 = ssub.s32 %s31, %s43
      %s117 = ssub.s32 %s111, %s115
      %s118 = sor.u32 %s116, %s117
      %p119 = scmp.eq.s32.totalorder %s118, 0
      %s121 = sadd.s32 %s120, 1
      %s122 = scalar_select %p119, %s120, %s121
      %p125 = pneg %p119
      %p126 = scmp.eq.s32.totalorder %s24, 3
      %p127 = por %p125, %p126
      %p128 = scmp.ne.s32.totalorder %s120, %s123
      %p129 = scmp.eq.s32.totalorder %s24, 0
      %p130 = por %p128, %p129
      %p131 = scmp.ne.s32.totalorder %s120, %s123
      %p132 = scmp.eq.s32.totalorder %s29, 3
      %p133 = por %p131, %p132
      %p134 = scmp.ne.s32.totalorder %s123, %s124
      %p135 = scmp.eq.s32.totalorder %s29, 0
      %p136 = por %p134, %p135
      %p137 = scmp.ne.s32.totalorder %s123, %s124
      %p138 = scmp.eq.s32.totalorder %s30, 3
      %p139 = por %p137, %p138
      %p141 = scmp.ne.s32.totalorder %s124, %s140
      %p142 = scmp.eq.s32.totalorder %s30, 0
      %p143 = por %p141, %p142
      %s145 = sadd.s32 %s144, 1
      %p148 = scmp.eq.s32.totalorder %s24, 3
      %p149 = scmp.ne.s32.totalorder %s144, %s146
      %p150 = scmp.eq.s32.totalorder %s24, 0
      %p151 = por %p149, %p150
      %p152 = scmp.ne.s32.totalorder %s144, %s146
      %p153 = scmp.eq.s32.totalorder %s29, 3
      %p154 = por %p152, %p153
      %p155 = scmp.ne.s32.totalorder %s146, %s147
      %p156 = scmp.eq.s32.totalorder %s29, 0
      %p157 = por %p155, %p156
      %p158 = scmp.ne.s32.totalorder %s146, %s147
      %p159 = scmp.eq.s32.totalorder %s30, 3
      %p160 = por %p158, %p159
      %p162 = scmp.ne.s32.totalorder %s147, %s161
      %p163 = scmp.eq.s32.totalorder %s30, 0
      %p164 = por %p162, %p163
      %s166 = sadd.s32 %s165, 1
      %p169 = scmp.eq.s32.totalorder %s24, 3
      %p170 = scmp.ne.s32.totalorder %s165, %s167
      %p171 = scmp.eq.s32.totalorder %s24, 0
      %p172 = por %p170, %p171
      %p173 = scmp.ne.s32.totalorder %s165, %s167
      %p174 = scmp.eq.s32.totalorder %s29, 3
      %p175 = por %p173, %p174
      %p176 = scmp.ne.s32.totalorder %s167, %s168
      %p177 = scmp.eq.s32.totalorder %s29, 0
      %p178 = por %p176, %p177
      %p179 = scmp.ne.s32.totalorder %s167, %s168
      %p180 = scmp.eq.s32.totalorder %s30, 3
      %p181 = por %p179, %p180
      %p183 = scmp.ne.s32.totalorder %s168, %s182
      %p184 = scmp.eq.s32.totalorder %s30, 0
      %p185 = por %p183, %p184
      %s187 = sadd.s32 %s186, 1
      %p190 = scmp.eq.s32.totalorder %s24, 3
      %p191 = scmp.ne.s32.totalorder %s186, %s188
      %p192 = scmp.eq.s32.totalorder %s24, 0
      %p193 = por %p191, %p192
      %p194 = scmp.ne.s32.totalorder %s186, %s188
      %p195 = scmp.eq.s32.totalorder %s29, 3
      %p196 = por %p194, %p195
      %p197 = scmp.ne.s32.totalorder %s188, %s189
      %p198 = scmp.eq.s32.totalorder %s29, 0
      %p199 = por %p197, %p198
      %p200 = scmp.ne.s32.totalorder %s188, %s189
      %p201 = scmp.eq.s32.totalorder %s30, 3
      %p202 = por %p200, %p201
      %p204 = scmp.ne.s32.totalorder %s189, %s203
      %p205 = scmp.eq.s32.totalorder %s30, 0
      %p206 = por %p204, %p205
      %s208 = sadd.s32 %s207, 1
      %p211 = scmp.eq.s32.totalorder %s24, 3
      %p212 = scmp.ne.s32.totalorder %s207, %s209
      %p213 = scmp.eq.s32.totalorder %s24, 0
      %p214 = por %p212, %p213
      %p215 = scmp.ne.s32.totalorder %s207, %s209
      %p216 = scmp.eq.s32.totalorder %s29, 3
      %p217 = por %p215, %p216
      %p218 = scmp.ne.s32.totalorder %s209, %s210
      %p219 = scmp.eq.s32.totalorder %s29, 0
      %p220 = por %p218, %p219
      %p221 = scmp.ne.s32.totalorder %s209, %s210
      %p222 = scmp.eq.s32.totalorder %s30, 3
      %p223 = por %p221, %p222
      %p225 = scmp.ne.s32.totalorder %s210, %s224
      %p226 = scmp.eq.s32.totalorder %s30, 0
      %p227 = por %p225, %p226
      %s229 = sadd.s32 %s228, 1
      %p232 = scmp.eq.s32.totalorder %s24, 3
      %p233 = scmp.ne.s32.totalorder %s228, %s230
      %p234 = scmp.eq.s32.totalorder %s24, 0
      %p235 = por %p233, %p234
      %p236 = scmp.ne.s32.totalorder %s228, %s230
      %p237 = scmp.eq.s32.totalorder %s29, 3
      %p238 = por %p236, %p237
      %p239 = scmp.ne.s32.totalorder %s230, %s231
      %p240 = scmp.eq.s32.totalorder %s29, 0
      %p241 = por %p239, %p240
      %p242 = scmp.ne.s32.totalorder %s230, %s231
      %p243 = scmp.eq.s32.totalorder %s30, 3
      %p244 = por %p242, %p243
      %p246 = scmp.ne.s32.totalorder %s231, %s245
      %p247 = scmp.eq.s32.totalorder %s30, 0
      %p248 = por %p246, %p247
      %s250 = sadd.s32 %s249, 1
      %p253 = scmp.eq.s32.totalorder %s24, 3
      %p254 = scmp.ne.s32.totalorder %s249, %s251
      %p255 = scmp.eq.s32.totalorder %s24, 0
      %p256 = por %p254, %p255
      %p257 = scmp.ne.s32.totalorder %s249, %s251
      %p258 = scmp.eq.s32.totalorder %s29, 3
      %p259 = por %p257, %p258
      %p260 = scmp.ne.s32.totalorder %s251, %s252
      %p261 = scmp.eq.s32.totalorder %s29, 0
      %p262 = por %p260, %p261
      %p263 = scmp.ne.s32.totalorder %s251, %s252
      %p264 = scmp.eq.s32.totalorder %s30, 3
      %p265 = por %p263, %p264
      %p267 = scmp.ne.s32.totalorder %s252, %s266
      %p268 = scmp.eq.s32.totalorder %s30, 0
      %p269 = por %p267, %p268
      %s270 = ssub.s32 %s31, %s43
      %s271 = ssub.s32 %s32, %s39
      %s272 = sor.u32 %s270, %s271
      %p273 = scmp.eq.s32.totalorder %s272, 0
      %s275 = sadd.s32 %s274, 1
      %s276 = scalar_select %p273, %s274, %s275
      %p279 = pneg %p273
      %p280 = scmp.eq.s32.totalorder %s24, 3
      %p281 = por %p279, %p280
      %p282 = scmp.ne.s32.totalorder %s274, %s277
      %p283 = scmp.eq.s32.totalorder %s24, 0
      %p284 = por %p282, %p283
      %p285 = scmp.ne.s32.totalorder %s274, %s277
      %p286 = scmp.eq.s32.totalorder %s29, 3
      %p287 = por %p285, %p286
      %p288 = scmp.ne.s32.totalorder %s277, %s278
      %p289 = scmp.eq.s32.totalorder %s29, 0
      %p290 = por %p288, %p289
      %p291 = scmp.ne.s32.totalorder %s277, %s278
      %p292 = scmp.eq.s32.totalorder %s30, 3
      %p293 = por %p291, %p292
      %p295 = scmp.ne.s32.totalorder %s278, %s294
      %p296 = scmp.eq.s32.totalorder %s30, 0
      %p297 = por %p295, %p296
      %p298 = scmp.le.s32.totalorder 1, %s24
      %p299 = scmp.lt.s32.totalorder %s24, 5
      %p300 = pnand %p298, %p299
      %p301 = pneg %p300
      // Predicated region
      $region9: #{tpu_custom_call.1} parent=5 // pred_check
        _
      $region10: #{tpu_custom_call.1} parent=5 // pred_check_branch
        %303 = sbr.rel (%p300) target = $region12
      $region11: #{tpu_custom_call.1} parent=5 // pred_region
        %s304 = ssub.s32 %s24, 1
        // Predicated region
        $region13: #{tpu_custom_call.1} parent=11 // pred_check
          %p305 = pneg %p157
        $region14: #{tpu_custom_call.1} parent=11 // pred_check_branch
          %307 = sbr.rel (%p305) target = $region16
        $region15: #{tpu_custom_call.1} parent=11 // pred_region
          _
        $region16: #{tpu_custom_call.1} parent=11 // pred_fallthru
          _
        // Predicated region
        $region17: #{tpu_custom_call.1} parent=11 // pred_check
          %p308 = pneg %p178
        $region18: #{tpu_custom_call.1} parent=11 // pred_check_branch
          %310 = sbr.rel (%p308) target = $region20
        $region19: #{tpu_custom_call.1} parent=11 // pred_region
          _
        $region20: #{tpu_custom_call.1} parent=11 // pred_fallthru
          _
        // Predicated region
        $region21: #{tpu_custom_call.1} parent=11 // pred_check
          %p311 = pneg %p199
        $region22: #{tpu_custom_call.1} parent=11 // pred_check_branch
          %313 = sbr.rel (%p311) target = $region24
        $region23: #{tpu_custom_call.1} parent=11 // pred_region
          _
        $region24: #{tpu_custom_call.1} parent=11 // pred_fallthru
          _
        // Predicated region
        $region25: #{tpu_custom_call.1} parent=11 // pred_check
          %p314 = pneg %p220
        $region26: #{tpu_custom_call.1} parent=11 // pred_check_branch
          %316 = sbr.rel (%p314) target = $region28
        $region27: #{tpu_custom_call.1} parent=11 // pred_region
          _
        $region28: #{tpu_custom_call.1} parent=11 // pred_fallthru
          _
        // Predicated region
        $region29: #{tpu_custom_call.1} parent=11 // pred_check
          %p317 = pneg %p241
        $region30: #{tpu_custom_call.1} parent=11 // pred_check_branch
          %319 = sbr.rel (%p317) target = $region32
        $region31: #{tpu_custom_call.1} parent=11 // pred_region
          _
        $region32: #{tpu_custom_call.1} parent=11 // pred_fallthru
          _
        // Predicated region
        $region33: #{tpu_custom_call.1} parent=11 // pred_check
          %p320 = pneg %p262
        $region34: #{tpu_custom_call.1} parent=11 // pred_check_branch
          %322 = sbr.rel (%p320) target = $region36
        $region35: #{tpu_custom_call.1} parent=11 // pred_region
          _
        $region36: #{tpu_custom_call.1} parent=11 // pred_fallthru
          _
      $region12: #{tpu_custom_call.1} parent=5 // pred_fallthru
        _
      %p323 = scmp.lt.s32.totalorder %s24, 4
      // Predicated region
      $region37: #{tpu_custom_call.1} parent=5 // pred_check
        %p324 = pneg %p323
      $region38: #{tpu_custom_call.1} parent=5 // pred_check_branch
        %326 = sbr.rel (%p324) target = $region40
      $region39: #{tpu_custom_call.1} parent=5 // pred_region
        // Predicated region
        $region41: #{tpu_custom_call.1} parent=39 // pred_check
          %p327 = pneg %p58
        $region42: #{tpu_custom_call.1} parent=39 // pred_check_branch
          %329 = sbr.rel (%p327) target = $region44
        $region43: #{tpu_custom_call.1} parent=39 // pred_region
          %s330 = sand.u32 %s48, 1
          %s331 = scalar_lea.sflag [#allocation4], %s330
          %s332 = sand.u32 %s48, 1
          %s333 = smul.addr %s332, 64
          %s334 = scalar_lea.vmem [#allocation3], %s333
          %s335 = smul.u32 8, %s32
          %337 = vsyncadd %s331, 0
          %s338 = smul.addr %s335, 2
          %s339 = smul.addr %s31, 32
          %s340 = sadd.s32 %s338, %s339
          %s341 = smul.addr %s340, 4
          %s342 = scalar_lea.hbm %s0, %s341
          %s343 = sshll.u32 %s342, 4
          %s344 = int_to_ptr.hbm [resolvable:$true] %s343
          %s345 = sshll.u32 %s334, 4
          %s346 = int_to_ptr.vmem [resolvable:$true] %s345
          %351 = dma.hbm_to_vmem [thread:$0]  %s344, 1024, %s346, %s331, 64, 64, 4
        $region44: #{tpu_custom_call.1} parent=39 // pred_fallthru
          _
        // Predicated region
        $region45: #{tpu_custom_call.1} parent=39 // pred_check
          %p352 = pneg %p94
        $region46: #{tpu_custom_call.1} parent=39 // pred_check_branch
          %354 = sbr.rel (%p352) target = $region48
        $region47: #{tpu_custom_call.1} parent=39 // pred_region
          %s355 = sand.u32 %s24, 1
          %s356 = scalar_lea.sflag [#allocation7], %s355
          %s357 = sand.u32 %s84, 1
          %s358 = smul.addr %s357, 8
          %s359 = scalar_lea.vmem [#allocation6], %s358
          %s360 = smul.u32 %s32, 8
          %s361 = ssub.s32 %s360, 1
          %p362 = scmp.gt.s32.totalorder %s361, 0
          %s363 = scalar_select %p362, %s361, 0
          %365 = vsyncadd %s356, 0
          %s366 = smul.addr %s363, 2
          %s367 = smul.addr %s31, 32
          %s368 = sadd.s32 %s366, %s367
          %s369 = smul.addr %s368, 4
          %s370 = scalar_lea.hbm %s1, %s369
          %s371 = sshll.u32 %s370, 4
          %s372 = int_to_ptr.hbm [resolvable:$true] %s371
          %s373 = sshll.u32 %s359, 4
          %s374 = int_to_ptr.vmem [resolvable:$true] %s373
          %379 = dma.hbm_to_vmem [thread:$0]  %s372, 128, %s374, %s356, 64, 64, 4
        $region48: #{tpu_custom_call.1} parent=39 // pred_fallthru
          _
        // Predicated region
        $region49: #{tpu_custom_call.1} parent=39 // pred_check
          %p380 = pneg %p130
        $region50: #{tpu_custom_call.1} parent=39 // pred_check_branch
          %382 = sbr.rel (%p380) target = $region52
        $region51: #{tpu_custom_call.1} parent=39 // pred_region
          %s383 = sand.u32 %s24, 1
          %s384 = scalar_lea.sflag [#allocation7], %s383
          %s385 = sand.u32 %s120, 1
          %s386 = smul.addr %s385, 8
          %s387 = scalar_lea.vmem [#allocation8], %s386
          %s388 = smul.u32 %s32, 8
          %s389 = sadd.s32 %s388, 8
          %p390 = scmp.lt.s32.totalorder %s389, 15
          %s391 = scalar_select %p390, %s389, 15
          %393 = vsyncadd %s384, 0
          %s394 = smul.addr %s391, 2
          %s395 = smul.addr %s31, 32
          %s396 = sadd.s32 %s394, %s395
          %s397 = smul.addr %s396, 4
          %s398 = scalar_lea.hbm %s2, %s397
          %s399 = sshll.u32 %s398, 4
          %s400 = int_to_ptr.hbm [resolvable:$true] %s399
          %s401 = sshll.u32 %s387, 4
          %s402 = int_to_ptr.vmem [resolvable:$true] %s401
          %407 = dma.hbm_to_vmem [thread:$0]  %s400, 128, %s402, %s384, 64, 64, 4
        $region52: #{tpu_custom_call.1} parent=39 // pred_fallthru
          _
      $region40: #{tpu_custom_call.1} parent=5 // pred_fallthru
        _
      %p408 = scmp.le.s32.totalorder 1, %s24
      %p409 = scmp.lt.s32.totalorder %s24, 5
      %p410 = pnand %p408, %p409
      %p411 = pneg %p410
      // Predicated region
      $region53: #{tpu_custom_call.1} parent=5 // pred_check
        _
      $region54: #{tpu_custom_call.1} parent=5 // pred_check_branch
        %413 = sbr.rel (%p410) target = $region56
      $region55: #{tpu_custom_call.1} parent=5 // pred_region
        %s414 = ssub.s32 %s24, 1
        %s415 = sand.u32 %s51, 1
        %s416 = scalar_lea.sflag [#allocation4], %s415
        %s417 = sand.u32 %s51, 1
        %s418 = smul.addr %s417, 64
        %s419 = scalar_lea.vmem [#allocation3], %s418
        // Predicated region
        $region57: #{tpu_custom_call.1} parent=55 // pred_check
          %p420 = pneg %p64
        $region58: #{tpu_custom_call.1} parent=55 // pred_check_branch
          %422 = sbr.rel (%p420) target = $region60
        $region59: #{tpu_custom_call.1} parent=55 // pred_region
          %424 = dma.done %s416, 1024
        $region60: #{tpu_custom_call.1} parent=55 // pred_fallthru
          _
        %s425 = sand.u32 %s29, 1
        %s426 = scalar_lea.sflag [#allocation7], %s425
        %s427 = sand.u32 %s87, 1
        %s428 = smul.addr %s427, 8
        %s429 = scalar_lea.vmem [#allocation6], %s428
        // Predicated region
        $region61: #{tpu_custom_call.1} parent=55 // pred_check
          %p430 = pneg %p100
        $region62: #{tpu_custom_call.1} parent=55 // pred_check_branch
          %432 = sbr.rel (%p430) target = $region64
        $region63: #{tpu_custom_call.1} parent=55 // pred_region
          %434 = dma.done %s426, 128
        $region64: #{tpu_custom_call.1} parent=55 // pred_fallthru
          _
        %s435 = sand.u32 %s29, 1
        %s436 = scalar_lea.sflag [#allocation7], %s435
        %s437 = sand.u32 %s123, 1
        %s438 = smul.addr %s437, 8
        %s439 = scalar_lea.vmem [#allocation8], %s438
        // Predicated region
        $region65: #{tpu_custom_call.1} parent=55 // pred_check
          %p440 = pneg %p136
        $region66: #{tpu_custom_call.1} parent=55 // pred_check_branch
          %442 = sbr.rel (%p440) target = $region68
        $region67: #{tpu_custom_call.1} parent=55 // pred_region
          %444 = dma.done %s436, 128
        $region68: #{tpu_custom_call.1} parent=55 // pred_fallthru
          _
        %s445 = sand.u32 %s51, 1
        %s446 = scalar_lea.sflag [#allocation4], %s445
        %s447 = sand.u32 %s51, 1
        %s448 = smul.addr %s447, 64
        %s449 = scalar_lea.vmem [#allocation3], %s448
        %p450 = pneg %p64
        %p451 = pneg %p61
        %s452 = sand.u32 %s29, 1
        %s453 = scalar_lea.sflag [#allocation7], %s452
        %s454 = sand.u32 %s87, 1
        %s455 = smul.addr %s454, 8
        %s456 = scalar_lea.vmem [#allocation6], %s455
        %p457 = pneg %p100
        %p458 = pneg %p97
        %s459 = sand.u32 %s29, 1
        %s460 = scalar_lea.sflag [#allocation7], %s459
        %s461 = sand.u32 %s123, 1
        %s462 = smul.addr %s461, 8
        %s463 = scalar_lea.vmem [#allocation8], %s462
        %p464 = pneg %p136
        %p465 = pneg %p133
        %p466 = pneg %p157
        %p467 = pneg %p154
        %p468 = pneg %p178
        %p469 = pneg %p175
        %p470 = pneg %p199
        %p471 = pneg %p196
        %p472 = pneg %p220
        %p473 = pneg %p217
        %p474 = pneg %p241
        %p475 = pneg %p238
        %p476 = pneg %p262
        %p477 = pneg %p259
        %p478 = pneg %p290
        %p479 = pneg %p287
        %s480 = sand.u32 %s277, 1
        %s481 = scalar_lea.sflag [#allocation5], %s480
        %s482 = sand.u32 %s277, 1
        %s483 = smul.addr %s482, 64
        %s484 = scalar_lea.vmem [#allocation9], %s483
        %s485 = smul.u32 8, %s34
        %s486 = smul.u32 %s34, 8
        %s487 = ssub.s32 %s486, 1
        %p488 = scmp.gt.s32.totalorder %s487, 0
        %s489 = scalar_select %p488, %s487, 0
        %s490 = smul.u32 %s34, 8
        %s491 = sadd.s32 %s490, 8
        %p492 = scmp.lt.s32.totalorder %s491, 15
        %s493 = scalar_select %p492, %s491, 15
        %s494 = smul.u32 8, %s34
        %v496 = vld [vmem:[%s3] sm:$0xf]
        %v497 = vld [vmem:[%s3 + $0x4] sm:$0xf]
        %v498 = vld [vmem:[%s6] sm:$0x1]
        %v499 = vld [vmem:[%s419] sm:$0xf]
        %v500 = vld [vmem:[%s419 + $0x4] sm:$0xf]
        %v501 = vld [vmem:[%s419 + $0x8] sm:$0xf]
        %v502 = vld [vmem:[%s419 + $0xc] sm:$0xf]
        %v503 = vld [vmem:[%s419 + $0x10] sm:$0xf]
        %v504 = vld [vmem:[%s419 + $0x14] sm:$0xf]
        %v505 = vld [vmem:[%s419 + $0x18] sm:$0xf]
        %v506 = vld [vmem:[%s419 + $0x1c] sm:$0xf]
        %v507 = vld [vmem:[%s419 + $0x20] sm:$0xf]
        %v508 = vld [vmem:[%s419 + $0x24] sm:$0xf]
        %v509 = vld [vmem:[%s419 + $0x28] sm:$0xf]
        %v510 = vld [vmem:[%s419 + $0x2c] sm:$0xf]
        %v511 = vld [vmem:[%s419 + $0x30] sm:$0xf]
        %v512 = vld [vmem:[%s419 + $0x34] sm:$0xf]
        %v513 = vld [vmem:[%s419 + $0x38] sm:$0xf]
        %v514 = vld [vmem:[%s419 + $0x3c] sm:$0xf]
        %v516 = vperm.slane %v498, 0
        %v534 = vunpack.c.l.b16 %v499
        %v535 = vunpack.c.l.b16 %v500
        %v536 = vunpack.c.l.b16 %v501
        %v537 = vunpack.c.l.b16 %v502
        %v538 = vunpack.c.l.b16 %v503
        %v539 = vunpack.c.l.b16 %v504
        %v540 = vunpack.c.l.b16 %v505
        %v541 = vunpack.c.l.b16 %v506
        %v542 = vunpack.c.l.b16 %v507
        %v543 = vunpack.c.l.b16 %v508
        %v544 = vunpack.c.l.b16 %v509
        %v545 = vunpack.c.l.b16 %v510
        %v546 = vunpack.c.l.b16 %v511
        %v547 = vunpack.c.l.b16 %v512
        %v548 = vunpack.c.l.b16 %v513
        %v549 = vunpack.c.l.b16 %v514
        %v550 = vpack.c.b16 %v535, %v534
        %v551 = vpack.c.b16 %v537, %v536
        %v552 = vpack.c.b16 %v539, %v538
        %v553 = vpack.c.b16 %v541, %v540
        %v554 = vpack.c.b16 %v543, %v542
        %v555 = vpack.c.b16 %v545, %v544
        %v556 = vpack.c.b16 %v547, %v546
        %v557 = vpack.c.b16 %v549, %v548
        %v560 = vunpack.c.l.b16 %v496
        %v561 = vunpack.c.l.b16 %v497
        %v562 = vpack.c.b16 %v561, %v560
        %vm564 = vcmask 130048
        %v566 = vsel %vm564, %v550, 0
        %v569 = vsel %vm564, %v551, 0
        %v572 = vsel %vm564, %v552, 0
        %v575 = vsel %vm564, %v553, 0
        %v578 = vsel %vm564, %v554, 0
        %v581 = vsel %vm564, %v555, 0
        %v584 = vsel %vm564, %v556, 0
        %v587 = vsel %vm564, %v557, 0
        %589 = vmatpush.bf16.msra.mxu0 0
        %590 = vmatpush.bf16.msra.mxu0 0
        %591 = vmatpush.bf16.msra.mxu0 0
        %592 = vmatpush.bf16.msra.mxu0 0
        %593 = vmatpush.bf16.msra.mxu0 0
        %594 = vmatpush.bf16.msra.mxu0 0
        %595 = vmatpush.bf16.msra.mxu0 0
        %596 = vmatpush.bf16.msra.mxu0 %v562
        %597 = vmatmul.bf16.gmra.mxu0 %v566
        %v598 = vpop.f32.mrf.mxu0
        %v599 = vadd.f32 %v516, %v598
        %v600 = vpop.f32.mrf.mxu0
        %v601 = vadd.f32 %v516, %v600
        %602 = vmatmul.bf16.gmra.mxu0 %v569
        %v603 = vpop.f32.mrf.mxu0
        %v604 = vadd.f32 %v516, %v603
        %v605 = vpop.f32.mrf.mxu0
        %v606 = vadd.f32 %v516, %v605
        %607 = vmatmul.bf16.gmra.mxu0 %v572
        %v608 = vpop.f32.mrf.mxu0
        %v609 = vadd.f32 %v516, %v608
        %v610 = vpop.f32.mrf.mxu0
        %v611 = vadd.f32 %v516, %v610
        %612 = vmatmul.bf16.gmra.mxu0 %v575
        %v613 = vpop.f32.mrf.mxu0
        %v614 = vadd.f32 %v516, %v613
        %v615 = vpop.f32.mrf.mxu0
        %v616 = vadd.f32 %v516, %v615
        %617 = vmatmul.bf16.gmra.mxu0 %v578
        %v618 = vpop.f32.mrf.mxu0
        %v619 = vadd.f32 %v516, %v618
        %v620 = vpop.f32.mrf.mxu0
        %v621 = vadd.f32 %v516, %v620
        %622 = vmatmul.bf16.gmra.mxu0 %v581
        %v623 = vpop.f32.mrf.mxu0
        %v624 = vadd.f32 %v516, %v623
        %v625 = vpop.f32.mrf.mxu0
        %v626 = vadd.f32 %v516, %v625
        %627 = vmatmul.bf16.gmra.mxu0 %v584
        %v628 = vpop.f32.mrf.mxu0
        %v629 = vadd.f32 %v516, %v628
        %v630 = vpop.f32.mrf.mxu0
        %v631 = vadd.f32 %v516, %v630
        %632 = vmatmul.bf16.gmra.mxu0 %v587
        %v633 = vpop.f32.mrf.mxu0
        %v634 = vadd.f32 %v516, %v633
        %v635 = vpop.f32.mrf.mxu0
        %v636 = vadd.f32 %v516, %v635
        %637 = vdwg.mxu0
        %v638 = vmax.f32 %v599, 0.0
        %v639 = vmax.f32 %v601, 0.0
        %v640 = vmax.f32 %v604, 0.0
        %v641 = vmax.f32 %v606, 0.0
        %v642 = vmax.f32 %v609, 0.0
        %v643 = vmax.f32 %v611, 0.0
        %v644 = vmax.f32 %v614, 0.0
        %v645 = vmax.f32 %v616, 0.0
        %v646 = vmax.f32 %v619, 0.0
        %v647 = vmax.f32 %v621, 0.0
        %v648 = vmax.f32 %v624, 0.0
        %v649 = vmax.f32 %v626, 0.0
        %v650 = vmax.f32 %v629, 0.0
        %v651 = vmax.f32 %v631, 0.0
        %v652 = vmax.f32 %v634, 0.0
        %v653 = vmax.f32 %v636, 0.0
        %v654 = vpack.c.bf16 %v638, %v638
        %v655 = vpack.c.bf16 %v639, %v639
        %v656 = vpack.c.bf16 %v640, %v640
        %v657 = vpack.c.bf16 %v641, %v641
        %v658 = vpack.c.bf16 %v642, %v642
        %v659 = vpack.c.bf16 %v643, %v643
        %v660 = vpack.c.bf16 %v644, %v644
        %v661 = vpack.c.bf16 %v645, %v645
        %v662 = vpack.c.bf16 %v646, %v646
        %v663 = vpack.c.bf16 %v647, %v647
        %v664 = vpack.c.bf16 %v648, %v648
        %v665 = vpack.c.bf16 %v649, %v649
        %v666 = vpack.c.bf16 %v650, %v650
        %v667 = vpack.c.bf16 %v651, %v651
        %v668 = vpack.c.bf16 %v652, %v652
        %v669 = vpack.c.bf16 %v653, %v653
        %vm670 = vsmask.f32 256
        %vm671 = vsmask.f32 4368
        %vm672 = vmor %vm670, %vm671
        %v674 = vshrl.u32 %v654, 16
        %v676 = vrot.slane %v674, 7
        %v677 = vshll.u32 %v654, 16
        %v679 = vor.u32 %v676, %v677
        %v680 = vrot.slane %v676, 4
        %v682 = vshrl.u32 %v655, 16
        %v684 = vrot.slane %v682, 7
        %v685 = vshll.u32 %v655, 16
        %v687 = vor.u32 %v684, %v685
        %v688 = vsel %vm672, %v680, %v687
        %v689 = vrot.slane %v684, 4
        %v691 = vshrl.u32 %v656, 16
        %v693 = vrot.slane %v691, 7
        %v694 = vshll.u32 %v656, 16
        %v696 = vor.u32 %v693, %v694
        %v697 = vrot.slane %v693, 4
        %v699 = vshrl.u32 %v657, 16
        %v701 = vrot.slane %v699, 7
        %v702 = vshll.u32 %v657, 16
        %v704 = vor.u32 %v701, %v702
        %v705 = vsel %vm672, %v697, %v704
        %v706 = vrot.slane %v701, 4
        %v708 = vshrl.u32 %v658, 16
        %v710 = vrot.slane %v708, 7
        %v711 = vshll.u32 %v658, 16
        %v713 = vor.u32 %v710, %v711
        %v714 = vrot.slane %v710, 4
        %v716 = vshrl.u32 %v659, 16
        %v718 = vrot.slane %v716, 7
        %v719 = vshll.u32 %v659, 16
        %v721 = vor.u32 %v718, %v719
        %v722 = vsel %vm672, %v714, %v721
        %v723 = vrot.slane %v718, 4
        %v725 = vshrl.u32 %v660, 16
        %v727 = vrot.slane %v725, 7
        %v728 = vshll.u32 %v660, 16
        %v730 = vor.u32 %v727, %v728
        %v731 = vrot.slane %v727, 4
        %v733 = vshrl.u32 %v661, 16
        %v735 = vrot.slane %v733, 7
        %v736 = vshll.u32 %v661, 16
        %v738 = vor.u32 %v735, %v736
        %v739 = vsel %vm672, %v731, %v738
        %v740 = vrot.slane %v735, 4
        %v742 = vshrl.u32 %v662, 16
        %v744 = vrot.slane %v742, 7
        %v745 = vshll.u32 %v662, 16
        %v747 = vor.u32 %v744, %v745
        %v748 = vrot.slane %v744, 4
        %v750 = vshrl.u32 %v663, 16
        %v752 = vrot.slane %v750, 7
        %v753 = vshll.u32 %v663, 16
        %v755 = vor.u32 %v752, %v753
        %v756 = vsel %vm672, %v748, %v755
        %v757 = vrot.slane %v752, 4
        %v759 = vshrl.u32 %v664, 16
        %v761 = vrot.slane %v759, 7
        %v762 = vshll.u32 %v664, 16
        %v764 = vor.u32 %v761, %v762
        %v765 = vrot.slane %v761, 4
        %v767 = vshrl.u32 %v665, 16
        %v769 = vrot.slane %v767, 7
        %v770 = vshll.u32 %v665, 16
        %v772 = vor.u32 %v769, %v770
        %v773 = vsel %vm672, %v765, %v772
        %v774 = vrot.slane %v769, 4
        %v776 = vshrl.u32 %v666, 16
        %v778 = vrot.slane %v776, 7
        %v779 = vshll.u32 %v666, 16
        %v781 = vor.u32 %v778, %v779
        %v782 = vrot.slane %v778, 4
        %v784 = vshrl.u32 %v667, 16
        %v786 = vrot.slane %v784, 7
        %v787 = vshll.u32 %v667, 16
        %v789 = vor.u32 %v786, %v787
        %v790 = vsel %vm672, %v782, %v789
        %v791 = vrot.slane %v786, 4
        %v793 = vshrl.u32 %v668, 16
        %v795 = vrot.slane %v793, 7
        %v796 = vshll.u32 %v668, 16
        %v798 = vor.u32 %v795, %v796
        %v799 = vrot.slane %v795, 4
        %v801 = vshrl.u32 %v669, 16
        %v803 = vrot.slane %v801, 7
        %v804 = vshll.u32 %v669, 16
        %v806 = vor.u32 %v803, %v804
        %v807 = vsel %vm672, %v799, %v806
        %v808 = vrot.slane %v803, 4
        %s833 = scalar_lea.vmem [#allocation2], 16
        %vm834 = vcmask 27648
        %vm835 = vsmask.f32 7938
        %vm836 = vmand %vm834, %vm835
        %v837 = vld [vmem:[%s833] sm:$0xf]
        %v838 = vsel %vm836, %v679, %v837
        %839 = vst [vmem:[%s833] sm:$0xf] %v838
        %vm840 = vcmask 27648
        %841 = vst.msk [vmem:[%s833 + $0x4] sm:$0xf] %vm840, %v688
        %vm842 = vcmask 24576
        %vm843 = vmand %vm842, %vm670
        %v844 = vld [vmem:[%s833 + $0x8] sm:$0x1]
        %v845 = vsel %vm843, %v689, %v844
        %846 = vst [vmem:[%s833 + $0x8] sm:$0x1] %v845
        %v847 = vld [vmem:[%s833 + $0x10] sm:$0xf]
        %v848 = vsel %vm836, %v696, %v847
        %849 = vst [vmem:[%s833 + $0x10] sm:$0xf] %v848
        %850 = vst.msk [vmem:[%s833 + $0x14] sm:$0xf] %vm840, %v705
        %v851 = vld [vmem:[%s833 + $0x18] sm:$0x1]
        %v852 = vsel %vm843, %v706, %v851
        %853 = vst [vmem:[%s833 + $0x18] sm:$0x1] %v852
        %v854 = vld [vmem:[%s833 + $0x20] sm:$0xf]
        %v855 = vsel %vm836, %v713, %v854
        %856 = vst [vmem:[%s833 + $0x20] sm:$0xf] %v855
        %857 = vst.msk [vmem:[%s833 + $0x24] sm:$0xf] %vm840, %v722
        %v858 = vld [vmem:[%s833 + $0x28] sm:$0x1]
        %v859 = vsel %vm843, %v723, %v858
        %860 = vst [vmem:[%s833 + $0x28] sm:$0x1] %v859
        %v861 = vld [vmem:[%s833 + $0x30] sm:$0xf]
        %v862 = vsel %vm836, %v730, %v861
        %863 = vst [vmem:[%s833 + $0x30] sm:$0xf] %v862
        %864 = vst.msk [vmem:[%s833 + $0x34] sm:$0xf] %vm840, %v739
        %v865 = vld [vmem:[%s833 + $0x38] sm:$0x1]
        %v866 = vsel %vm843, %v740, %v865
        %867 = vst [vmem:[%s833 + $0x38] sm:$0x1] %v866
        %v868 = vld [vmem:[%s833 + $0x40] sm:$0xf]
        %v869 = vsel %vm836, %v747, %v868
        %870 = vst [vmem:[%s833 + $0x40] sm:$0xf] %v869
        %871 = vst.msk [vmem:[%s833 + $0x44] sm:$0xf] %vm840, %v756
        %v872 = vld [vmem:[%s833 + $0x48] sm:$0x1]
        %v873 = vsel %vm843, %v757, %v872
        %874 = vst [vmem:[%s833 + $0x48] sm:$0x1] %v873
        %v875 = vld [vmem:[%s833 + $0x50] sm:$0xf]
        %v876 = vsel %vm836, %v764, %v875
        %877 = vst [vmem:[%s833 + $0x50] sm:$0xf] %v876
        %878 = vst.msk [vmem:[%s833 + $0x54] sm:$0xf] %vm840, %v773
        %v879 = vld [vmem:[%s833 + $0x58] sm:$0x1]
        %v880 = vsel %vm843, %v774, %v879
        %881 = vst [vmem:[%s833 + $0x58] sm:$0x1] %v880
        %v882 = vld [vmem:[%s833 + $0x60] sm:$0xf]
        %v883 = vsel %vm836, %v781, %v882
        %884 = vst [vmem:[%s833 + $0x60] sm:$0xf] %v883
        %885 = vst.msk [vmem:[%s833 + $0x64] sm:$0xf] %vm840, %v790
        %v886 = vld [vmem:[%s833 + $0x68] sm:$0x1]
        %v887 = vsel %vm843, %v791, %v886
        %888 = vst [vmem:[%s833 + $0x68] sm:$0x1] %v887
        %v889 = vld [vmem:[%s833 + $0x70] sm:$0xf]
        %v890 = vsel %vm836, %v798, %v889
        %891 = vst [vmem:[%s833 + $0x70] sm:$0xf] %v890
        %892 = vst.msk [vmem:[%s833 + $0x74] sm:$0xf] %vm840, %v807
        %v893 = vld [vmem:[%s833 + $0x78] sm:$0x1]
        %v894 = vsel %vm843, %v808, %v893
        %895 = vst [vmem:[%s833 + $0x78] sm:$0x1] %v894
        %v896 = vld [vmem:[%s429] sm:$0xf]
        %v897 = vld [vmem:[%s429 + $0x4] sm:$0xf]
        %v900 = vunpack.c.l.b16 %v896
        %v901 = vunpack.c.l.b16 %v897
        %v902 = vpack.c.b16 %v901, %v900
        %v904 = vsel %vm564, %v902, 0
        %906 = vmatpush.bf16.msra.mxu0 0
        %907 = vmatpush.bf16.msra.mxu0 0
        %908 = vmatpush.bf16.msra.mxu0 0
        %909 = vmatpush.bf16.msra.mxu0 0
        %910 = vmatpush.bf16.msra.mxu0 0
        %911 = vmatpush.bf16.msra.mxu0 0
        %912 = vmatpush.bf16.msra.mxu0 0
        %913 = vmatpush.bf16.msra.mxu0 %v562
        %914 = vmatmul.bf16.gmra.mxu0 %v904
        %v915 = vpop.f32.mrf.mxu0
        %v916 = vadd.f32 %v516, %v915
        %v917 = vpop.f32.mrf.mxu0
        %v918 = vadd.f32 %v516, %v917
        %919 = vdwg.mxu0
        %v920 = vmax.f32 %v916, 0.0
        %v921 = vmax.f32 %v918, 0.0
        %v922 = vpack.c.bf16 %v920, %v920
        %v923 = vpack.c.bf16 %v921, %v921
        %v924 = vld [vmem:[%s439] sm:$0xf]
        %v925 = vld [vmem:[%s439 + $0x4] sm:$0xf]
        %v928 = vunpack.c.l.b16 %v924
        %v929 = vunpack.c.l.b16 %v925
        %v930 = vpack.c.b16 %v929, %v928
        %v932 = vsel %vm564, %v930, 0
        %934 = vmatpush.bf16.msra.mxu0 0
        %935 = vmatpush.bf16.msra.mxu0 0
        %936 = vmatpush.bf16.msra.mxu0 0
        %937 = vmatpush.bf16.msra.mxu0 0
        %938 = vmatpush.bf16.msra.mxu0 0
        %939 = vmatpush.bf16.msra.mxu0 0
        %940 = vmatpush.bf16.msra.mxu0 0
        %941 = vmatpush.bf16.msra.mxu0 %v562
        %942 = vmatmul.bf16.gmra.mxu0 %v932
        %v943 = vpop.f32.mrf.mxu0
        %v944 = vadd.f32 %v516, %v943
        %v945 = vpop.f32.mrf.mxu0
        %v946 = vadd.f32 %v516, %v945
        %947 = vdwg.mxu0
        %v948 = vmax.f32 %v944, 0.0
        %v949 = vmax.f32 %v946, 0.0
        %v950 = vpack.c.bf16 %v948, %v948
        %v951 = vpack.c.bf16 %v949, %v949
        %v953 = vshrl.u32 %v922, 16
        %v955 = vrot.slane %v953, 7
        %v956 = vshll.u32 %v922, 16
        %v958 = vor.u32 %v955, %v956
        %v959 = vrot.slane %v955, 4
        %v961 = vshrl.u32 %v923, 16
        %v963 = vrot.slane %v961, 7
        %v964 = vshll.u32 %v923, 16
        %v966 = vor.u32 %v963, %v964
        %v967 = vsel %vm672, %v959, %v966
        %v968 = vrot.slane %v963, 4
        %v972 = vld [vmem:[#allocation2] sm:$0xf]
        %v973 = vsel %vm836, %v958, %v972
        %974 = vst [vmem:[#allocation2] sm:$0xf] %v973
        %975 = vst.msk [vmem:[#allocation2 + $0x4] sm:$0xf] %vm840, %v967
        %v976 = vld [vmem:[#allocation2 + $0x8] sm:$0x1]
        %v977 = vsel %vm843, %v968, %v976
        %978 = vst [vmem:[#allocation2 + $0x8] sm:$0x1] %v977
        %v980 = vshrl.u32 %v950, 16
        %v982 = vrot.slane %v980, 7
        %v983 = vshll.u32 %v950, 16
        %v985 = vor.u32 %v982, %v983
        %v986 = vrot.slane %v982, 4
        %v988 = vshrl.u32 %v951, 16
        %v990 = vrot.slane %v988, 7
        %v991 = vshll.u32 %v951, 16
        %v993 = vor.u32 %v990, %v991
        %v994 = vsel %vm672, %v986, %v993
        %v995 = vrot.slane %v990, 4
        %s999 = scalar_lea.vmem [#allocation2], 144
        %v1000 = vld [vmem:[%s999] sm:$0xf]
        %v1001 = vsel %vm836, %v985, %v1000
        %1002 = vst [vmem:[%s999] sm:$0xf] %v1001
        %1003 = vst.msk [vmem:[%s999 + $0x4] sm:$0xf] %vm840, %v994
        %v1004 = vld [vmem:[%s999 + $0x8] sm:$0x1]
        %v1005 = vsel %vm843, %v995, %v1004
        %1006 = vst [vmem:[%s999 + $0x8] sm:$0x1] %v1005
        %v1007 = vld [vmem:[#allocation2] sm:$0x1]
        %v1008 = vsel %vm843, 0, %v1007
        %1009 = vst [vmem:[#allocation2] sm:$0x1] %v1008
        %v1010 = vld [vmem:[#allocation2 + $0x10] sm:$0x1]
        %v1011 = vsel %vm843, 0, %v1010
        %1012 = vst [vmem:[#allocation2 + $0x10] sm:$0x1] %v1011
        %v1013 = vld [vmem:[#allocation2 + $0x20] sm:$0x1]
        %v1014 = vsel %vm843, 0, %v1013
        %1015 = vst [vmem:[#allocation2 + $0x20] sm:$0x1] %v1014
        %v1016 = vld [vmem:[#allocation2 + $0x30] sm:$0x1]
        %v1017 = vsel %vm843, 0, %v1016
        %1018 = vst [vmem:[#allocation2 + $0x30] sm:$0x1] %v1017
        %v1019 = vld [vmem:[#allocation2 + $0x40] sm:$0x1]
        %v1020 = vsel %vm843, 0, %v1019
        %1021 = vst [vmem:[#allocation2 + $0x40] sm:$0x1] %v1020
        %v1022 = vld [vmem:[#allocation2 + $0x50] sm:$0x1]
        %v1023 = vsel %vm843, 0, %v1022
        %1024 = vst [vmem:[#allocation2 + $0x50] sm:$0x1] %v1023
        %v1025 = vld [vmem:[#allocation2 + $0x60] sm:$0x1]
        %v1026 = vsel %vm843, 0, %v1025
        %1027 = vst [vmem:[#allocation2 + $0x60] sm:$0x1] %v1026
        %v1028 = vld [vmem:[#allocation2 + $0x70] sm:$0x1]
        %v1029 = vsel %vm843, 0, %v1028
        %1030 = vst [vmem:[#allocation2 + $0x70] sm:$0x1] %v1029
        %v1031 = vld [vmem:[#allocation2 + $0x80] sm:$0x1]
        %v1032 = vsel %vm843, 0, %v1031
        %1033 = vst [vmem:[#allocation2 + $0x80] sm:$0x1] %v1032
        %v1034 = vld [vmem:[#allocation2 + $0x90] sm:$0x1]
        %v1035 = vsel %vm843, 0, %v1034
        %1036 = vst [vmem:[#allocation2 + $0x90] sm:$0x1] %v1035
        %vm1037 = vmand %vm842, %vm835
        %v1038 = vld [vmem:[#allocation2 + $0x8] sm:$0x1]
        %v1039 = vsel %vm1037, 0, %v1038
        %1040 = vst [vmem:[#allocation2 + $0x8] sm:$0x1] %v1039
        %v1041 = vld [vmem:[#allocation2 + $0x18] sm:$0x1]
        %v1042 = vsel %vm1037, 0, %v1041
        %1043 = vst [vmem:[#allocation2 + $0x18] sm:$0x1] %v1042
        %v1044 = vld [vmem:[#allocation2 + $0x28] sm:$0x1]
        %v1045 = vsel %vm1037, 0, %v1044
        %1046 = vst [vmem:[#allocation2 + $0x28] sm:$0x1] %v1045
        %v1047 = vld [vmem:[#allocation2 + $0x38] sm:$0x1]
        %v1048 = vsel %vm1037, 0, %v1047
        %1049 = vst [vmem:[#allocation2 + $0x38] sm:$0x1] %v1048
        %v1050 = vld [vmem:[#allocation2 + $0x48] sm:$0x1]
        %v1051 = vsel %vm1037, 0, %v1050
        %1052 = vst [vmem:[#allocation2 + $0x48] sm:$0x1] %v1051
        %v1053 = vld [vmem:[#allocation2 + $0x58] sm:$0x1]
        %v1054 = vsel %vm1037, 0, %v1053
        %1055 = vst [vmem:[#allocation2 + $0x58] sm:$0x1] %v1054
        %v1056 = vld [vmem:[#allocation2 + $0x68] sm:$0x1]
        %v1057 = vsel %vm1037, 0, %v1056
        %1058 = vst [vmem:[#allocation2 + $0x68] sm:$0x1] %v1057
        %v1059 = vld [vmem:[#allocation2 + $0x78] sm:$0x1]
        %v1060 = vsel %vm1037, 0, %v1059
        %1061 = vst [vmem:[#allocation2 + $0x78] sm:$0x1] %v1060
        %v1062 = vld [vmem:[#allocation2 + $0x88] sm:$0x1]
        %v1063 = vsel %vm1037, 0, %v1062
        %1064 = vst [vmem:[#allocation2 + $0x88] sm:$0x1] %v1063
        %v1065 = vld [vmem:[#allocation2 + $0x98] sm:$0x1]
        %v1066 = vsel %vm1037, 0, %v1065
        %1067 = vst [vmem:[#allocation2 + $0x98] sm:$0x1] %v1066
        %p1068 = scmp.eq.s32.totalorder %s34, 0
        // Predicated region
        $region69: #{tpu_custom_call.1} parent=55 // pred_check
          %p1069 = pneg %p1068
        $region70: #{tpu_custom_call.1} parent=55 // pred_check_branch
          %1071 = sbr.rel (%p1069) target = $region72
        $region71: #{tpu_custom_call.1} parent=55 // pred_region
          %v1072 = vld [vmem:[#allocation2] sm:$0xf]
          %v1073 = vsel %vm836, 0, %v1072
          %1074 = vst [vmem:[#allocation2] sm:$0xf] %v1073
          %1075 = vst.msk [vmem:[#allocation2 + $0x4] sm:$0xf] %vm840, 0
          %v1076 = vld [vmem:[#allocation2 + $0x8] sm:$0x1]
          %v1077 = vsel %vm843, 0, %v1076
          %1078 = vst [vmem:[#allocation2 + $0x8] sm:$0x1] %v1077
        $region72: #{tpu_custom_call.1} parent=55 // pred_fallthru
          _
        %p1079 = scmp.eq.s32.totalorder %s34, 1
        // Predicated region
        $region73: #{tpu_custom_call.1} parent=55 // pred_check
          %p1080 = pneg %p1079
        $region74: #{tpu_custom_call.1} parent=55 // pred_check_branch
          %1082 = sbr.rel (%p1080) target = $region76
        $region75: #{tpu_custom_call.1} parent=55 // pred_region
          %v1083 = vld [vmem:[%s999] sm:$0xf]
          %v1084 = vsel %vm836, 0, %v1083
          %1085 = vst [vmem:[%s999] sm:$0xf] %v1084
          %1086 = vst.msk [vmem:[%s999 + $0x4] sm:$0xf] %vm840, 0
          %v1087 = vld [vmem:[%s999 + $0x8] sm:$0x1]
          %v1088 = vsel %vm843, 0, %v1087
          %1089 = vst [vmem:[%s999 + $0x8] sm:$0x1] %v1088
        $region76: #{tpu_custom_call.1} parent=55 // pred_fallthru
          _
        %v1090 = vld [vmem:[#allocation2] sm:$0xf]
        %v1091 = vld [vmem:[#allocation2 + $0x4] sm:$0xf]
        %v1092 = vld [vmem:[#allocation2 + $0x10] sm:$0xf]
        %v1093 = vld [vmem:[#allocation2 + $0x14] sm:$0xf]
        %v1094 = vld [vmem:[#allocation2 + $0x20] sm:$0xf]
        %v1095 = vld [vmem:[#allocation2 + $0x24] sm:$0xf]
        %v1096 = vld [vmem:[#allocation2 + $0x30] sm:$0xf]
        %v1097 = vld [vmem:[#allocation2 + $0x34] sm:$0xf]
        %v1098 = vld [vmem:[#allocation2 + $0x40] sm:$0xf]
        %v1099 = vld [vmem:[#allocation2 + $0x44] sm:$0xf]
        %v1100 = vld [vmem:[#allocation2 + $0x50] sm:$0xf]
        %v1101 = vld [vmem:[#allocation2 + $0x54] sm:$0xf]
        %v1102 = vld [vmem:[#allocation2 + $0x60] sm:$0xf]
        %v1103 = vld [vmem:[#allocation2 + $0x64] sm:$0xf]
        %v1104 = vld [vmem:[#allocation2 + $0x70] sm:$0xf]
        %v1105 = vld [vmem:[#allocation2 + $0x74] sm:$0xf]
        %v1106 = vld [vmem:[%s4] sm:$0x3]
        %v1107 = vld [vmem:[#allocation2 + $0x8] sm:$0x1]
        %v1108 = vld [vmem:[#allocation2 + $0x18] sm:$0x1]
        %v1109 = vld [vmem:[#allocation2 + $0x28] sm:$0x1]
        %v1110 = vld [vmem:[#allocation2 + $0x38] sm:$0x1]
        %v1111 = vld [vmem:[#allocation2 + $0x48] sm:$0x1]
        %v1112 = vld [vmem:[#allocation2 + $0x58] sm:$0x1]
        %v1113 = vld [vmem:[#allocation2 + $0x68] sm:$0x1]
        %v1114 = vld [vmem:[#allocation2 + $0x78] sm:$0x1]
        %vm1115 = vsmask.f32 3328
        %vm1116 = vsmask.f32 7440
        %vm1117 = vmor %vm1115, %vm1116
        %v1119 = vshrl.u32 %v1090, 16
        %v1121 = vrot.slane %v1119, 4
        %v1122 = vshll.u32 %v1090, 16
        %v1124 = vrot.slane %v1122, 5
        %v1125 = vor.u32 %v1121, %v1124
        %v1126 = vrot.slane %v1125, 4
        %v1128 = vshll.u32 %v1091, 16
        %v1130 = vrot.slane %v1128, 5
        %v1131 = vsel %vm1117, %v1126, %v1130
        %v1132 = vshrl.u32 %v1091, 16
        %v1134 = vrot.slane %v1132, 4
        %v1135 = vor.u32 %v1134, %v1130
        %v1136 = vrot.slane %v1135, 4
        %v1138 = vshll.u32 %v1107, 16
        %v1140 = vrot.slane %v1138, 5
        %v1141 = vsel %vm1117, %v1136, %v1140
        %v1143 = vshrl.u32 %v1092, 16
        %v1145 = vrot.slane %v1143, 4
        %v1146 = vshll.u32 %v1092, 16
        %v1148 = vrot.slane %v1146, 5
        %v1149 = vor.u32 %v1145, %v1148
        %v1150 = vrot.slane %v1149, 4
        %v1152 = vshll.u32 %v1093, 16
        %v1154 = vrot.slane %v1152, 5
        %v1155 = vsel %vm1117, %v1150, %v1154
        %v1156 = vshrl.u32 %v1093, 16
        %v1158 = vrot.slane %v1156, 4
        %v1159 = vor.u32 %v1158, %v1154
        %v1160 = vrot.slane %v1159, 4
        %v1162 = vshll.u32 %v1108, 16
        %v1164 = vrot.slane %v1162, 5
        %v1165 = vsel %vm1117, %v1160, %v1164
        %v1167 = vshrl.u32 %v1094, 16
        %v1169 = vrot.slane %v1167, 4
        %v1170 = vshll.u32 %v1094, 16
        %v1172 = vrot.slane %v1170, 5
        %v1173 = vor.u32 %v1169, %v1172
        %v1174 = vrot.slane %v1173, 4
        %v1176 = vshll.u32 %v1095, 16
        %v1178 = vrot.slane %v1176, 5
        %v1179 = vsel %vm1117, %v1174, %v1178
        %v1180 = vshrl.u32 %v1095, 16
        %v1182 = vrot.slane %v1180, 4
        %v1183 = vor.u32 %v1182, %v1178
        %v1184 = vrot.slane %v1183, 4
        %v1186 = vshll.u32 %v1109, 16
        %v1188 = vrot.slane %v1186, 5
        %v1189 = vsel %vm1117, %v1184, %v1188
        %v1191 = vshrl.u32 %v1096, 16
        %v1193 = vrot.slane %v1191, 4
        %v1194 = vshll.u32 %v1096, 16
        %v1196 = vrot.slane %v1194, 5
        %v1197 = vor.u32 %v1193, %v1196
        %v1198 = vrot.slane %v1197, 4
        %v1200 = vshll.u32 %v1097, 16
        %v1202 = vrot.slane %v1200, 5
        %v1203 = vsel %vm1117, %v1198, %v1202
        %v1204 = vshrl.u32 %v1097, 16
        %v1206 = vrot.slane %v1204, 4
        %v1207 = vor.u32 %v1206, %v1202
        %v1208 = vrot.slane %v1207, 4
        %v1210 = vshll.u32 %v1110, 16
        %v1212 = vrot.slane %v1210, 5
        %v1213 = vsel %vm1117, %v1208, %v1212
        %v1215 = vshrl.u32 %v1098, 16
        %v1217 = vrot.slane %v1215, 4
        %v1218 = vshll.u32 %v1098, 16
        %v1220 = vrot.slane %v1218, 5
        %v1221 = vor.u32 %v1217, %v1220
        %v1222 = vrot.slane %v1221, 4
        %v1224 = vshll.u32 %v1099, 16
        %v1226 = vrot.slane %v1224, 5
        %v1227 = vsel %vm1117, %v1222, %v1226
        %v1228 = vshrl.u32 %v1099, 16
        %v1230 = vrot.slane %v1228, 4
        %v1231 = vor.u32 %v1230, %v1226
        %v1232 = vrot.slane %v1231, 4
        %v1234 = vshll.u32 %v1111, 16
        %v1236 = vrot.slane %v1234, 5
        %v1237 = vsel %vm1117, %v1232, %v1236
        %v1239 = vshrl.u32 %v1100, 16
        %v1241 = vrot.slane %v1239, 4
        %v1242 = vshll.u32 %v1100, 16
        %v1244 = vrot.slane %v1242, 5
        %v1245 = vor.u32 %v1241, %v1244
        %v1246 = vrot.slane %v1245, 4
        %v1248 = vshll.u32 %v1101, 16
        %v1250 = vrot.slane %v1248, 5
        %v1251 = vsel %vm1117, %v1246, %v1250
        %v1252 = vshrl.u32 %v1101, 16
        %v1254 = vrot.slane %v1252, 4
        %v1255 = vor.u32 %v1254, %v1250
        %v1256 = vrot.slane %v1255, 4
        %v1258 = vshll.u32 %v1112, 16
        %v1260 = vrot.slane %v1258, 5
        %v1261 = vsel %vm1117, %v1256, %v1260
        %v1263 = vshrl.u32 %v1102, 16
        %v1265 = vrot.slane %v1263, 4
        %v1266 = vshll.u32 %v1102, 16
        %v1268 = vrot.slane %v1266, 5
        %v1269 = vor.u32 %v1265, %v1268
        %v1270 = vrot.slane %v1269, 4
        %v1272 = vshll.u32 %v1103, 16
        %v1274 = vrot.slane %v1272, 5
        %v1275 = vsel %vm1117, %v1270, %v1274
        %v1276 = vshrl.u32 %v1103, 16
        %v1278 = vrot.slane %v1276, 4
        %v1279 = vor.u32 %v1278, %v1274
        %v1280 = vrot.slane %v1279, 4
        %v1282 = vshll.u32 %v1113, 16
        %v1284 = vrot.slane %v1282, 5
        %v1285 = vsel %vm1117, %v1280, %v1284
        %v1287 = vshrl.u32 %v1104, 16
        %v1289 = vrot.slane %v1287, 4
        %v1290 = vshll.u32 %v1104, 16
        %v1292 = vrot.slane %v1290, 5
        %v1293 = vor.u32 %v1289, %v1292
        %v1294 = vrot.slane %v1293, 4
        %v1296 = vshll.u32 %v1105, 16
        %v1298 = vrot.slane %v1296, 5
        %v1299 = vsel %vm1117, %v1294, %v1298
        %v1300 = vshrl.u32 %v1105, 16
        %v1302 = vrot.slane %v1300, 4
        %v1303 = vor.u32 %v1302, %v1298
        %v1304 = vrot.slane %v1303, 4
        %v1306 = vshll.u32 %v1114, 16
        %v1308 = vrot.slane %v1306, 5
        %v1309 = vsel %vm1117, %v1304, %v1308
        %s1310 = scalar_lea.vmem %s4, 2
        %v1311 = vld [vmem:[%s1310] sm:$0x3]
        %v1312 = vunpack.c.l.b16 %v1131
        %v1313 = vunpack.c.l.b16 %v1141
        %v1314 = vunpack.c.l.b16 %v1155
        %v1315 = vunpack.c.l.b16 %v1165
        %v1316 = vunpack.c.l.b16 %v1179
        %v1317 = vunpack.c.l.b16 %v1189
        %v1318 = vunpack.c.l.b16 %v1203
        %v1319 = vunpack.c.l.b16 %v1213
        %v1320 = vunpack.c.l.b16 %v1227
        %v1321 = vunpack.c.l.b16 %v1237
        %v1322 = vunpack.c.l.b16 %v1251
        %v1323 = vunpack.c.l.b16 %v1261
        %v1324 = vunpack.c.l.b16 %v1275
        %v1325 = vunpack.c.l.b16 %v1285
        %v1326 = vunpack.c.l.b16 %v1299
        %v1327 = vunpack.c.l.b16 %v1309
        %v1328 = vpack.c.b16 %v1313, %v1312
        %v1329 = vpack.c.b16 %v1315, %v1314
        %v1330 = vpack.c.b16 %v1317, %v1316
        %v1331 = vpack.c.b16 %v1319, %v1318
        %v1332 = vpack.c.b16 %v1321, %v1320
        %v1333 = vpack.c.b16 %v1323, %v1322
        %v1334 = vpack.c.b16 %v1325, %v1324
        %v1335 = vpack.c.b16 %v1327, %v1326
        %vm1336 = vcmask 31744
        %v1338 = vsel %vm1336, %v1328, 0
        %v1341 = vsel %vm1336, %v1329, 0
        %v1344 = vsel %vm1336, %v1330, 0
        %v1347 = vsel %vm1336, %v1331, 0
        %v1350 = vsel %vm1336, %v1332, 0
        %v1353 = vsel %vm1336, %v1333, 0
        %v1356 = vsel %vm1336, %v1334, 0
        %v1359 = vsel %vm1336, %v1335, 0
        %vm1361 = vcmask 1041408
        %v1363 = vsel %vm1361, %v1311, 0
        %1365 = vmatpush.bf16.msra.mxu0 0
        %1366 = vmatpush.bf16.msra.mxu0 0
        %1367 = vmatpush.bf16.msra.mxu0 0
        %1368 = vmatpush.bf16.msra.mxu0 0
        %1369 = vmatpush.bf16.msra.mxu0 0
        %1370 = vmatpush.bf16.msra.mxu0 0
        %1371 = vmatpush.bf16.msra.mxu0 0
        %1372 = vmatpush.bf16.msra.mxu0 %v1363
        %1373 = vmatmul.bf16.gmra.mxu0 %v1338
        %v1374 = vpop.f32.mrf.mxu0
        %v1375 = vadd.f32 0.0, %v1374
        %v1376 = vpop.f32.mrf.mxu0
        %v1377 = vadd.f32 0.0, %v1376
        %1378 = vmatmul.bf16.gmra.mxu0 %v1341
        %v1379 = vpop.f32.mrf.mxu0
        %v1380 = vadd.f32 0.0, %v1379
        %v1381 = vpop.f32.mrf.mxu0
        %v1382 = vadd.f32 0.0, %v1381
        %1383 = vmatmul.bf16.gmra.mxu0 %v1344
        %v1384 = vpop.f32.mrf.mxu0
        %v1385 = vadd.f32 0.0, %v1384
        %v1386 = vpop.f32.mrf.mxu0
        %v1387 = vadd.f32 0.0, %v1386
        %1388 = vmatmul.bf16.gmra.mxu0 %v1347
        %v1389 = vpop.f32.mrf.mxu0
        %v1390 = vadd.f32 0.0, %v1389
        %v1391 = vpop.f32.mrf.mxu0
        %v1392 = vadd.f32 0.0, %v1391
        %1393 = vmatmul.bf16.gmra.mxu0 %v1350
        %v1394 = vpop.f32.mrf.mxu0
        %v1395 = vadd.f32 0.0, %v1394
        %v1396 = vpop.f32.mrf.mxu0
        %v1397 = vadd.f32 0.0, %v1396
        %1398 = vmatmul.bf16.gmra.mxu0 %v1353
        %v1399 = vpop.f32.mrf.mxu0
        %v1400 = vadd.f32 0.0, %v1399
        %v1401 = vpop.f32.mrf.mxu0
        %v1402 = vadd.f32 0.0, %v1401
        %1403 = vmatmul.bf16.gmra.mxu0 %v1356
        %v1404 = vpop.f32.mrf.mxu0
        %v1405 = vadd.f32 0.0, %v1404
        %v1406 = vpop.f32.mrf.mxu0
        %v1407 = vadd.f32 0.0, %v1406
        %1408 = vmatmul.bf16.gmra.mxu0 %v1359
        %v1409 = vpop.f32.mrf.mxu0
        %v1410 = vadd.f32 0.0, %v1409
        %v1411 = vpop.f32.mrf.mxu0
        %v1412 = vadd.f32 0.0, %v1411
        %1413 = vdwg.mxu0
        %v1430 = vunpack.c.l.b16 %v1090
        %v1431 = vunpack.c.l.b16 %v1091
        %v1432 = vunpack.c.l.b16 %v1092
        %v1433 = vunpack.c.l.b16 %v1093
        %v1434 = vunpack.c.l.b16 %v1094
        %v1435 = vunpack.c.l.b16 %v1095
        %v1436 = vunpack.c.l.b16 %v1096
        %v1437 = vunpack.c.l.b16 %v1097
        %v1438 = vunpack.c.l.b16 %v1098
        %v1439 = vunpack.c.l.b16 %v1099
        %v1440 = vunpack.c.l.b16 %v1100
        %v1441 = vunpack.c.l.b16 %v1101
        %v1442 = vunpack.c.l.b16 %v1102
        %v1443 = vunpack.c.l.b16 %v1103
        %v1444 = vunpack.c.l.b16 %v1104
        %v1445 = vunpack.c.l.b16 %v1105
        %v1446 = vpack.c.b16 %v1431, %v1430
        %v1447 = vpack.c.b16 %v1433, %v1432
        %v1448 = vpack.c.b16 %v1435, %v1434
        %v1449 = vpack.c.b16 %v1437, %v1436
        %v1450 = vpack.c.b16 %v1439, %v1438
        %v1451 = vpack.c.b16 %v1441, %v1440
        %v1452 = vpack.c.b16 %v1443, %v1442
        %v1453 = vpack.c.b16 %v1445, %v1444
        %v1455 = vsel %vm1336, %v1446, 0
        %v1458 = vsel %vm1336, %v1447, 0
        %v1461 = vsel %vm1336, %v1448, 0
        %v1464 = vsel %vm1336, %v1449, 0
        %v1467 = vsel %vm1336, %v1450, 0
        %v1470 = vsel %vm1336, %v1451, 0
        %v1473 = vsel %vm1336, %v1452, 0
        %v1476 = vsel %vm1336, %v1453, 0
        %v1479 = vsel %vm1361, %v1106, 0
        %1481 = vmatpush.bf16.msra.mxu0 0
        %1482 = vmatpush.bf16.msra.mxu0 0
        %1483 = vmatpush.bf16.msra.mxu0 0
        %1484 = vmatpush.bf16.msra.mxu0 0
        %1485 = vmatpush.bf16.msra.mxu0 0
        %1486 = vmatpush.bf16.msra.mxu0 0
        %1487 = vmatpush.bf16.msra.mxu0 0
        %1488 = vmatpush.bf16.msra.mxu0 %v1479
        %1489 = vmatmul.bf16.gmra.mxu0 %v1455
        %v1490 = vpop.f32.mrf.mxu0
        %v1491 = vadd.f32 %v1375, %v1490
        %v1492 = vpop.f32.mrf.mxu0
        %v1493 = vadd.f32 %v1377, %v1492
        %1494 = vmatmul.bf16.gmra.mxu0 %v1458
        %v1495 = vpop.f32.mrf.mxu0
        %v1496 = vadd.f32 %v1380, %v1495
        %v1497 = vpop.f32.mrf.mxu0
        %v1498 = vadd.f32 %v1382, %v1497
        %1499 = vmatmul.bf16.gmra.mxu0 %v1461
        %v1500 = vpop.f32.mrf.mxu0
        %v1501 = vadd.f32 %v1385, %v1500
        %v1502 = vpop.f32.mrf.mxu0
        %v1503 = vadd.f32 %v1387, %v1502
        %1504 = vmatmul.bf16.gmra.mxu0 %v1464
        %v1505 = vpop.f32.mrf.mxu0
        %v1506 = vadd.f32 %v1390, %v1505
        %v1507 = vpop.f32.mrf.mxu0
        %v1508 = vadd.f32 %v1392, %v1507
        %1509 = vmatmul.bf16.gmra.mxu0 %v1467
        %v1510 = vpop.f32.mrf.mxu0
        %v1511 = vadd.f32 %v1395, %v1510
        %v1512 = vpop.f32.mrf.mxu0
        %v1513 = vadd.f32 %v1397, %v1512
        %1514 = vmatmul.bf16.gmra.mxu0 %v1470
        %v1515 = vpop.f32.mrf.mxu0
        %v1516 = vadd.f32 %v1400, %v1515
        %v1517 = vpop.f32.mrf.mxu0
        %v1518 = vadd.f32 %v1402, %v1517
        %1519 = vmatmul.bf16.gmra.mxu0 %v1473
        %v1520 = vpop.f32.mrf.mxu0
        %v1521 = vadd.f32 %v1405, %v1520
        %v1522 = vpop.f32.mrf.mxu0
        %v1523 = vadd.f32 %v1407, %v1522
        %1524 = vmatmul.bf16.gmra.mxu0 %v1476
        %v1525 = vpop.f32.mrf.mxu0
        %v1526 = vadd.f32 %v1410, %v1525
        %v1527 = vpop.f32.mrf.mxu0
        %v1528 = vadd.f32 %v1412, %v1527
        %1529 = vdwg.mxu0
        %v1530 = vld [vmem:[#allocation2] sm:$0xe]
        %v1531 = vld [vmem:[#allocation2 + $0x10] sm:$0xe]
        %v1532 = vld [vmem:[#allocation2 + $0x20] sm:$0xe]
        %v1533 = vld [vmem:[#allocation2 + $0x30] sm:$0xe]
        %v1534 = vld [vmem:[#allocation2 + $0x40] sm:$0xe]
        %v1535 = vld [vmem:[#allocation2 + $0x50] sm:$0xe]
        %v1536 = vld [vmem:[#allocation2 + $0x60] sm:$0xe]
        %v1537 = vld [vmem:[#allocation2 + $0x70] sm:$0xe]
        %vm1554 = vcmask 1042432
        %vm1555 = vcmask 1046532
        %vm1556 = vmor %vm1554, %vm1555
        %v1557 = vrot.slane %v1530, 5
        %v1558 = vrot.slane %v1557, 4
        %v1559 = vrot.slane %v1091, 5
        %v1560 = vsel %vm1556, %v1558, %v1559
        %v1561 = vrot.slane %v1559, 4
        %v1562 = vrot.slane %v1107, 5
        %v1563 = vsel %vm1556, %v1561, %v1562
        %v1564 = vrot.slane %v1531, 5
        %v1565 = vrot.slane %v1564, 4
        %v1566 = vrot.slane %v1093, 5
        %v1567 = vsel %vm1556, %v1565, %v1566
        %v1568 = vrot.slane %v1566, 4
        %v1569 = vrot.slane %v1108, 5
        %v1570 = vsel %vm1556, %v1568, %v1569
        %v1571 = vrot.slane %v1532, 5
        %v1572 = vrot.slane %v1571, 4
        %v1573 = vrot.slane %v1095, 5
        %v1574 = vsel %vm1556, %v1572, %v1573
        %v1575 = vrot.slane %v1573, 4
        %v1576 = vrot.slane %v1109, 5
        %v1577 = vsel %vm1556, %v1575, %v1576
        %v1578 = vrot.slane %v1533, 5
        %v1579 = vrot.slane %v1578, 4
        %v1580 = vrot.slane %v1097, 5
        %v1581 = vsel %vm1556, %v1579, %v1580
        %v1582 = vrot.slane %v1580, 4
        %v1583 = vrot.slane %v1110, 5
        %v1584 = vsel %vm1556, %v1582, %v1583
        %v1585 = vrot.slane %v1534, 5
        %v1586 = vrot.slane %v1585, 4
        %v1587 = vrot.slane %v1099, 5
        %v1588 = vsel %vm1556, %v1586, %v1587
        %v1589 = vrot.slane %v1587, 4
        %v1590 = vrot.slane %v1111, 5
        %v1591 = vsel %vm1556, %v1589, %v1590
        %v1592 = vrot.slane %v1535, 5
        %v1593 = vrot.slane %v1592, 4
        %v1594 = vrot.slane %v1101, 5
        %v1595 = vsel %vm1556, %v1593, %v1594
        %v1596 = vrot.slane %v1594, 4
        %v1597 = vrot.slane %v1112, 5
        %v1598 = vsel %vm1556, %v1596, %v1597
        %v1599 = vrot.slane %v1536, 5
        %v1600 = vrot.slane %v1599, 4
        %v1601 = vrot.slane %v1103, 5
        %v1602 = vsel %vm1556, %v1600, %v1601
        %v1603 = vrot.slane %v1601, 4
        %v1604 = vrot.slane %v1113, 5
        %v1605 = vsel %vm1556, %v1603, %v1604
        %v1606 = vrot.slane %v1537, 5
        %v1607 = vrot.slane %v1606, 4
        %v1608 = vrot.slane %v1105, 5
        %v1609 = vsel %vm1556, %v1607, %v1608
        %v1610 = vrot.slane %v1608, 4
        %v1611 = vrot.slane %v1114, 5
        %v1612 = vsel %vm1556, %v1610, %v1611
        %s1613 = scalar_lea.vmem %s4, 4
        %v1614 = vld [vmem:[%s1613] sm:$0x3]
        %v1615 = vunpack.c.l.b16 %v1560
        %v1616 = vunpack.c.l.b16 %v1563
        %v1617 = vunpack.c.l.b16 %v1567
        %v1618 = vunpack.c.l.b16 %v1570
        %v1619 = vunpack.c.l.b16 %v1574
        %v1620 = vunpack.c.l.b16 %v1577
        %v1621 = vunpack.c.l.b16 %v1581
        %v1622 = vunpack.c.l.b16 %v1584
        %v1623 = vunpack.c.l.b16 %v1588
        %v1624 = vunpack.c.l.b16 %v1591
        %v1625 = vunpack.c.l.b16 %v1595
        %v1626 = vunpack.c.l.b16 %v1598
        %v1627 = vunpack.c.l.b16 %v1602
        %v1628 = vunpack.c.l.b16 %v1605
        %v1629 = vunpack.c.l.b16 %v1609
        %v1630 = vunpack.c.l.b16 %v1612
        %v1631 = vpack.c.b16 %v1616, %v1615
        %v1632 = vpack.c.b16 %v1618, %v1617
        %v1633 = vpack.c.b16 %v1620, %v1619
        %v1634 = vpack.c.b16 %v1622, %v1621
        %v1635 = vpack.c.b16 %v1624, %v1623
        %v1636 = vpack.c.b16 %v1626, %v1625
        %v1637 = vpack.c.b16 %v1628, %v1627
        %v1638 = vpack.c.b16 %v1630, %v1629
        %v1640 = vsel %vm1336, %v1631, 0
        %v1643 = vsel %vm1336, %v1632, 0
        %v1646 = vsel %vm1336, %v1633, 0
        %v1649 = vsel %vm1336, %v1634, 0
        %v1652 = vsel %vm1336, %v1635, 0
        %v1655 = vsel %vm1336, %v1636, 0
        %v1658 = vsel %vm1336, %v1637, 0
        %v1661 = vsel %vm1336, %v1638, 0
        %v1664 = vsel %vm1361, %v1614, 0
        %1666 = vmatpush.bf16.msra.mxu0 0
        %1667 = vmatpush.bf16.msra.mxu0 0
        %1668 = vmatpush.bf16.msra.mxu0 0
        %1669 = vmatpush.bf16.msra.mxu0 0
        %1670 = vmatpush.bf16.msra.mxu0 0
        %1671 = vmatpush.bf16.msra.mxu0 0
        %1672 = vmatpush.bf16.msra.mxu0 0
        %1673 = vmatpush.bf16.msra.mxu0 %v1664
        %1674 = vmatmul.bf16.gmra.mxu0 %v1640
        %v1675 = vpop.f32.mrf.mxu0
        %v1676 = vadd.f32 0.0, %v1675
        %v1677 = vpop.f32.mrf.mxu0
        %v1678 = vadd.f32 0.0, %v1677
        %1679 = vmatmul.bf16.gmra.mxu0 %v1643
        %v1680 = vpop.f32.mrf.mxu0
        %v1681 = vadd.f32 0.0, %v1680
        %v1682 = vpop.f32.mrf.mxu0
        %v1683 = vadd.f32 0.0, %v1682
        %1684 = vmatmul.bf16.gmra.mxu0 %v1646
        %v1685 = vpop.f32.mrf.mxu0
        %v1686 = vadd.f32 0.0, %v1685
        %v1687 = vpop.f32.mrf.mxu0
        %v1688 = vadd.f32 0.0, %v1687
        %1689 = vmatmul.bf16.gmra.mxu0 %v1649
        %v1690 = vpop.f32.mrf.mxu0
        %v1691 = vadd.f32 0.0, %v1690
        %v1692 = vpop.f32.mrf.mxu0
        %v1693 = vadd.f32 0.0, %v1692
        %1694 = vmatmul.bf16.gmra.mxu0 %v1652
        %v1695 = vpop.f32.mrf.mxu0
        %v1696 = vadd.f32 0.0, %v1695
        %v1697 = vpop.f32.mrf.mxu0
        %v1698 = vadd.f32 0.0, %v1697
        %1699 = vmatmul.bf16.gmra.mxu0 %v1655
        %v1700 = vpop.f32.mrf.mxu0
        %v1701 = vadd.f32 0.0, %v1700
        %v1702 = vpop.f32.mrf.mxu0
        %v1703 = vadd.f32 0.0, %v1702
        %1704 = vmatmul.bf16.gmra.mxu0 %v1658
        %v1705 = vpop.f32.mrf.mxu0
        %v1706 = vadd.f32 0.0, %v1705
        %v1707 = vpop.f32.mrf.mxu0
        %v1708 = vadd.f32 0.0, %v1707
        %1709 = vmatmul.bf16.gmra.mxu0 %v1661
        %v1710 = vpop.f32.mrf.mxu0
        %v1711 = vadd.f32 0.0, %v1710
        %v1712 = vpop.f32.mrf.mxu0
        %v1713 = vadd.f32 0.0, %v1712
        %1714 = vdwg.mxu0
        %v1715 = vadd.f32 %v1491, %v1676
        %v1716 = vadd.f32 %v1493, %v1678
        %v1717 = vadd.f32 %v1496, %v1681
        %v1718 = vadd.f32 %v1498, %v1683
        %v1719 = vadd.f32 %v1501, %v1686
        %v1720 = vadd.f32 %v1503, %v1688
        %v1721 = vadd.f32 %v1506, %v1691
        %v1722 = vadd.f32 %v1508, %v1693
        %v1723 = vadd.f32 %v1511, %v1696
        %v1724 = vadd.f32 %v1513, %v1698
        %v1725 = vadd.f32 %v1516, %v1701
        %v1726 = vadd.f32 %v1518, %v1703
        %v1727 = vadd.f32 %v1521, %v1706
        %v1728 = vadd.f32 %v1523, %v1708
        %v1729 = vadd.f32 %v1526, %v1711
        %v1730 = vadd.f32 %v1528, %v1713
        %v1731 = vld [vmem:[%s833] sm:$0xf]
        %v1732 = vld [vmem:[%s833 + $0x4] sm:$0xf]
        %v1733 = vld [vmem:[%s833 + $0x10] sm:$0xf]
        %v1734 = vld [vmem:[%s833 + $0x14] sm:$0xf]
        %v1735 = vld [vmem:[%s833 + $0x20] sm:$0xf]
        %v1736 = vld [vmem:[%s833 + $0x24] sm:$0xf]
        %v1737 = vld [vmem:[%s833 + $0x30] sm:$0xf]
        %v1738 = vld [vmem:[%s833 + $0x34] sm:$0xf]
        %v1739 = vld [vmem:[%s833 + $0x40] sm:$0xf]
        %v1740 = vld [vmem:[%s833 + $0x44] sm:$0xf]
        %v1741 = vld [vmem:[%s833 + $0x50] sm:$0xf]
        %v1742 = vld [vmem:[%s833 + $0x54] sm:$0xf]
        %v1743 = vld [vmem:[%s833 + $0x60] sm:$0xf]
        %v1744 = vld [vmem:[%s833 + $0x64] sm:$0xf]
        %v1745 = vld [vmem:[%s833 + $0x70] sm:$0xf]
        %v1746 = vld [vmem:[%s833 + $0x74] sm:$0xf]
        %s1747 = scalar_lea.vmem %s4, 6
        %v1748 = vld [vmem:[%s1747] sm:$0x3]
        %v1765 = vunpack.c.l.b16 %v1731
        %v1766 = vunpack.c.l.b16 %v1732
        %v1767 = vunpack.c.l.b16 %v1733
        %v1768 = vunpack.c.l.b16 %v1734
        %v1769 = vunpack.c.l.b16 %v1735
        %v1770 = vunpack.c.l.b16 %v1736
        %v1771 = vunpack.c.l.b16 %v1737
        %v1772 = vunpack.c.l.b16 %v1738
        %v1773 = vunpack.c.l.b16 %v1739
        %v1774 = vunpack.c.l.b16 %v1740
        %v1775 = vunpack.c.l.b16 %v1741
        %v1776 = vunpack.c.l.b16 %v1742
        %v1777 = vunpack.c.l.b16 %v1743
        %v1778 = vunpack.c.l.b16 %v1744
        %v1779 = vunpack.c.l.b16 %v1745
        %v1780 = vunpack.c.l.b16 %v1746
        %v1781 = vpack.c.b16 %v1766, %v1765
        %v1782 = vpack.c.b16 %v1768, %v1767
        %v1783 = vpack.c.b16 %v1770, %v1769
        %v1784 = vpack.c.b16 %v1772, %v1771
        %v1785 = vpack.c.b16 %v1774, %v1773
        %v1786 = vpack.c.b16 %v1776, %v1775
        %v1787 = vpack.c.b16 %v1778, %v1777
        %v1788 = vpack.c.b16 %v1780, %v1779
        %v1790 = vsel %vm1336, %v1781, 0
        %v1793 = vsel %vm1336, %v1782, 0
        %v1796 = vsel %vm1336, %v1783, 0
        %v1799 = vsel %vm1336, %v1784, 0
        %v1802 = vsel %vm1336, %v1785, 0
        %v1805 = vsel %vm1336, %v1786, 0
        %v1808 = vsel %vm1336, %v1787, 0
        %v1811 = vsel %vm1336, %v1788, 0
        %v1814 = vsel %vm1361, %v1748, 0
        %1816 = vmatpush.bf16.msra.mxu0 0
        %1817 = vmatpush.bf16.msra.mxu0 0
        %1818 = vmatpush.bf16.msra.mxu0 0
        %1819 = vmatpush.bf16.msra.mxu0 0
        %1820 = vmatpush.bf16.msra.mxu0 0
        %1821 = vmatpush.bf16.msra.mxu0 0
        %1822 = vmatpush.bf16.msra.mxu0 0
        %1823 = vmatpush.bf16.msra.mxu0 %v1814
        %1824 = vmatmul.bf16.gmra.mxu0 %v1790
        %v1825 = vpop.f32.mrf.mxu0
        %v1826 = vadd.f32 0.0, %v1825
        %v1827 = vpop.f32.mrf.mxu0
        %v1828 = vadd.f32 0.0, %v1827
        %1829 = vmatmul.bf16.gmra.mxu0 %v1793
        %v1830 = vpop.f32.mrf.mxu0
        %v1831 = vadd.f32 0.0, %v1830
        %v1832 = vpop.f32.mrf.mxu0
        %v1833 = vadd.f32 0.0, %v1832
        %1834 = vmatmul.bf16.gmra.mxu0 %v1796
        %v1835 = vpop.f32.mrf.mxu0
        %v1836 = vadd.f32 0.0, %v1835
        %v1837 = vpop.f32.mrf.mxu0
        %v1838 = vadd.f32 0.0, %v1837
        %1839 = vmatmul.bf16.gmra.mxu0 %v1799
        %v1840 = vpop.f32.mrf.mxu0
        %v1841 = vadd.f32 0.0, %v1840
        %v1842 = vpop.f32.mrf.mxu0
        %v1843 = vadd.f32 0.0, %v1842
        %1844 = vmatmul.bf16.gmra.mxu0 %v1802
        %v1845 = vpop.f32.mrf.mxu0
        %v1846 = vadd.f32 0.0, %v1845
        %v1847 = vpop.f32.mrf.mxu0
        %v1848 = vadd.f32 0.0, %v1847
        %1849 = vmatmul.bf16.gmra.mxu0 %v1805
        %v1850 = vpop.f32.mrf.mxu0
        %v1851 = vadd.f32 0.0, %v1850
        %v1852 = vpop.f32.mrf.mxu0
        %v1853 = vadd.f32 0.0, %v1852
        %1854 = vmatmul.bf16.gmra.mxu0 %v1808
        %v1855 = vpop.f32.mrf.mxu0
        %v1856 = vadd.f32 0.0, %v1855
        %v1857 = vpop.f32.mrf.mxu0
        %v1858 = vadd.f32 0.0, %v1857
        %1859 = vmatmul.bf16.gmra.mxu0 %v1811
        %v1860 = vpop.f32.mrf.mxu0
        %v1861 = vadd.f32 0.0, %v1860
        %v1862 = vpop.f32.mrf.mxu0
        %v1863 = vadd.f32 0.0, %v1862
        %1864 = vdwg.mxu0
        %v1865 = vadd.f32 %v1715, %v1826
        %v1866 = vadd.f32 %v1716, %v1828
        %v1867 = vadd.f32 %v1717, %v1831
        %v1868 = vadd.f32 %v1718, %v1833
        %v1869 = vadd.f32 %v1719, %v1836
        %v1870 = vadd.f32 %v1720, %v1838
        %v1871 = vadd.f32 %v1721, %v1841
        %v1872 = vadd.f32 %v1722, %v1843
        %v1873 = vadd.f32 %v1723, %v1846
        %v1874 = vadd.f32 %v1724, %v1848
        %v1875 = vadd.f32 %v1725, %v1851
        %v1876 = vadd.f32 %v1726, %v1853
        %v1877 = vadd.f32 %v1727, %v1856
        %v1878 = vadd.f32 %v1728, %v1858
        %v1879 = vadd.f32 %v1729, %v1861
        %v1880 = vadd.f32 %v1730, %v1863
        %v1881 = vld [vmem:[%s833] sm:$0xf]
        %v1882 = vld [vmem:[%s833 + $0x4] sm:$0xf]
        %v1883 = vld [vmem:[%s833 + $0x8] sm:$0x1]
        %v1884 = vld [vmem:[%s833 + $0x10] sm:$0xf]
        %v1885 = vld [vmem:[%s833 + $0x14] sm:$0xf]
        %v1886 = vld [vmem:[%s833 + $0x18] sm:$0x1]
        %v1887 = vld [vmem:[%s833 + $0x20] sm:$0xf]
        %v1888 = vld [vmem:[%s833 + $0x24] sm:$0xf]
        %v1889 = vld [vmem:[%s833 + $0x28] sm:$0x1]
        %v1890 = vld [vmem:[%s833 + $0x30] sm:$0xf]
        %v1891 = vld [vmem:[%s833 + $0x34] sm:$0xf]
        %v1892 = vld [vmem:[%s833 + $0x38] sm:$0x1]
        %v1893 = vld [vmem:[%s833 + $0x40] sm:$0xf]
        %v1894 = vld [vmem:[%s833 + $0x44] sm:$0xf]
        %v1895 = vld [vmem:[%s833 + $0x48] sm:$0x1]
        %v1896 = vld [vmem:[%s833 + $0x50] sm:$0xf]
        %v1897 = vld [vmem:[%s833 + $0x54] sm:$0xf]
        %v1898 = vld [vmem:[%s833 + $0x58] sm:$0x1]
        %v1899 = vld [vmem:[%s833 + $0x60] sm:$0xf]
        %v1900 = vld [vmem:[%s833 + $0x64] sm:$0xf]
        %v1901 = vld [vmem:[%s833 + $0x68] sm:$0x1]
        %v1902 = vld [vmem:[%s833 + $0x70] sm:$0xf]
        %v1903 = vld [vmem:[%s833 + $0x74] sm:$0xf]
        %v1904 = vld [vmem:[%s833 + $0x78] sm:$0x1]
        %v1906 = vshrl.u32 %v1881, 16
        %v1908 = vrot.slane %v1906, 4
        %v1909 = vshll.u32 %v1881, 16
        %v1911 = vrot.slane %v1909, 5
        %v1912 = vor.u32 %v1908, %v1911
        %v1913 = vrot.slane %v1912, 4
        %v1915 = vshll.u32 %v1882, 16
        %v1917 = vrot.slane %v1915, 5
        %v1918 = vsel %vm1117, %v1913, %v1917
        %v1919 = vshrl.u32 %v1882, 16
        %v1921 = vrot.slane %v1919, 4
        %v1922 = vor.u32 %v1921, %v1917
        %v1923 = vrot.slane %v1922, 4
        %v1925 = vshll.u32 %v1883, 16
        %v1927 = vrot.slane %v1925, 5
        %v1928 = vsel %vm1117, %v1923, %v1927
        %v1930 = vshrl.u32 %v1884, 16
        %v1932 = vrot.slane %v1930, 4
        %v1933 = vshll.u32 %v1884, 16
        %v1935 = vrot.slane %v1933, 5
        %v1936 = vor.u32 %v1932, %v1935
        %v1937 = vrot.slane %v1936, 4
        %v1939 = vshll.u32 %v1885, 16
        %v1941 = vrot.slane %v1939, 5
        %v1942 = vsel %vm1117, %v1937, %v1941
        %v1943 = vshrl.u32 %v1885, 16
        %v1945 = vrot.slane %v1943, 4
        %v1946 = vor.u32 %v1945, %v1941
        %v1947 = vrot.slane %v1946, 4
        %v1949 = vshll.u32 %v1886, 16
        %v1951 = vrot.slane %v1949, 5
        %v1952 = vsel %vm1117, %v1947, %v1951
        %v1954 = vshrl.u32 %v1887, 16
        %v1956 = vrot.slane %v1954, 4
        %v1957 = vshll.u32 %v1887, 16
        %v1959 = vrot.slane %v1957, 5
        %v1960 = vor.u32 %v1956, %v1959
        %v1961 = vrot.slane %v1960, 4
        %v1963 = vshll.u32 %v1888, 16
        %v1965 = vrot.slane %v1963, 5
        %v1966 = vsel %vm1117, %v1961, %v1965
        %v1967 = vshrl.u32 %v1888, 16
        %v1969 = vrot.slane %v1967, 4
        %v1970 = vor.u32 %v1969, %v1965
        %v1971 = vrot.slane %v1970, 4
        %v1973 = vshll.u32 %v1889, 16
        %v1975 = vrot.slane %v1973, 5
        %v1976 = vsel %vm1117, %v1971, %v1975
        %v1978 = vshrl.u32 %v1890, 16
        %v1980 = vrot.slane %v1978, 4
        %v1981 = vshll.u32 %v1890, 16
        %v1983 = vrot.slane %v1981, 5
        %v1984 = vor.u32 %v1980, %v1983
        %v1985 = vrot.slane %v1984, 4
        %v1987 = vshll.u32 %v1891, 16
        %v1989 = vrot.slane %v1987, 5
        %v1990 = vsel %vm1117, %v1985, %v1989
        %v1991 = vshrl.u32 %v1891, 16
        %v1993 = vrot.slane %v1991, 4
        %v1994 = vor.u32 %v1993, %v1989
        %v1995 = vrot.slane %v1994, 4
        %v1997 = vshll.u32 %v1892, 16
        %v1999 = vrot.slane %v1997, 5
        %v2000 = vsel %vm1117, %v1995, %v1999
        %v2002 = vshrl.u32 %v1893, 16
        %v2004 = vrot.slane %v2002, 4
        %v2005 = vshll.u32 %v1893, 16
        %v2007 = vrot.slane %v2005, 5
        %v2008 = vor.u32 %v2004, %v2007
        %v2009 = vrot.slane %v2008, 4
        %v2011 = vshll.u32 %v1894, 16
        %v2013 = vrot.slane %v2011, 5
        %v2014 = vsel %vm1117, %v2009, %v2013
        %v2015 = vshrl.u32 %v1894, 16
        %v2017 = vrot.slane %v2015, 4
        %v2018 = vor.u32 %v2017, %v2013
        %v2019 = vrot.slane %v2018, 4
        %v2021 = vshll.u32 %v1895, 16
        %v2023 = vrot.slane %v2021, 5
        %v2024 = vsel %vm1117, %v2019, %v2023
        %v2026 = vshrl.u32 %v1896, 16
        %v2028 = vrot.slane %v2026, 4
        %v2029 = vshll.u32 %v1896, 16
        %v2031 = vrot.slane %v2029, 5
        %v2032 = vor.u32 %v2028, %v2031
        %v2033 = vrot.slane %v2032, 4
        %v2035 = vshll.u32 %v1897, 16
        %v2037 = vrot.slane %v2035, 5
        %v2038 = vsel %vm1117, %v2033, %v2037
        %v2039 = vshrl.u32 %v1897, 16
        %v2041 = vrot.slane %v2039, 4
        %v2042 = vor.u32 %v2041, %v2037
        %v2043 = vrot.slane %v2042, 4
        %v2045 = vshll.u32 %v1898, 16
        %v2047 = vrot.slane %v2045, 5
        %v2048 = vsel %vm1117, %v2043, %v2047
        %v2050 = vshrl.u32 %v1899, 16
        %v2052 = vrot.slane %v2050, 4
        %v2053 = vshll.u32 %v1899, 16
        %v2055 = vrot.slane %v2053, 5
        %v2056 = vor.u32 %v2052, %v2055
        %v2057 = vrot.slane %v2056, 4
        %v2059 = vshll.u32 %v1900, 16
        %v2061 = vrot.slane %v2059, 5
        %v2062 = vsel %vm1117, %v2057, %v2061
        %v2063 = vshrl.u32 %v1900, 16
        %v2065 = vrot.slane %v2063, 4
        %v2066 = vor.u32 %v2065, %v2061
        %v2067 = vrot.slane %v2066, 4
        %v2069 = vshll.u32 %v1901, 16
        %v2071 = vrot.slane %v2069, 5
        %v2072 = vsel %vm1117, %v2067, %v2071
        %v2074 = vshrl.u32 %v1902, 16
        %v2076 = vrot.slane %v2074, 4
        %v2077 = vshll.u32 %v1902, 16
        %v2079 = vrot.slane %v2077, 5
        %v2080 = vor.u32 %v2076, %v2079
        %v2081 = vrot.slane %v2080, 4
        %v2083 = vshll.u32 %v1903, 16
        %v2085 = vrot.slane %v2083, 5
        %v2086 = vsel %vm1117, %v2081, %v2085
        %v2087 = vshrl.u32 %v1903, 16
        %v2089 = vrot.slane %v2087, 4
        %v2090 = vor.u32 %v2089, %v2085
        %v2091 = vrot.slane %v2090, 4
        %v2093 = vshll.u32 %v1904, 16
        %v2095 = vrot.slane %v2093, 5
        %v2096 = vsel %vm1117, %v2091, %v2095
        %s2097 = scalar_lea.vmem %s4, 8
        %v2098 = vld [vmem:[%s2097] sm:$0x3]
        %v2099 = vunpack.c.l.b16 %v1918
        %v2100 = vunpack.c.l.b16 %v1928
        %v2101 = vunpack.c.l.b16 %v1942
        %v2102 = vunpack.c.l.b16 %v1952
        %v2103 = vunpack.c.l.b16 %v1966
        %v2104 = vunpack.c.l.b16 %v1976
        %v2105 = vunpack.c.l.b16 %v1990
        %v2106 = vunpack.c.l.b16 %v2000
        %v2107 = vunpack.c.l.b16 %v2014
        %v2108 = vunpack.c.l.b16 %v2024
        %v2109 = vunpack.c.l.b16 %v2038
        %v2110 = vunpack.c.l.b16 %v2048
        %v2111 = vunpack.c.l.b16 %v2062
        %v2112 = vunpack.c.l.b16 %v2072
        %v2113 = vunpack.c.l.b16 %v2086
        %v2114 = vunpack.c.l.b16 %v2096
        %v2115 = vpack.c.b16 %v2100, %v2099
        %v2116 = vpack.c.b16 %v2102, %v2101
        %v2117 = vpack.c.b16 %v2104, %v2103
        %v2118 = vpack.c.b16 %v2106, %v2105
        %v2119 = vpack.c.b16 %v2108, %v2107
        %v2120 = vpack.c.b16 %v2110, %v2109
        %v2121 = vpack.c.b16 %v2112, %v2111
        %v2122 = vpack.c.b16 %v2114, %v2113
        %v2124 = vsel %vm1336, %v2115, 0
        %v2127 = vsel %vm1336, %v2116, 0
        %v2130 = vsel %vm1336, %v2117, 0
        %v2133 = vsel %vm1336, %v2118, 0
        %v2136 = vsel %vm1336, %v2119, 0
        %v2139 = vsel %vm1336, %v2120, 0
        %v2142 = vsel %vm1336, %v2121, 0
        %v2145 = vsel %vm1336, %v2122, 0
        %v2148 = vsel %vm1361, %v2098, 0
        %2150 = vmatpush.bf16.msra.mxu0 0
        %2151 = vmatpush.bf16.msra.mxu0 0
        %2152 = vmatpush.bf16.msra.mxu0 0
        %2153 = vmatpush.bf16.msra.mxu0 0
        %2154 = vmatpush.bf16.msra.mxu0 0
        %2155 = vmatpush.bf16.msra.mxu0 0
        %2156 = vmatpush.bf16.msra.mxu0 0
        %2157 = vmatpush.bf16.msra.mxu0 %v2148
        %2158 = vmatmul.bf16.gmra.mxu0 %v2124
        %v2159 = vpop.f32.mrf.mxu0
        %v2160 = vadd.f32 0.0, %v2159
        %v2161 = vpop.f32.mrf.mxu0
        %v2162 = vadd.f32 0.0, %v2161
        %2163 = vmatmul.bf16.gmra.mxu0 %v2127
        %v2164 = vpop.f32.mrf.mxu0
        %v2165 = vadd.f32 0.0, %v2164
        %v2166 = vpop.f32.mrf.mxu0
        %v2167 = vadd.f32 0.0, %v2166
        %2168 = vmatmul.bf16.gmra.mxu0 %v2130
        %v2169 = vpop.f32.mrf.mxu0
        %v2170 = vadd.f32 0.0, %v2169
        %v2171 = vpop.f32.mrf.mxu0
        %v2172 = vadd.f32 0.0, %v2171
        %2173 = vmatmul.bf16.gmra.mxu0 %v2133
        %v2174 = vpop.f32.mrf.mxu0
        %v2175 = vadd.f32 0.0, %v2174
        %v2176 = vpop.f32.mrf.mxu0
        %v2177 = vadd.f32 0.0, %v2176
        %2178 = vmatmul.bf16.gmra.mxu0 %v2136
        %v2179 = vpop.f32.mrf.mxu0
        %v2180 = vadd.f32 0.0, %v2179
        %v2181 = vpop.f32.mrf.mxu0
        %v2182 = vadd.f32 0.0, %v2181
        %2183 = vmatmul.bf16.gmra.mxu0 %v2139
        %v2184 = vpop.f32.mrf.mxu0
        %v2185 = vadd.f32 0.0, %v2184
        %v2186 = vpop.f32.mrf.mxu0
        %v2187 = vadd.f32 0.0, %v2186
        %2188 = vmatmul.bf16.gmra.mxu0 %v2142
        %v2189 = vpop.f32.mrf.mxu0
        %v2190 = vadd.f32 0.0, %v2189
        %v2191 = vpop.f32.mrf.mxu0
        %v2192 = vadd.f32 0.0, %v2191
        %2193 = vmatmul.bf16.gmra.mxu0 %v2145
        %v2194 = vpop.f32.mrf.mxu0
        %v2195 = vadd.f32 0.0, %v2194
        %v2196 = vpop.f32.mrf.mxu0
        %v2197 = vadd.f32 0.0, %v2196
        %2198 = vdwg.mxu0
        %v2199 = vadd.f32 %v1865, %v2160
        %v2200 = vadd.f32 %v1866, %v2162
        %v2201 = vadd.f32 %v1867, %v2165
        %v2202 = vadd.f32 %v1868, %v2167
        %v2203 = vadd.f32 %v1869, %v2170
        %v2204 = vadd.f32 %v1870, %v2172
        %v2205 = vadd.f32 %v1871, %v2175
        %v2206 = vadd.f32 %v1872, %v2177
        %v2207 = vadd.f32 %v1873, %v2180
        %v2208 = vadd.f32 %v1874, %v2182
        %v2209 = vadd.f32 %v1875, %v2185
        %v2210 = vadd.f32 %v1876, %v2187
        %v2211 = vadd.f32 %v1877, %v2190
        %v2212 = vadd.f32 %v1878, %v2192
        %v2213 = vadd.f32 %v1879, %v2195
        %v2214 = vadd.f32 %v1880, %v2197
        %v2215 = vld [vmem:[%s833] sm:$0xe]
        %v2216 = vld [vmem:[%s833 + $0x10] sm:$0xe]
        %v2217 = vld [vmem:[%s833 + $0x20] sm:$0xe]
        %v2218 = vld [vmem:[%s833 + $0x30] sm:$0xe]
        %v2219 = vld [vmem:[%s833 + $0x40] sm:$0xe]
        %v2220 = vld [vmem:[%s833 + $0x50] sm:$0xe]
        %v2221 = vld [vmem:[%s833 + $0x60] sm:$0xe]
        %v2222 = vld [vmem:[%s833 + $0x70] sm:$0xe]
        %v2247 = vrot.slane %v2215, 5
        %v2248 = vrot.slane %v2247, 4
        %v2249 = vrot.slane %v1882, 5
        %v2250 = vsel %vm1556, %v2248, %v2249
        %v2251 = vrot.slane %v2249, 4
        %v2252 = vrot.slane %v1883, 5
        %v2253 = vsel %vm1556, %v2251, %v2252
        %v2254 = vrot.slane %v2216, 5
        %v2255 = vrot.slane %v2254, 4
        %v2256 = vrot.slane %v1885, 5
        %v2257 = vsel %vm1556, %v2255, %v2256
        %v2258 = vrot.slane %v2256, 4
        %v2259 = vrot.slane %v1886, 5
        %v2260 = vsel %vm1556, %v2258, %v2259
        %v2261 = vrot.slane %v2217, 5
        %v2262 = vrot.slane %v2261, 4
        %v2263 = vrot.slane %v1888, 5
        %v2264 = vsel %vm1556, %v2262, %v2263
        %v2265 = vrot.slane %v2263, 4
        %v2266 = vrot.slane %v1889, 5
        %v2267 = vsel %vm1556, %v2265, %v2266
        %v2268 = vrot.slane %v2218, 5
        %v2269 = vrot.slane %v2268, 4
        %v2270 = vrot.slane %v1891, 5
        %v2271 = vsel %vm1556, %v2269, %v2270
        %v2272 = vrot.slane %v2270, 4
        %v2273 = vrot.slane %v1892, 5
        %v2274 = vsel %vm1556, %v2272, %v2273
        %v2275 = vrot.slane %v2219, 5
        %v2276 = vrot.slane %v2275, 4
        %v2277 = vrot.slane %v1894, 5
        %v2278 = vsel %vm1556, %v2276, %v2277
        %v2279 = vrot.slane %v2277, 4
        %v2280 = vrot.slane %v1895, 5
        %v2281 = vsel %vm1556, %v2279, %v2280
        %v2282 = vrot.slane %v2220, 5
        %v2283 = vrot.slane %v2282, 4
        %v2284 = vrot.slane %v1897, 5
        %v2285 = vsel %vm1556, %v2283, %v2284
        %v2286 = vrot.slane %v2284, 4
        %v2287 = vrot.slane %v1898, 5
        %v2288 = vsel %vm1556, %v2286, %v2287
        %v2289 = vrot.slane %v2221, 5
        %v2290 = vrot.slane %v2289, 4
        %v2291 = vrot.slane %v1900, 5
        %v2292 = vsel %vm1556, %v2290, %v2291
        %v2293 = vrot.slane %v2291, 4
        %v2294 = vrot.slane %v1901, 5
        %v2295 = vsel %vm1556, %v2293, %v2294
        %v2296 = vrot.slane %v2222, 5
        %v2297 = vrot.slane %v2296, 4
        %v2298 = vrot.slane %v1903, 5
        %v2299 = vsel %vm1556, %v2297, %v2298
        %v2300 = vrot.slane %v2298, 4
        %v2301 = vrot.slane %v1904, 5
        %v2302 = vsel %vm1556, %v2300, %v2301
        %s2303 = scalar_lea.vmem %s4, 10
        %v2304 = vld [vmem:[%s2303] sm:$0x3]
        %v2305 = vunpack.c.l.b16 %v2250
        %v2306 = vunpack.c.l.b16 %v2253
        %v2307 = vunpack.c.l.b16 %v2257
        %v2308 = vunpack.c.l.b16 %v2260
        %v2309 = vunpack.c.l.b16 %v2264
        %v2310 = vunpack.c.l.b16 %v2267
        %v2311 = vunpack.c.l.b16 %v2271
        %v2312 = vunpack.c.l.b16 %v2274
        %v2313 = vunpack.c.l.b16 %v2278
        %v2314 = vunpack.c.l.b16 %v2281
        %v2315 = vunpack.c.l.b16 %v2285
        %v2316 = vunpack.c.l.b16 %v2288
        %v2317 = vunpack.c.l.b16 %v2292
        %v2318 = vunpack.c.l.b16 %v2295
        %v2319 = vunpack.c.l.b16 %v2299
        %v2320 = vunpack.c.l.b16 %v2302
        %v2321 = vpack.c.b16 %v2306, %v2305
        %v2322 = vpack.c.b16 %v2308, %v2307
        %v2323 = vpack.c.b16 %v2310, %v2309
        %v2324 = vpack.c.b16 %v2312, %v2311
        %v2325 = vpack.c.b16 %v2314, %v2313
        %v2326 = vpack.c.b16 %v2316, %v2315
        %v2327 = vpack.c.b16 %v2318, %v2317
        %v2328 = vpack.c.b16 %v2320, %v2319
        %v2330 = vsel %vm1336, %v2321, 0
        %v2333 = vsel %vm1336, %v2322, 0
        %v2336 = vsel %vm1336, %v2323, 0
        %v2339 = vsel %vm1336, %v2324, 0
        %v2342 = vsel %vm1336, %v2325, 0
        %v2345 = vsel %vm1336, %v2326, 0
        %v2348 = vsel %vm1336, %v2327, 0
        %v2351 = vsel %vm1336, %v2328, 0
        %v2354 = vsel %vm1361, %v2304, 0
        %2356 = vmatpush.bf16.msra.mxu0 0
        %2357 = vmatpush.bf16.msra.mxu0 0
        %2358 = vmatpush.bf16.msra.mxu0 0
        %2359 = vmatpush.bf16.msra.mxu0 0
        %2360 = vmatpush.bf16.msra.mxu0 0
        %2361 = vmatpush.bf16.msra.mxu0 0
        %2362 = vmatpush.bf16.msra.mxu0 0
        %2363 = vmatpush.bf16.msra.mxu0 %v2354
        %2364 = vmatmul.bf16.gmra.mxu0 %v2330
        %v2365 = vpop.f32.mrf.mxu0
        %v2366 = vadd.f32 0.0, %v2365
        %v2367 = vpop.f32.mrf.mxu0
        %v2368 = vadd.f32 0.0, %v2367
        %2369 = vmatmul.bf16.gmra.mxu0 %v2333
        %v2370 = vpop.f32.mrf.mxu0
        %v2371 = vadd.f32 0.0, %v2370
        %v2372 = vpop.f32.mrf.mxu0
        %v2373 = vadd.f32 0.0, %v2372
        %2374 = vmatmul.bf16.gmra.mxu0 %v2336
        %v2375 = vpop.f32.mrf.mxu0
        %v2376 = vadd.f32 0.0, %v2375
        %v2377 = vpop.f32.mrf.mxu0
        %v2378 = vadd.f32 0.0, %v2377
        %2379 = vmatmul.bf16.gmra.mxu0 %v2339
        %v2380 = vpop.f32.mrf.mxu0
        %v2381 = vadd.f32 0.0, %v2380
        %v2382 = vpop.f32.mrf.mxu0
        %v2383 = vadd.f32 0.0, %v2382
        %2384 = vmatmul.bf16.gmra.mxu0 %v2342
        %v2385 = vpop.f32.mrf.mxu0
        %v2386 = vadd.f32 0.0, %v2385
        %v2387 = vpop.f32.mrf.mxu0
        %v2388 = vadd.f32 0.0, %v2387
        %2389 = vmatmul.bf16.gmra.mxu0 %v2345
        %v2390 = vpop.f32.mrf.mxu0
        %v2391 = vadd.f32 0.0, %v2390
        %v2392 = vpop.f32.mrf.mxu0
        %v2393 = vadd.f32 0.0, %v2392
        %2394 = vmatmul.bf16.gmra.mxu0 %v2348
        %v2395 = vpop.f32.mrf.mxu0
        %v2396 = vadd.f32 0.0, %v2395
        %v2397 = vpop.f32.mrf.mxu0
        %v2398 = vadd.f32 0.0, %v2397
        %2399 = vmatmul.bf16.gmra.mxu0 %v2351
        %v2400 = vpop.f32.mrf.mxu0
        %v2401 = vadd.f32 0.0, %v2400
        %v2402 = vpop.f32.mrf.mxu0
        %v2403 = vadd.f32 0.0, %v2402
        %2404 = vdwg.mxu0
        %v2405 = vadd.f32 %v2199, %v2366
        %v2406 = vadd.f32 %v2200, %v2368
        %v2407 = vadd.f32 %v2201, %v2371
        %v2408 = vadd.f32 %v2202, %v2373
        %v2409 = vadd.f32 %v2203, %v2376
        %v2410 = vadd.f32 %v2204, %v2378
        %v2411 = vadd.f32 %v2205, %v2381
        %v2412 = vadd.f32 %v2206, %v2383
        %v2413 = vadd.f32 %v2207, %v2386
        %v2414 = vadd.f32 %v2208, %v2388
        %v2415 = vadd.f32 %v2209, %v2391
        %v2416 = vadd.f32 %v2210, %v2393
        %v2417 = vadd.f32 %v2211, %v2396
        %v2418 = vadd.f32 %v2212, %v2398
        %v2419 = vadd.f32 %v2213, %v2401
        %v2420 = vadd.f32 %v2214, %v2403
        %s2421 = scalar_lea.vmem [#allocation2], 32
        %v2422 = vld [vmem:[%s2421] sm:$0xf]
        %v2423 = vld [vmem:[%s2421 + $0x4] sm:$0xf]
        %v2424 = vld [vmem:[%s2421 + $0x10] sm:$0xf]
        %v2425 = vld [vmem:[%s2421 + $0x14] sm:$0xf]
        %v2426 = vld [vmem:[%s2421 + $0x20] sm:$0xf]
        %v2427 = vld [vmem:[%s2421 + $0x24] sm:$0xf]
        %v2428 = vld [vmem:[%s2421 + $0x30] sm:$0xf]
        %v2429 = vld [vmem:[%s2421 + $0x34] sm:$0xf]
        %v2430 = vld [vmem:[%s2421 + $0x40] sm:$0xf]
        %v2431 = vld [vmem:[%s2421 + $0x44] sm:$0xf]
        %v2432 = vld [vmem:[%s2421 + $0x50] sm:$0xf]
        %v2433 = vld [vmem:[%s2421 + $0x54] sm:$0xf]
        %v2434 = vld [vmem:[%s2421 + $0x60] sm:$0xf]
        %v2435 = vld [vmem:[%s2421 + $0x64] sm:$0xf]
        %v2436 = vld [vmem:[%s2421 + $0x70] sm:$0xf]
        %v2437 = vld [vmem:[%s2421 + $0x74] sm:$0xf]
        %s2438 = scalar_lea.vmem %s4, 12
        %v2439 = vld [vmem:[%s2438] sm:$0x3]
        %v2456 = vunpack.c.l.b16 %v2422
        %v2457 = vunpack.c.l.b16 %v2423
        %v2458 = vunpack.c.l.b16 %v2424
        %v2459 = vunpack.c.l.b16 %v2425
        %v2460 = vunpack.c.l.b16 %v2426
        %v2461 = vunpack.c.l.b16 %v2427
        %v2462 = vunpack.c.l.b16 %v2428
        %v2463 = vunpack.c.l.b16 %v2429
        %v2464 = vunpack.c.l.b16 %v2430
        %v2465 = vunpack.c.l.b16 %v2431
        %v2466 = vunpack.c.l.b16 %v2432
        %v2467 = vunpack.c.l.b16 %v2433
        %v2468 = vunpack.c.l.b16 %v2434
        %v2469 = vunpack.c.l.b16 %v2435
        %v2470 = vunpack.c.l.b16 %v2436
        %v2471 = vunpack.c.l.b16 %v2437
        %v2472 = vpack.c.b16 %v2457, %v2456
        %v2473 = vpack.c.b16 %v2459, %v2458
        %v2474 = vpack.c.b16 %v2461, %v2460
        %v2475 = vpack.c.b16 %v2463, %v2462
        %v2476 = vpack.c.b16 %v2465, %v2464
        %v2477 = vpack.c.b16 %v2467, %v2466
        %v2478 = vpack.c.b16 %v2469, %v2468
        %v2479 = vpack.c.b16 %v2471, %v2470
        %v2481 = vsel %vm1336, %v2472, 0
        %v2484 = vsel %vm1336, %v2473, 0
        %v2487 = vsel %vm1336, %v2474, 0
        %v2490 = vsel %vm1336, %v2475, 0
        %v2493 = vsel %vm1336, %v2476, 0
        %v2496 = vsel %vm1336, %v2477, 0
        %v2499 = vsel %vm1336, %v2478, 0
        %v2502 = vsel %vm1336, %v2479, 0
        %v2505 = vsel %vm1361, %v2439, 0
        %2507 = vmatpush.bf16.msra.mxu0 0
        %2508 = vmatpush.bf16.msra.mxu0 0
        %2509 = vmatpush.bf16.msra.mxu0 0
        %2510 = vmatpush.bf16.msra.mxu0 0
        %2511 = vmatpush.bf16.msra.mxu0 0
        %2512 = vmatpush.bf16.msra.mxu0 0
        %2513 = vmatpush.bf16.msra.mxu0 0
        %2514 = vmatpush.bf16.msra.mxu0 %v2505
        %2515 = vmatmul.bf16.gmra.mxu0 %v2481
        %v2516 = vpop.f32.mrf.mxu0
        %v2517 = vadd.f32 0.0, %v2516
        %v2518 = vpop.f32.mrf.mxu0
        %v2519 = vadd.f32 0.0, %v2518
        %2520 = vmatmul.bf16.gmra.mxu0 %v2484
        %v2521 = vpop.f32.mrf.mxu0
        %v2522 = vadd.f32 0.0, %v2521
        %v2523 = vpop.f32.mrf.mxu0
        %v2524 = vadd.f32 0.0, %v2523
        %2525 = vmatmul.bf16.gmra.mxu0 %v2487
        %v2526 = vpop.f32.mrf.mxu0
        %v2527 = vadd.f32 0.0, %v2526
        %v2528 = vpop.f32.mrf.mxu0
        %v2529 = vadd.f32 0.0, %v2528
        %2530 = vmatmul.bf16.gmra.mxu0 %v2490
        %v2531 = vpop.f32.mrf.mxu0
        %v2532 = vadd.f32 0.0, %v2531
        %v2533 = vpop.f32.mrf.mxu0
        %v2534 = vadd.f32 0.0, %v2533
        %2535 = vmatmul.bf16.gmra.mxu0 %v2493
        %v2536 = vpop.f32.mrf.mxu0
        %v2537 = vadd.f32 0.0, %v2536
        %v2538 = vpop.f32.mrf.mxu0
        %v2539 = vadd.f32 0.0, %v2538
        %2540 = vmatmul.bf16.gmra.mxu0 %v2496
        %v2541 = vpop.f32.mrf.mxu0
        %v2542 = vadd.f32 0.0, %v2541
        %v2543 = vpop.f32.mrf.mxu0
        %v2544 = vadd.f32 0.0, %v2543
        %2545 = vmatmul.bf16.gmra.mxu0 %v2499
        %v2546 = vpop.f32.mrf.mxu0
        %v2547 = vadd.f32 0.0, %v2546
        %v2548 = vpop.f32.mrf.mxu0
        %v2549 = vadd.f32 0.0, %v2548
        %2550 = vmatmul.bf16.gmra.mxu0 %v2502
        %v2551 = vpop.f32.mrf.mxu0
        %v2552 = vadd.f32 0.0, %v2551
        %v2553 = vpop.f32.mrf.mxu0
        %v2554 = vadd.f32 0.0, %v2553
        %2555 = vdwg.mxu0
        %v2556 = vadd.f32 %v2405, %v2517
        %v2557 = vadd.f32 %v2406, %v2519
        %v2558 = vadd.f32 %v2407, %v2522
        %v2559 = vadd.f32 %v2408, %v2524
        %v2560 = vadd.f32 %v2409, %v2527
        %v2561 = vadd.f32 %v2410, %v2529
        %v2562 = vadd.f32 %v2411, %v2532
        %v2563 = vadd.f32 %v2412, %v2534
        %v2564 = vadd.f32 %v2413, %v2537
        %v2565 = vadd.f32 %v2414, %v2539
        %v2566 = vadd.f32 %v2415, %v2542
        %v2567 = vadd.f32 %v2416, %v2544
        %v2568 = vadd.f32 %v2417, %v2547
        %v2569 = vadd.f32 %v2418, %v2549
        %v2570 = vadd.f32 %v2419, %v2552
        %v2571 = vadd.f32 %v2420, %v2554
        %v2572 = vld [vmem:[%s2421] sm:$0xf]
        %v2573 = vld [vmem:[%s2421 + $0x4] sm:$0xf]
        %v2574 = vld [vmem:[%s2421 + $0x8] sm:$0x1]
        %v2575 = vld [vmem:[%s2421 + $0x10] sm:$0xf]
        %v2576 = vld [vmem:[%s2421 + $0x14] sm:$0xf]
        %v2577 = vld [vmem:[%s2421 + $0x18] sm:$0x1]
        %v2578 = vld [vmem:[%s2421 + $0x20] sm:$0xf]
        %v2579 = vld [vmem:[%s2421 + $0x24] sm:$0xf]
        %v2580 = vld [vmem:[%s2421 + $0x28] sm:$0x1]
        %v2581 = vld [vmem:[%s2421 + $0x30] sm:$0xf]
        %v2582 = vld [vmem:[%s2421 + $0x34] sm:$0xf]
        %v2583 = vld [vmem:[%s2421 + $0x38] sm:$0x1]
        %v2584 = vld [vmem:[%s2421 + $0x40] sm:$0xf]
        %v2585 = vld [vmem:[%s2421 + $0x44] sm:$0xf]
        %v2586 = vld [vmem:[%s2421 + $0x48] sm:$0x1]
        %v2587 = vld [vmem:[%s2421 + $0x50] sm:$0xf]
        %v2588 = vld [vmem:[%s2421 + $0x54] sm:$0xf]
        %v2589 = vld [vmem:[%s2421 + $0x58] sm:$0x1]
        %v2590 = vld [vmem:[%s2421 + $0x60] sm:$0xf]
        %v2591 = vld [vmem:[%s2421 + $0x64] sm:$0xf]
        %v2592 = vld [vmem:[%s2421 + $0x68] sm:$0x1]
        %v2593 = vld [vmem:[%s2421 + $0x70] sm:$0xf]
        %v2594 = vld [vmem:[%s2421 + $0x74] sm:$0xf]
        %v2595 = vld [vmem:[%s2421 + $0x78] sm:$0x1]
        %v2597 = vshrl.u32 %v2572, 16
        %v2599 = vrot.slane %v2597, 4
        %v2600 = vshll.u32 %v2572, 16
        %v2602 = vrot.slane %v2600, 5
        %v2603 = vor.u32 %v2599, %v2602
        %v2604 = vrot.slane %v2603, 4
        %v2606 = vshll.u32 %v2573, 16
        %v2608 = vrot.slane %v2606, 5
        %v2609 = vsel %vm1117, %v2604, %v2608
        %v2610 = vshrl.u32 %v2573, 16
        %v2612 = vrot.slane %v2610, 4
        %v2613 = vor.u32 %v2612, %v2608
        %v2614 = vrot.slane %v2613, 4
        %v2616 = vshll.u32 %v2574, 16
        %v2618 = vrot.slane %v2616, 5
        %v2619 = vsel %vm1117, %v2614, %v2618
        %v2621 = vshrl.u32 %v2575, 16
        %v2623 = vrot.slane %v2621, 4
        %v2624 = vshll.u32 %v2575, 16
        %v2626 = vrot.slane %v2624, 5
        %v2627 = vor.u32 %v2623, %v2626
        %v2628 = vrot.slane %v2627, 4
        %v2630 = vshll.u32 %v2576, 16
        %v2632 = vrot.slane %v2630, 5
        %v2633 = vsel %vm1117, %v2628, %v2632
        %v2634 = vshrl.u32 %v2576, 16
        %v2636 = vrot.slane %v2634, 4
        %v2637 = vor.u32 %v2636, %v2632
        %v2638 = vrot.slane %v2637, 4
        %v2640 = vshll.u32 %v2577, 16
        %v2642 = vrot.slane %v2640, 5
        %v2643 = vsel %vm1117, %v2638, %v2642
        %v2645 = vshrl.u32 %v2578, 16
        %v2647 = vrot.slane %v2645, 4
        %v2648 = vshll.u32 %v2578, 16
        %v2650 = vrot.slane %v2648, 5
        %v2651 = vor.u32 %v2647, %v2650
        %v2652 = vrot.slane %v2651, 4
        %v2654 = vshll.u32 %v2579, 16
        %v2656 = vrot.slane %v2654, 5
        %v2657 = vsel %vm1117, %v2652, %v2656
        %v2658 = vshrl.u32 %v2579, 16
        %v2660 = vrot.slane %v2658, 4
        %v2661 = vor.u32 %v2660, %v2656
        %v2662 = vrot.slane %v2661, 4
        %v2664 = vshll.u32 %v2580, 16
        %v2666 = vrot.slane %v2664, 5
        %v2667 = vsel %vm1117, %v2662, %v2666
        %v2669 = vshrl.u32 %v2581, 16
        %v2671 = vrot.slane %v2669, 4
        %v2672 = vshll.u32 %v2581, 16
        %v2674 = vrot.slane %v2672, 5
        %v2675 = vor.u32 %v2671, %v2674
        %v2676 = vrot.slane %v2675, 4
        %v2678 = vshll.u32 %v2582, 16
        %v2680 = vrot.slane %v2678, 5
        %v2681 = vsel %vm1117, %v2676, %v2680
        %v2682 = vshrl.u32 %v2582, 16
        %v2684 = vrot.slane %v2682, 4
        %v2685 = vor.u32 %v2684, %v2680
        %v2686 = vrot.slane %v2685, 4
        %v2688 = vshll.u32 %v2583, 16
        %v2690 = vrot.slane %v2688, 5
        %v2691 = vsel %vm1117, %v2686, %v2690
        %v2693 = vshrl.u32 %v2584, 16
        %v2695 = vrot.slane %v2693, 4
        %v2696 = vshll.u32 %v2584, 16
        %v2698 = vrot.slane %v2696, 5
        %v2699 = vor.u32 %v2695, %v2698
        %v2700 = vrot.slane %v2699, 4
        %v2702 = vshll.u32 %v2585, 16
        %v2704 = vrot.slane %v2702, 5
        %v2705 = vsel %vm1117, %v2700, %v2704
        %v2706 = vshrl.u32 %v2585, 16
        %v2708 = vrot.slane %v2706, 4
        %v2709 = vor.u32 %v2708, %v2704
        %v2710 = vrot.slane %v2709, 4
        %v2712 = vshll.u32 %v2586, 16
        %v2714 = vrot.slane %v2712, 5
        %v2715 = vsel %vm1117, %v2710, %v2714
        %v2717 = vshrl.u32 %v2587, 16
        %v2719 = vrot.slane %v2717, 4
        %v2720 = vshll.u32 %v2587, 16
        %v2722 = vrot.slane %v2720, 5
        %v2723 = vor.u32 %v2719, %v2722
        %v2724 = vrot.slane %v2723, 4
        %v2726 = vshll.u32 %v2588, 16
        %v2728 = vrot.slane %v2726, 5
        %v2729 = vsel %vm1117, %v2724, %v2728
        %v2730 = vshrl.u32 %v2588, 16
        %v2732 = vrot.slane %v2730, 4
        %v2733 = vor.u32 %v2732, %v2728
        %v2734 = vrot.slane %v2733, 4
        %v2736 = vshll.u32 %v2589, 16
        %v2738 = vrot.slane %v2736, 5
        %v2739 = vsel %vm1117, %v2734, %v2738
        %v2741 = vshrl.u32 %v2590, 16
        %v2743 = vrot.slane %v2741, 4
        %v2744 = vshll.u32 %v2590, 16
        %v2746 = vrot.slane %v2744, 5
        %v2747 = vor.u32 %v2743, %v2746
        %v2748 = vrot.slane %v2747, 4
        %v2750 = vshll.u32 %v2591, 16
        %v2752 = vrot.slane %v2750, 5
        %v2753 = vsel %vm1117, %v2748, %v2752
        %v2754 = vshrl.u32 %v2591, 16
        %v2756 = vrot.slane %v2754, 4
        %v2757 = vor.u32 %v2756, %v2752
        %v2758 = vrot.slane %v2757, 4
        %v2760 = vshll.u32 %v2592, 16
        %v2762 = vrot.slane %v2760, 5
        %v2763 = vsel %vm1117, %v2758, %v2762
        %v2765 = vshrl.u32 %v2593, 16
        %v2767 = vrot.slane %v2765, 4
        %v2768 = vshll.u32 %v2593, 16
        %v2770 = vrot.slane %v2768, 5
        %v2771 = vor.u32 %v2767, %v2770
        %v2772 = vrot.slane %v2771, 4
        %v2774 = vshll.u32 %v2594, 16
        %v2776 = vrot.slane %v2774, 5
        %v2777 = vsel %vm1117, %v2772, %v2776
        %v2778 = vshrl.u32 %v2594, 16
        %v2780 = vrot.slane %v2778, 4
        %v2781 = vor.u32 %v2780, %v2776
        %v2782 = vrot.slane %v2781, 4
        %v2784 = vshll.u32 %v2595, 16
        %v2786 = vrot.slane %v2784, 5
        %v2787 = vsel %vm1117, %v2782, %v2786
        %s2788 = scalar_lea.vmem %s4, 14
        %v2789 = vld [vmem:[%s2788] sm:$0x3]
        %v2790 = vunpack.c.l.b16 %v2609
        %v2791 = vunpack.c.l.b16 %v2619
        %v2792 = vunpack.c.l.b16 %v2633
        %v2793 = vunpack.c.l.b16 %v2643
        %v2794 = vunpack.c.l.b16 %v2657
        %v2795 = vunpack.c.l.b16 %v2667
        %v2796 = vunpack.c.l.b16 %v2681
        %v2797 = vunpack.c.l.b16 %v2691
        %v2798 = vunpack.c.l.b16 %v2705
        %v2799 = vunpack.c.l.b16 %v2715
        %v2800 = vunpack.c.l.b16 %v2729
        %v2801 = vunpack.c.l.b16 %v2739
        %v2802 = vunpack.c.l.b16 %v2753
        %v2803 = vunpack.c.l.b16 %v2763
        %v2804 = vunpack.c.l.b16 %v2777
        %v2805 = vunpack.c.l.b16 %v2787
        %v2806 = vpack.c.b16 %v2791, %v2790
        %v2807 = vpack.c.b16 %v2793, %v2792
        %v2808 = vpack.c.b16 %v2795, %v2794
        %v2809 = vpack.c.b16 %v2797, %v2796
        %v2810 = vpack.c.b16 %v2799, %v2798
        %v2811 = vpack.c.b16 %v2801, %v2800
        %v2812 = vpack.c.b16 %v2803, %v2802
        %v2813 = vpack.c.b16 %v2805, %v2804
        %v2815 = vsel %vm1336, %v2806, 0
        %v2818 = vsel %vm1336, %v2807, 0
        %v2821 = vsel %vm1336, %v2808, 0
        %v2824 = vsel %vm1336, %v2809, 0
        %v2827 = vsel %vm1336, %v2810, 0
        %v2830 = vsel %vm1336, %v2811, 0
        %v2833 = vsel %vm1336, %v2812, 0
        %v2836 = vsel %vm1336, %v2813, 0
        %v2839 = vsel %vm1361, %v2789, 0
        %2841 = vmatpush.bf16.msra.mxu0 0
        %2842 = vmatpush.bf16.msra.mxu0 0
        %2843 = vmatpush.bf16.msra.mxu0 0
        %2844 = vmatpush.bf16.msra.mxu0 0
        %2845 = vmatpush.bf16.msra.mxu0 0
        %2846 = vmatpush.bf16.msra.mxu0 0
        %2847 = vmatpush.bf16.msra.mxu0 0
        %2848 = vmatpush.bf16.msra.mxu0 %v2839
        %2849 = vmatmul.bf16.gmra.mxu0 %v2815
        %v2850 = vpop.f32.mrf.mxu0
        %v2851 = vadd.f32 0.0, %v2850
        %v2852 = vpop.f32.mrf.mxu0
        %v2853 = vadd.f32 0.0, %v2852
        %2854 = vmatmul.bf16.gmra.mxu0 %v2818
        %v2855 = vpop.f32.mrf.mxu0
        %v2856 = vadd.f32 0.0, %v2855
        %v2857 = vpop.f32.mrf.mxu0
        %v2858 = vadd.f32 0.0, %v2857
        %2859 = vmatmul.bf16.gmra.mxu0 %v2821
        %v2860 = vpop.f32.mrf.mxu0
        %v2861 = vadd.f32 0.0, %v2860
        %v2862 = vpop.f32.mrf.mxu0
        %v2863 = vadd.f32 0.0, %v2862
        %2864 = vmatmul.bf16.gmra.mxu0 %v2824
        %v2865 = vpop.f32.mrf.mxu0
        %v2866 = vadd.f32 0.0, %v2865
        %v2867 = vpop.f32.mrf.mxu0
        %v2868 = vadd.f32 0.0, %v2867
        %2869 = vmatmul.bf16.gmra.mxu0 %v2827
        %v2870 = vpop.f32.mrf.mxu0
        %v2871 = vadd.f32 0.0, %v2870
        %v2872 = vpop.f32.mrf.mxu0
        %v2873 = vadd.f32 0.0, %v2872
        %2874 = vmatmul.bf16.gmra.mxu0 %v2830
        %v2875 = vpop.f32.mrf.mxu0
        %v2876 = vadd.f32 0.0, %v2875
        %v2877 = vpop.f32.mrf.mxu0
        %v2878 = vadd.f32 0.0, %v2877
        %2879 = vmatmul.bf16.gmra.mxu0 %v2833
        %v2880 = vpop.f32.mrf.mxu0
        %v2881 = vadd.f32 0.0, %v2880
        %v2882 = vpop.f32.mrf.mxu0
        %v2883 = vadd.f32 0.0, %v2882
        %2884 = vmatmul.bf16.gmra.mxu0 %v2836
        %v2885 = vpop.f32.mrf.mxu0
        %v2886 = vadd.f32 0.0, %v2885
        %v2887 = vpop.f32.mrf.mxu0
        %v2888 = vadd.f32 0.0, %v2887
        %2889 = vdwg.mxu0
        %v2890 = vadd.f32 %v2556, %v2851
        %v2891 = vadd.f32 %v2557, %v2853
        %v2892 = vadd.f32 %v2558, %v2856
        %v2893 = vadd.f32 %v2559, %v2858
        %v2894 = vadd.f32 %v2560, %v2861
        %v2895 = vadd.f32 %v2561, %v2863
        %v2896 = vadd.f32 %v2562, %v2866
        %v2897 = vadd.f32 %v2563, %v2868
        %v2898 = vadd.f32 %v2564, %v2871
        %v2899 = vadd.f32 %v2565, %v2873
        %v2900 = vadd.f32 %v2566, %v2876
        %v2901 = vadd.f32 %v2567, %v2878
        %v2902 = vadd.f32 %v2568, %v2881
        %v2903 = vadd.f32 %v2569, %v2883
        %v2904 = vadd.f32 %v2570, %v2886
        %v2905 = vadd.f32 %v2571, %v2888
        %v2906 = vld [vmem:[%s2421] sm:$0xe]
        %v2907 = vld [vmem:[%s2421 + $0x10] sm:$0xe]
        %v2908 = vld [vmem:[%s2421 + $0x20] sm:$0xe]
        %v2909 = vld [vmem:[%s2421 + $0x30] sm:$0xe]
        %v2910 = vld [vmem:[%s2421 + $0x40] sm:$0xe]
        %v2911 = vld [vmem:[%s2421 + $0x50] sm:$0xe]
        %v2912 = vld [vmem:[%s2421 + $0x60] sm:$0xe]
        %v2913 = vld [vmem:[%s2421 + $0x70] sm:$0xe]
        %v2938 = vrot.slane %v2906, 5
        %v2939 = vrot.slane %v2938, 4
        %v2940 = vrot.slane %v2573, 5
        %v2941 = vsel %vm1556, %v2939, %v2940
        %v2942 = vrot.slane %v2940, 4
        %v2943 = vrot.slane %v2574, 5
        %v2944 = vsel %vm1556, %v2942, %v2943
        %v2945 = vrot.slane %v2907, 5
        %v2946 = vrot.slane %v2945, 4
        %v2947 = vrot.slane %v2576, 5
        %v2948 = vsel %vm1556, %v2946, %v2947
        %v2949 = vrot.slane %v2947, 4
        %v2950 = vrot.slane %v2577, 5
        %v2951 = vsel %vm1556, %v2949, %v2950
        %v2952 = vrot.slane %v2908, 5
        %v2953 = vrot.slane %v2952, 4
        %v2954 = vrot.slane %v2579, 5
        %v2955 = vsel %vm1556, %v2953, %v2954
        %v2956 = vrot.slane %v2954, 4
        %v2957 = vrot.slane %v2580, 5
        %v2958 = vsel %vm1556, %v2956, %v2957
        %v2959 = vrot.slane %v2909, 5
        %v2960 = vrot.slane %v2959, 4
        %v2961 = vrot.slane %v2582, 5
        %v2962 = vsel %vm1556, %v2960, %v2961
        %v2963 = vrot.slane %v2961, 4
        %v2964 = vrot.slane %v2583, 5
        %v2965 = vsel %vm1556, %v2963, %v2964
        %v2966 = vrot.slane %v2910, 5
        %v2967 = vrot.slane %v2966, 4
        %v2968 = vrot.slane %v2585, 5
        %v2969 = vsel %vm1556, %v2967, %v2968
        %v2970 = vrot.slane %v2968, 4
        %v2971 = vrot.slane %v2586, 5
        %v2972 = vsel %vm1556, %v2970, %v2971
        %v2973 = vrot.slane %v2911, 5
        %v2974 = vrot.slane %v2973, 4
        %v2975 = vrot.slane %v2588, 5
        %v2976 = vsel %vm1556, %v2974, %v2975
        %v2977 = vrot.slane %v2975, 4
        %v2978 = vrot.slane %v2589, 5
        %v2979 = vsel %vm1556, %v2977, %v2978
        %v2980 = vrot.slane %v2912, 5
        %v2981 = vrot.slane %v2980, 4
        %v2982 = vrot.slane %v2591, 5
        %v2983 = vsel %vm1556, %v2981, %v2982
        %v2984 = vrot.slane %v2982, 4
        %v2985 = vrot.slane %v2592, 5
        %v2986 = vsel %vm1556, %v2984, %v2985
        %v2987 = vrot.slane %v2913, 5
        %v2988 = vrot.slane %v2987, 4
        %v2989 = vrot.slane %v2594, 5
        %v2990 = vsel %vm1556, %v2988, %v2989
        %v2991 = vrot.slane %v2989, 4
        %v2992 = vrot.slane %v2595, 5
        %v2993 = vsel %vm1556, %v2991, %v2992
        %s2994 = scalar_lea.vmem %s4, 16
        %v2995 = vld [vmem:[%s2994] sm:$0x3]
        %v2996 = vunpack.c.l.b16 %v2941
        %v2997 = vunpack.c.l.b16 %v2944
        %v2998 = vunpack.c.l.b16 %v2948
        %v2999 = vunpack.c.l.b16 %v2951
        %v3000 = vunpack.c.l.b16 %v2955
        %v3001 = vunpack.c.l.b16 %v2958
        %v3002 = vunpack.c.l.b16 %v2962
        %v3003 = vunpack.c.l.b16 %v2965
        %v3004 = vunpack.c.l.b16 %v2969
        %v3005 = vunpack.c.l.b16 %v2972
        %v3006 = vunpack.c.l.b16 %v2976
        %v3007 = vunpack.c.l.b16 %v2979
        %v3008 = vunpack.c.l.b16 %v2983
        %v3009 = vunpack.c.l.b16 %v2986
        %v3010 = vunpack.c.l.b16 %v2990
        %v3011 = vunpack.c.l.b16 %v2993
        %v3012 = vpack.c.b16 %v2997, %v2996
        %v3013 = vpack.c.b16 %v2999, %v2998
        %v3014 = vpack.c.b16 %v3001, %v3000
        %v3015 = vpack.c.b16 %v3003, %v3002
        %v3016 = vpack.c.b16 %v3005, %v3004
        %v3017 = vpack.c.b16 %v3007, %v3006
        %v3018 = vpack.c.b16 %v3009, %v3008
        %v3019 = vpack.c.b16 %v3011, %v3010
        %v3021 = vsel %vm1336, %v3012, 0
        %v3024 = vsel %vm1336, %v3013, 0
        %v3027 = vsel %vm1336, %v3014, 0
        %v3030 = vsel %vm1336, %v3015, 0
        %v3033 = vsel %vm1336, %v3016, 0
        %v3036 = vsel %vm1336, %v3017, 0
        %v3039 = vsel %vm1336, %v3018, 0
        %v3042 = vsel %vm1336, %v3019, 0
        %v3045 = vsel %vm1361, %v2995, 0
        %3047 = vmatpush.bf16.msra.mxu0 0
        %3048 = vmatpush.bf16.msra.mxu0 0
        %3049 = vmatpush.bf16.msra.mxu0 0
        %3050 = vmatpush.bf16.msra.mxu0 0
        %3051 = vmatpush.bf16.msra.mxu0 0
        %3052 = vmatpush.bf16.msra.mxu0 0
        %3053 = vmatpush.bf16.msra.mxu0 0
        %3054 = vmatpush.bf16.msra.mxu0 %v3045
        %3055 = vmatmul.bf16.gmra.mxu0 %v3021
        %v3056 = vpop.f32.mrf.mxu0
        %v3057 = vadd.f32 0.0, %v3056
        %v3058 = vpop.f32.mrf.mxu0
        %v3059 = vadd.f32 0.0, %v3058
        %3060 = vmatmul.bf16.gmra.mxu0 %v3024
        %v3061 = vpop.f32.mrf.mxu0
        %v3062 = vadd.f32 0.0, %v3061
        %v3063 = vpop.f32.mrf.mxu0
        %v3064 = vadd.f32 0.0, %v3063
        %3065 = vmatmul.bf16.gmra.mxu0 %v3027
        %v3066 = vpop.f32.mrf.mxu0
        %v3067 = vadd.f32 0.0, %v3066
        %v3068 = vpop.f32.mrf.mxu0
        %v3069 = vadd.f32 0.0, %v3068
        %3070 = vmatmul.bf16.gmra.mxu0 %v3030
        %v3071 = vpop.f32.mrf.mxu0
        %v3072 = vadd.f32 0.0, %v3071
        %v3073 = vpop.f32.mrf.mxu0
        %v3074 = vadd.f32 0.0, %v3073
        %3075 = vmatmul.bf16.gmra.mxu0 %v3033
        %v3076 = vpop.f32.mrf.mxu0
        %v3077 = vadd.f32 0.0, %v3076
        %v3078 = vpop.f32.mrf.mxu0
        %v3079 = vadd.f32 0.0, %v3078
        %3080 = vmatmul.bf16.gmra.mxu0 %v3036
        %v3081 = vpop.f32.mrf.mxu0
        %v3082 = vadd.f32 0.0, %v3081
        %v3083 = vpop.f32.mrf.mxu0
        %v3084 = vadd.f32 0.0, %v3083
        %3085 = vmatmul.bf16.gmra.mxu0 %v3039
        %v3086 = vpop.f32.mrf.mxu0
        %v3087 = vadd.f32 0.0, %v3086
        %v3088 = vpop.f32.mrf.mxu0
        %v3089 = vadd.f32 0.0, %v3088
        %3090 = vmatmul.bf16.gmra.mxu0 %v3042
        %v3091 = vpop.f32.mrf.mxu0
        %v3092 = vadd.f32 0.0, %v3091
        %v3093 = vpop.f32.mrf.mxu0
        %v3094 = vadd.f32 0.0, %v3093
        %3095 = vdwg.mxu0
        %v3096 = vadd.f32 %v2890, %v3057
        %v3097 = vadd.f32 %v2891, %v3059
        %v3098 = vadd.f32 %v2892, %v3062
        %v3099 = vadd.f32 %v2893, %v3064
        %v3100 = vadd.f32 %v2894, %v3067
        %v3101 = vadd.f32 %v2895, %v3069
        %v3102 = vadd.f32 %v2896, %v3072
        %v3103 = vadd.f32 %v2897, %v3074
        %v3104 = vadd.f32 %v2898, %v3077
        %v3105 = vadd.f32 %v2899, %v3079
        %v3106 = vadd.f32 %v2900, %v3082
        %v3107 = vadd.f32 %v2901, %v3084
        %v3108 = vadd.f32 %v2902, %v3087
        %v3109 = vadd.f32 %v2903, %v3089
        %v3110 = vadd.f32 %v2904, %v3092
        %v3111 = vadd.f32 %v2905, %v3094
        %v3112 = vld [vmem:[%s7] sm:$0x1]
        %v3114 = vperm.slane %v3112, 0
        %v3116 = vadd.f32 %v3096, %v3114
        %v3117 = vadd.f32 %v3097, %v3114
        %v3118 = vadd.f32 %v3098, %v3114
        %v3119 = vadd.f32 %v3099, %v3114
        %v3120 = vadd.f32 %v3100, %v3114
        %v3121 = vadd.f32 %v3101, %v3114
        %v3122 = vadd.f32 %v3102, %v3114
        %v3123 = vadd.f32 %v3103, %v3114
        %v3124 = vadd.f32 %v3104, %v3114
        %v3125 = vadd.f32 %v3105, %v3114
        %v3126 = vadd.f32 %v3106, %v3114
        %v3127 = vadd.f32 %v3107, %v3114
        %v3128 = vadd.f32 %v3108, %v3114
        %v3129 = vadd.f32 %v3109, %v3114
        %v3130 = vadd.f32 %v3110, %v3114
        %v3131 = vadd.f32 %v3111, %v3114
        %v3132 = vmax.f32 %v3116, 0.0
        %v3133 = vmax.f32 %v3117, 0.0
        %v3134 = vmax.f32 %v3118, 0.0
        %v3135 = vmax.f32 %v3119, 0.0
        %v3136 = vmax.f32 %v3120, 0.0
        %v3137 = vmax.f32 %v3121, 0.0
        %v3138 = vmax.f32 %v3122, 0.0
        %v3139 = vmax.f32 %v3123, 0.0
        %v3140 = vmax.f32 %v3124, 0.0
        %v3141 = vmax.f32 %v3125, 0.0
        %v3142 = vmax.f32 %v3126, 0.0
        %v3143 = vmax.f32 %v3127, 0.0
        %v3144 = vmax.f32 %v3128, 0.0
        %v3145 = vmax.f32 %v3129, 0.0
        %v3146 = vmax.f32 %v3130, 0.0
        %v3147 = vmax.f32 %v3131, 0.0
        %v3148 = vpack.c.bf16 %v3133, %v3132
        %v3149 = vpack.c.bf16 %v3135, %v3134
        %v3150 = vpack.c.bf16 %v3137, %v3136
        %v3151 = vpack.c.bf16 %v3139, %v3138
        %v3152 = vpack.c.bf16 %v3141, %v3140
        %v3153 = vpack.c.bf16 %v3143, %v3142
        %v3154 = vpack.c.bf16 %v3145, %v3144
        %v3155 = vpack.c.bf16 %v3147, %v3146
        %v3156 = vld [vmem:[%s5] sm:$0x3]
        %v3157 = vld [vmem:[%s8] sm:$0x1]
        %v3159 = vperm.slane %v3157, 0
        %v3162 = vsel %vm1336, %v3148, 0
        %v3165 = vsel %vm1336, %v3149, 0
        %v3168 = vsel %vm1336, %v3150, 0
        %v3171 = vsel %vm1336, %v3151, 0
        %v3174 = vsel %vm1336, %v3152, 0
        %v3177 = vsel %vm1336, %v3153, 0
        %v3180 = vsel %vm1336, %v3154, 0
        %v3183 = vsel %vm1336, %v3155, 0
        %v3186 = vsel %vm1361, %v3156, 0
        %3188 = vmatpush.bf16.msra.mxu0 0
        %3189 = vmatpush.bf16.msra.mxu0 0
        %3190 = vmatpush.bf16.msra.mxu0 0
        %3191 = vmatpush.bf16.msra.mxu0 0
        %3192 = vmatpush.bf16.msra.mxu0 0
        %3193 = vmatpush.bf16.msra.mxu0 0
        %3194 = vmatpush.bf16.msra.mxu0 0
        %3195 = vmatpush.bf16.msra.mxu0 %v3186
        %3196 = vmatmul.bf16.gmra.mxu0 %v3162
        %v3197 = vpop.f32.mrf.mxu0
        %v3198 = vadd.f32 %v3159, %v3197
        %v3199 = vpop.f32.mrf.mxu0
        %v3200 = vadd.f32 %v3159, %v3199
        %3201 = vmatmul.bf16.gmra.mxu0 %v3165
        %v3202 = vpop.f32.mrf.mxu0
        %v3203 = vadd.f32 %v3159, %v3202
        %v3204 = vpop.f32.mrf.mxu0
        %v3205 = vadd.f32 %v3159, %v3204
        %3206 = vmatmul.bf16.gmra.mxu0 %v3168
        %v3207 = vpop.f32.mrf.mxu0
        %v3208 = vadd.f32 %v3159, %v3207
        %v3209 = vpop.f32.mrf.mxu0
        %v3210 = vadd.f32 %v3159, %v3209
        %3211 = vmatmul.bf16.gmra.mxu0 %v3171
        %v3212 = vpop.f32.mrf.mxu0
        %v3213 = vadd.f32 %v3159, %v3212
        %v3214 = vpop.f32.mrf.mxu0
        %v3215 = vadd.f32 %v3159, %v3214
        %3216 = vmatmul.bf16.gmra.mxu0 %v3174
        %v3217 = vpop.f32.mrf.mxu0
        %v3218 = vadd.f32 %v3159, %v3217
        %v3219 = vpop.f32.mrf.mxu0
        %v3220 = vadd.f32 %v3159, %v3219
        %3221 = vmatmul.bf16.gmra.mxu0 %v3177
        %v3222 = vpop.f32.mrf.mxu0
        %v3223 = vadd.f32 %v3159, %v3222
        %v3224 = vpop.f32.mrf.mxu0
        %v3225 = vadd.f32 %v3159, %v3224
        %3226 = vmatmul.bf16.gmra.mxu0 %v3180
        %v3227 = vpop.f32.mrf.mxu0
        %v3228 = vadd.f32 %v3159, %v3227
        %v3229 = vpop.f32.mrf.mxu0
        %v3230 = vadd.f32 %v3159, %v3229
        %3231 = vmatmul.bf16.gmra.mxu0 %v3183
        %v3232 = vpop.f32.mrf.mxu0
        %v3233 = vadd.f32 %v3159, %v3232
        %v3234 = vpop.f32.mrf.mxu0
        %v3235 = vadd.f32 %v3159, %v3234
        %3236 = vdwg.mxu0
        %v3237 = vunpack.c.l.bf16 %v499
        %v3238 = vunpack.c.l.bf16 %v500
        %v3239 = vunpack.c.l.bf16 %v501
        %v3240 = vunpack.c.l.bf16 %v502
        %v3241 = vunpack.c.l.bf16 %v503
        %v3242 = vunpack.c.l.bf16 %v504
        %v3243 = vunpack.c.l.bf16 %v505
        %v3244 = vunpack.c.l.bf16 %v506
        %v3245 = vunpack.c.l.bf16 %v507
        %v3246 = vunpack.c.l.bf16 %v508
        %v3247 = vunpack.c.l.bf16 %v509
        %v3248 = vunpack.c.l.bf16 %v510
        %v3249 = vunpack.c.l.bf16 %v511
        %v3250 = vunpack.c.l.bf16 %v512
        %v3251 = vunpack.c.l.bf16 %v513
        %v3252 = vunpack.c.l.bf16 %v514
        %v3253 = vadd.f32 %v3198, %v3237
        %v3254 = vadd.f32 %v3200, %v3238
        %v3255 = vadd.f32 %v3203, %v3239
        %v3256 = vadd.f32 %v3205, %v3240
        %v3257 = vadd.f32 %v3208, %v3241
        %v3258 = vadd.f32 %v3210, %v3242
        %v3259 = vadd.f32 %v3213, %v3243
        %v3260 = vadd.f32 %v3215, %v3244
        %v3261 = vadd.f32 %v3218, %v3245
        %v3262 = vadd.f32 %v3220, %v3246
        %v3263 = vadd.f32 %v3223, %v3247
        %v3264 = vadd.f32 %v3225, %v3248
        %v3265 = vadd.f32 %v3228, %v3249
        %v3266 = vadd.f32 %v3230, %v3250
        %v3267 = vadd.f32 %v3233, %v3251
        %v3268 = vadd.f32 %v3235, %v3252
        %v3269 = vmax.f32 %v3253, 0.0
        %v3270 = vmax.f32 %v3254, 0.0
        %v3271 = vmax.f32 %v3255, 0.0
        %v3272 = vmax.f32 %v3256, 0.0
        %v3273 = vmax.f32 %v3257, 0.0
        %v3274 = vmax.f32 %v3258, 0.0
        %v3275 = vmax.f32 %v3259, 0.0
        %v3276 = vmax.f32 %v3260, 0.0
        %v3277 = vmax.f32 %v3261, 0.0
        %v3278 = vmax.f32 %v3262, 0.0
        %v3279 = vmax.f32 %v3263, 0.0
        %v3280 = vmax.f32 %v3264, 0.0
        %v3281 = vmax.f32 %v3265, 0.0
        %v3282 = vmax.f32 %v3266, 0.0
        %v3283 = vmax.f32 %v3267, 0.0
        %v3284 = vmax.f32 %v3268, 0.0
        %v3285 = vpack.c.bf16 %v3269, %v3269
        %v3286 = vpack.c.bf16 %v3270, %v3270
        %v3287 = vpack.c.bf16 %v3271, %v3271
        %v3288 = vpack.c.bf16 %v3272, %v3272
        %v3289 = vpack.c.bf16 %v3273, %v3273
        %v3290 = vpack.c.bf16 %v3274, %v3274
        %v3291 = vpack.c.bf16 %v3275, %v3275
        %v3292 = vpack.c.bf16 %v3276, %v3276
        %v3293 = vpack.c.bf16 %v3277, %v3277
        %v3294 = vpack.c.bf16 %v3278, %v3278
        %v3295 = vpack.c.bf16 %v3279, %v3279
        %v3296 = vpack.c.bf16 %v3280, %v3280
        %v3297 = vpack.c.bf16 %v3281, %v3281
        %v3298 = vpack.c.bf16 %v3282, %v3282
        %v3299 = vpack.c.bf16 %v3283, %v3283
        %v3300 = vpack.c.bf16 %v3284, %v3284
        %vm3301 = vcmask 125952
        %3302 = vst.msk [vmem:[%s484] sm:$0xf] %vm3301, %v3285
        %3303 = vst.msk [vmem:[%s484 + $0x4] sm:$0xf] %vm3301, %v3286
        %3304 = vst.msk [vmem:[%s484 + $0x8] sm:$0xf] %vm3301, %v3287
        %3305 = vst.msk [vmem:[%s484 + $0xc] sm:$0xf] %vm3301, %v3288
        %3306 = vst.msk [vmem:[%s484 + $0x10] sm:$0xf] %vm3301, %v3289
        %3307 = vst.msk [vmem:[%s484 + $0x14] sm:$0xf] %vm3301, %v3290
        %3308 = vst.msk [vmem:[%s484 + $0x18] sm:$0xf] %vm3301, %v3291
        %3309 = vst.msk [vmem:[%s484 + $0x1c] sm:$0xf] %vm3301, %v3292
        %3310 = vst.msk [vmem:[%s484 + $0x20] sm:$0xf] %vm3301, %v3293
        %3311 = vst.msk [vmem:[%s484 + $0x24] sm:$0xf] %vm3301, %v3294
        %3312 = vst.msk [vmem:[%s484 + $0x28] sm:$0xf] %vm3301, %v3295
        %3313 = vst.msk [vmem:[%s484 + $0x2c] sm:$0xf] %vm3301, %v3296
        %3314 = vst.msk [vmem:[%s484 + $0x30] sm:$0xf] %vm3301, %v3297
        %3315 = vst.msk [vmem:[%s484 + $0x34] sm:$0xf] %vm3301, %v3298
        %3316 = vst.msk [vmem:[%s484 + $0x38] sm:$0xf] %vm3301, %v3299
        %3317 = vst.msk [vmem:[%s484 + $0x3c] sm:$0xf] %vm3301, %v3300
        %s3318 = sand.u32 %s277, 1
        %s3319 = scalar_lea.sflag [#allocation5], %s3318
        %s3320 = sand.u32 %s277, 1
        %s3321 = smul.addr %s3320, 64
        %s3322 = scalar_lea.vmem [#allocation9], %s3321
        // Predicated region
        $region77: #{tpu_custom_call.1} parent=55 // pred_check
          %p3323 = pneg %p287
        $region78: #{tpu_custom_call.1} parent=55 // pred_check_branch
          %3325 = sbr.rel (%p3323) target = $region80
        $region79: #{tpu_custom_call.1} parent=55 // pred_region
          %s3326 = smul.u32 8, %s34
          %3328 = vsyncadd %s3319, 0
          %s3329 = smul.addr %s3326, 2
          %s3330 = smul.addr %s33, 32
          %s3331 = sadd.s32 %s3329, %s3330
          %s3332 = smul.addr %s3331, 4
          %s3333 = scalar_lea.hbm %s9, %s3332
          %s3334 = sshll.u32 %s3322, 4
          %s3335 = int_to_ptr.vmem [resolvable:$true] %s3334
          %s3336 = sshll.u32 %s3333, 4
          %s3337 = int_to_ptr.hbm [resolvable:$true] %s3336
          %3342 = dma.vmem_to_hbm [thread:$0]  %s3335, 1024, %s3337, %s3319, 64, 64, 4
        $region80: #{tpu_custom_call.1} parent=55 // pred_fallthru
          _
      $region56: #{tpu_custom_call.1} parent=5 // pred_fallthru
        _
      %p3343 = scmp.le.s32.totalorder 2, %s24
      // Predicated region
      $region81: #{tpu_custom_call.1} parent=5 // pred_check
        %p3344 = pneg %p3343
      $region82: #{tpu_custom_call.1} parent=5 // pred_check_branch
        %3346 = sbr.rel (%p3344) target = $region84
      $region83: #{tpu_custom_call.1} parent=5 // pred_region
        %s3347 = ssub.s32 %s24, 2
        // Predicated region
        $region85: #{tpu_custom_call.1} parent=83 // pred_check
          %p3348 = pneg %p293
        $region86: #{tpu_custom_call.1} parent=83 // pred_check_branch
          %3350 = sbr.rel (%p3348) target = $region88
        $region87: #{tpu_custom_call.1} parent=83 // pred_region
          %s3351 = sand.u32 %s278, 1
          %s3352 = scalar_lea.sflag [#allocation5], %s3351
          %s3353 = sand.u32 %s278, 1
          %s3354 = smul.addr %s3353, 64
          %s3355 = scalar_lea.vmem [#allocation9], %s3354
          %3357 = dma.done %s3352, 1024
        $region88: #{tpu_custom_call.1} parent=83 // pred_fallthru
          _
      $region84: #{tpu_custom_call.1} parent=5 // pred_fallthru
        _
    $region6: #{tpu_custom_call.1} parent=1 // loop_footer
      %s28 = sadd.s32 1, %s24
    $region7: #{tpu_custom_call.1} parent=1 // loop_footer_branch
      %23 = sbr.rel target = $region3
    $region8: #{tpu_custom_call.1} parent=1 // loop_exit
      _
    %3358 = vsyncpa [#allocation4], 1
    %s3359 = scalar_lea.sflag [#allocation4], 1
    %3360 = vsyncpa %s3359, 1
    %3361 = vsyncpa [#allocation7], 1
    %s3362 = scalar_lea.sflag [#allocation7], 1
    %3363 = vsyncpa %s3362, 1
    %3364 = vsyncpa [#allocation5], 1
    %s3365 = scalar_lea.sflag [#allocation5], 1
    %3366 = vsyncpa %s3365, 1

</llo_original>
